<compile_context>
chip_gen: v7x
topology: tpu7x:2x2x1
jax: 0.10.0
libtpu: 0.0.40
codegen_flags: <defaults>
</compile_context>

<pallas_src>
import functools

import jax
import jax.numpy as jnp
import numpy as np
from jax import lax
from jax.experimental import pallas as pl
from jax.experimental.pallas import tpu as pltpu

BN_EPS = 1e-5
# Scoped-VMEM cap handed to Mosaic: above the 16/32 MiB v5e/v6e defaults,
# still below v7x's 64 MiB physical VMEM.
VMEM_LIMIT = 48 * 1024 * 1024
# Budget used when sizing row bands (per-step inputs + outputs + scratch).
VMEM_BLOCK_BUDGET = 20 * 1024 * 1024


# ----------------------------------------------------------------------------
# Band-size helper (VMEM-budget aware)
# ----------------------------------------------------------------------------
def _pick_band(n, bytes_per_row, budget, need_multi):
    """Largest divisor of n whose band fits `budget`.  If `need_multi`, prefer
    leaving >=2 bands so the grid can shard across v7x's two TensorCores."""
    divisors = [d for d in range(1, n + 1) if n % d == 0]
    fits = [d for d in divisors if d * bytes_per_row <= budget] or [1]
    if need_multi:
        multi = [d for d in fits if n // d >= 2]
        if multi:
            return max(multi)
    return max(fits)


# ----------------------------------------------------------------------------
# Pallas kernels
# ----------------------------------------------------------------------------
def _fused_conv_kernel(*refs, n_src, halos, taps, n_lin, has_res, relu):
    """out = [relu]( concat(patch_slabs, lin_slabs) @ W + bias [+ res] ).

    refs = (per-source: main_band, halo_row..., lin_x..., W, bias, [res], out)

    Patch slabs are built in VMEM from dense row-band blocks of the padded
    input using static contiguous slices only, then fed to a single MXU
    matmul (bf16 inputs, f32 accumulation / epilogue).
    """
    o_ref = refs[-1]
    bh, wo, _ = o_ref.shape

    idx = 0
    fulls = []
    for s in range(n_src):
        parts = [refs[idx][...]]          # main band (bh, Ws, Cs)
        idx += 1
        for _ in range(halos[s]):
            parts.append(refs[idx][...])  # halo row (1, Ws, Cs)
            idx += 1
        fulls.append(jnp.concatenate(parts, axis=0) if halos[s] else parts[0])

    slabs = []
    for (s, r, c, ch, cw) in taps:        # 3x3 taps (static)
        slabs.append(fulls[s][r:r + bh, c:c + wo, ch:ch + cw])
    for _ in range(n_lin):                # fused 1x1 branches
        slabs.append(refs[idx][...])
        idx += 1

    w_ref = refs[idx]                     # (Ktot, O) bf16, BN scale folded
    b_ref = refs[idx + 1]                 # (1, O) f32
    res_ref = refs[idx + 2] if has_res else None

    patches = slabs[0] if len(slabs) == 1 else jnp.concatenate(slabs, axis=-1)
    k = patches.shape[-1]
    acc = jnp.dot(patches.reshape(bh * wo, k), w_ref[...],
                  preferred_element_type=jnp.float32)
    acc = acc + b_ref[...]
    if has_res:
        acc = acc + res_ref[...].reshape(bh * wo, -1).astype(jnp.float32)
    if relu:
        acc = jnp.maximum(acc, 0.0)
    o_ref[...] = acc.reshape(o_ref.shape).astype(o_ref.dtype)


def _maxpool_kernel(x_ref, o_ref):
    """2x2/2 max-pool on a (bm, 2, Wo, 2*C) tile -> (bm, Wo, C)."""
    v = x_ref[...]                              # (bm, 2, Wo, 2C)
    v = jnp.maximum(v[:, 0], v[:, 1])           # H-pair max       -> (bm, Wo, 2C)
    c = o_ref.shape[-1]
    o_ref[...] = jnp.maximum(v[..., :c], v[..., c:])   # W-pair (lane halves)


# ----------------------------------------------------------------------------
# Fused conv wrapper (direct 3x3 conv + fused 1x1 branches + BN + res + ReLU)
# ----------------------------------------------------------------------------
def _fused_conv(*, conv3=None, stride=1, lin=(), bias, residual=None,
                relu=True, out_dtype=jnp.bfloat16):
    """One pallas_call computing
        out = [relu]( conv3x3(x3) + sum_g (xg @ wg) + bias [+ residual] )

    conv3:   (x NHWC bf16, wmat (9*C, O)) with the BN scale already folded,
             3x3 kernel, pad=1, given stride (1 or 2).
    lin:     sequence of (xg NHWC bf16 at the OUTPUT spatial size, wg (Cg, O)).
    bias:    (O,) f32 -- sum of all folded BN biases of the fused branches.
    residual: optional NHWC tensor added before the ReLU.
    """
    sources, taps, w_parts = [], [], []

    if conv3 is not None:
        x3, w3 = conv3
        N, H, W, C = x3.shape
        assert H % stride == 0 and W % stride == 0
        Ho, Wo = H // stride, W // stride
        xp = jnp.pad(x3, ((0, 0), (1, 1), (1, 1), (0, 0)))
        if stride == 1:
            sources.append(xp)                     # (N, H+2, W+2, C)
            for ki in range(3):
                for kj in range(3):
                    taps.append((0, ki, kj, 0, C))
        elif stride == 2:
            # Row-phase split (trace-time, ~1x the input -- NOT the 9x im2col
            # tensor); the column phase is folded into the lane dim with a
            # free reshape so in-kernel slices stay contiguous.
            for p in (0, 1):
                src = xp[:, p::2, :, :].reshape(N, Ho + 1, Wo + 1, 2 * C)
                sources.append(src)
            for ki in range(3):
                for kj in range(3):
                    taps.append((ki % 2, ki // 2, kj // 2, (kj % 2) * C, C))
        else:
            raise NotImplementedError("only stride 1 / 2 are needed by Tree")
        w_parts.append(w3)
    else:
        assert lin, "need at least one branch"
        N, Ho, Wo, _ = lin[0][0].shape

    lin = tuple(lin)
    for xg, wg in lin:
        assert tuple(xg.shape[:3]) == (N, Ho, Wo)
        w_parts.append(wg)

    wcat = (jnp.concatenate(w_parts, axis=0) if len(w_parts) > 1
            else w_parts[0]).astype(jnp.bfloat16)
    Ktot, O = wcat.shape
    bias2d = jnp.asarray(bias, jnp.float32).reshape(1, O)

    # halo rows per source = max row offset used by any tap of that source
    halos = []
    for s in range(len(sources)):
        r_offs = [r for (si, r, _, _, _) in taps if si == s]
        halos.append(max(r_offs) if r_offs else 0)
    halos = tuple(halos)

    # ---- VMEM-budget-aware band size (and >=2 grid steps when possible) ----
    out_isz = jnp.dtype(out_dtype).itemsize
    row_bytes = 0
    for src in sources:
        row_bytes += 2 * src.shape[2] * src.shape[3] * src.dtype.itemsize
    for xg, _ in lin:
        row_bytes += 2 * Wo * xg.shape[3] * xg.dtype.itemsize
    row_bytes += 2 * Wo * O * out_isz
    if residual is not None:
        row_bytes += 2 * Wo * O * residual.dtype.itemsize
    row_bytes += Wo * Ktot * 2 + Wo * O * 4       # in-kernel patches + f32 acc
    fixed_bytes = 2 * (Ktot * O * 2 + O * 4)      # weights + bias (dbl-buffered)
    bh = _pick_band(Ho, max(row_bytes, 1),
                    max(VMEM_BLOCK_BUDGET - fixed_bytes, row_bytes),
                    need_multi=(N < 2))
    grid = (N, Ho // bh)

    # ---- specs / args (order must match the kernel's parse order) ----
    in_specs, args = [], []
    for s, src in enumerate(sources):
        Ws, Cs = src.shape[2], src.shape[3]
        in_specs.append(pl.BlockSpec((None, bh, Ws, Cs),
                                     lambda n, b: (n, b, 0, 0)))
        args.append(src)
        for j in range(halos[s]):
            in_specs.append(pl.BlockSpec(
                (None, 1, Ws, Cs),
                lambda n, b, bh=bh, j=j: (n, (b + 1) * bh + j, 0, 0)))
            args.append(src)
    for xg, _ in lin:
        Cg = xg.shape[3]
        in_specs.append(pl.BlockSpec((None, bh, Wo, Cg),
                                     lambda n, b: (n, b, 0, 0)))
        args.append(xg)
    in_specs.append(pl.BlockSpec((Ktot, O), lambda n, b: (0, 0)))
    args.append(wcat)
    in_specs.append(pl.BlockSpec((1, O), lambda n, b: (0, 0)))
    args.append(bias2d)
    if residual is not None:
        in_specs.append(pl.BlockSpec((None, bh, Wo, O),
                                     lambda n, b: (n, b, 0, 0)))
        args.append(residual)
    out_spec = pl.BlockSpec((None, bh, Wo, O), lambda n, b: (n, b, 0, 0))

    flops = 2 * N * Ho * Wo * Ktot * O
    bytes_accessed = (sum(int(a.size) * a.dtype.itemsize for a in args)
                      + N * Ho * Wo * O * out_isz)

    kernel = functools.partial(
        _fused_conv_kernel, n_src=len(sources), halos=halos, taps=tuple(taps),
        n_lin=len(lin), has_res=residual is not None, relu=relu)

    return pl.pallas_call(
        kernel,
        out_shape=jax.ShapeDtypeStruct((N, Ho, Wo, O), out_dtype),
        grid=grid,
        in_specs=in_specs,
        out_specs=out_spec,
        compiler_params=pltpu.CompilerParams(
            dimension_semantics=("parallel", "parallel"),
            vmem_limit_bytes=VMEM_LIMIT),
        cost_estimate=pl.CostEstimate(
            flops=int(flops), transcendentals=0,
            bytes_accessed=int(bytes_accessed)),
    )(*args)


# ----------------------------------------------------------------------------
# MaxPool2d(2, 2)
# ----------------------------------------------------------------------------
def maxpool2x2(x):
    """nn.MaxPool2d(2, stride=2). x: NHWC with even H, W (single-read kernel)."""
    N, H, W, C = x.shape
    # TODO(synk): odd spatial dims (PyTorch floors them) are not handled.
    assert H % 2 == 0 and W % 2 == 0, "maxpool2x2 expects even spatial dims"
    Ho, Wo = H // 2, W // 2
    R = N * Ho
    x4 = x.reshape(R, 2, Wo, 2 * C)    # free row-major view; W-pair lives in lanes
    isz = x.dtype.itemsize
    row_bytes = 2 * (2 * Wo * 2 * C * isz) + 2 * (Wo * C * isz)
    bm = _pick_band(R, row_bytes, VMEM_BLOCK_BUDGET, need_multi=True)

    out = pl.pallas_call(
        _maxpool_kernel,
        out_shape=jax.ShapeDtypeStruct((R, Wo, C), x.dtype),
        grid=(R // bm,),
        in_specs=[pl.BlockSpec((bm, 2, Wo, 2 * C), lambda i: (i, 0, 0, 0))],
        out_specs=pl.BlockSpec((bm, Wo, C), lambda i: (i, 0, 0)),
        compiler_params=pltpu.CompilerParams(
            dimension_semantics=("parallel",),
            vmem_limit_bytes=VMEM_LIMIT),
        cost_estimate=pl.CostEstimate(
            flops=3 * R * Wo * C, transcendentals=0,
            bytes_accessed=int(x.size) * isz + R * Wo * C * isz),
    )(x4)
    return out.reshape(N, Ho, Wo, C)


# ----------------------------------------------------------------------------
# Weight matrix helpers (BN scale folded at trace time)
# ----------------------------------------------------------------------------
def _w3mat(pc):
    """(O,I,3,3) -> (9*I, O) row order (ki, kj, i); BN scale folded."""
    w = pc["w"]
    o, i = w.shape[0], w.shape[1]
    m = jnp.transpose(w, (2, 3, 1, 0)).reshape(9 * i, o)
    return m * pc["scale"][None, :]


def _w1mat(pc):
    """(O,I,1,1) -> (I, O); BN scale folded."""
    return pc["w"][:, :, 0, 0].T * pc["scale"][None, :]


# ----------------------------------------------------------------------------
# Parameter init (deterministic)
# ----------------------------------------------------------------------------
def _fold_bn(gamma, beta, mean, var):
    scale = gamma / jnp.sqrt(var + BN_EPS)
    bias = beta - mean * scale
    return scale, bias


def _conv_bn_params(key, cout, cin, k):
    kw_, kg, kb, km, kv = jax.random.split(key, 5)
    w = 0.1 * jax.random.normal(kw_, (cout, cin, k, k), jnp.float32)
    gamma = 1.0 + 0.1 * jax.random.normal(kg, (cout,), jnp.float32)
    beta = 0.05 * jax.random.normal(kb, (cout,), jnp.float32)
    mean = 0.05 * jax.random.normal(km, (cout,), jnp.float32)
    var = 1.0 + 0.1 * jax.random.uniform(kv, (cout,), jnp.float32)
    scale, bias = _fold_bn(gamma, beta, mean, var)
    return dict(w=w, scale=scale, bias=bias)


def make_tree_params(key, in_ch, out_ch):
    ks = jax.random.split(key, 6)
    return dict(
        tree1_c1=_conv_bn_params(ks[0], out_ch, in_ch, 3),   # BasicBlock(in,out,2) conv1
        tree1_c2=_conv_bn_params(ks[1], out_ch, out_ch, 3),  # conv2
        tree2_c1=_conv_bn_params(ks[2], out_ch, out_ch, 3),  # BasicBlock(out,out,1) conv1
        tree2_c2=_conv_bn_params(ks[3], out_ch, out_ch, 3),  # conv2
        project=_conv_bn_params(ks[4], out_ch, in_ch, 1),    # 1x1 project (in != out)
        root=_conv_bn_params(ks[5], out_ch, 2 * out_ch + in_ch, 1),  # Root
    )


# ----------------------------------------------------------------------------
# Tree forward (levels=1, BasicBlock, stride=2, level_root=True)
# ----------------------------------------------------------------------------
def tree_forward(x, params):
    """x: NHWC f32.  Intermediates are bf16; final Root output is f32."""
    p = params
    o = p["tree1_c1"]["w"].shape[0]
    xb = x.astype(jnp.bfloat16)

    bottom = maxpool2x2(xb)                                   # (N,Ho,Wo,Cin) bf16

    # tree1 = BasicBlock(in, out, stride=2), residual = project(bottom)
    y1 = _fused_conv(conv3=(xb, _w3mat(p["tree1_c1"])), stride=2,
                     bias=p["tree1_c1"]["bias"], relu=True)
    # conv2 + folded-in 1x1 `project` residual branch, ReLU after the sum.
    x1 = _fused_conv(conv3=(y1, _w3mat(p["tree1_c2"])), stride=1,
                     lin=[(bottom, _w1mat(p["project"]))],
                     bias=p["tree1_c2"]["bias"] + p["project"]["bias"],
                     relu=True)

    # tree2 = BasicBlock(out, out, 1), residual = x1
    y2 = _fused_conv(conv3=(x1, _w3mat(p["tree2_c1"])), stride=1,
                     bias=p["tree2_c1"]["bias"], relu=True)
    x2 = _fused_conv(conv3=(y2, _w3mat(p["tree2_c2"])), stride=1,
                     bias=p["tree2_c2"]["bias"], residual=x1, relu=True)

    # Root: relu(BN(conv1x1(cat([x2, x1, bottom])))), computed as ONE matmul
    # with the group slabs concatenated in VMEM (no HBM concat).
    rw = p["root"]["w"][:, :, 0, 0]                            # (O, 2O+Cin)
    rs = p["root"]["scale"]
    wg_x2 = rw[:, :o].T * rs[None, :]
    wg_x1 = rw[:, o:2 * o].T * rs[None, :]
    wg_bt = rw[:, 2 * o:].T * rs[None, :]
    out = _fused_conv(lin=[(x2, wg_x2), (x1, wg_x1), (bottom, wg_bt)],
                      bias=p["root"]["bias"], relu=True, out_dtype=jnp.float32)
    return out


# ----------------------------------------------------------------------------
# Pure-JAX reference (for correctness check)
# ----------------------------------------------------------------------------
def conv_bn_ref(x, w_oihw, scale, bias, *, stride=1, relu=True, residual=None):
    kh = w_oihw.shape[2]
    pad = (kh - 1) // 2
    w_hwio = jnp.transpose(w_oihw, (2, 3, 1, 0))
    y = lax.conv_general_dilated(
        x, w_hwio, (stride, stride), [(pad, pad), (pad, pad)],
        dimension_numbers=("NHWC", "HWIO", "NHWC"),
        precision=lax.Precision.HIGHEST)
    y = y * scale + bias
    if residual is not None:
        y = y + residual
    if relu:
        y = jnp.maximum(y, 0.0)
    return y


def maxpool_ref(x):
    return lax.reduce_window(x, -jnp.inf, lax.max, (1, 2, 2, 1), (1, 2, 2, 1), "VALID")


def basic_block_ref(x, p1, p2, stride, residual):
    out = conv_bn_ref(x, p1["w"], p1["scale"], p1["bias"], stride=stride, relu=True)
    out = conv_bn_ref(out, p2["w"], p2["scale"], p2["bias"], stride=1, relu=True,
                      residual=residual)
    return out


def tree_forward_ref(x, params):
    bottom = maxpool_ref(x)
    residual = conv_bn_ref(bottom, params["project"]["w"], params["project"]["scale"],
                           params["project"]["bias"], stride=1, relu=False)
    x1 = basic_block_ref(x, params["tree1_c1"], params["tree1_c2"], 2, residual)
    x2 = basic_block_ref(x1, params["tree2_c1"], params["tree2_c2"], 1, x1)
    cat = jnp.concatenate([x2, x1, bottom], axis=-1)
    return conv_bn_ref(cat, params["root"]["w"], params["root"]["scale"],
                       params["root"]["bias"], stride=1, relu=True)


# ----------------------------------------------------------------------------
if __name__ == "__main__":
    key = jax.random.PRNGKey(0)
    k_in, k_par = jax.random.split(key)

    N, Cin, H, W = 2, 4, 16, 16
    Cout = 8

    x_nchw = jax.random.normal(k_in, (N, Cin, H, W), jnp.float32)   # PyTorch layout
    x_nhwc = jnp.transpose(x_nchw, (0, 2, 3, 1))                    # kernel layout

    params = make_tree_params(k_par, Cin, Cout)

    fwd = jax.jit(lambda xx: tree_forward(xx, params))
    out = jax.block_until_ready(fwd(x_nhwc))

    ref = jax.block_until_ready(tree_forward_ref(x_nhwc, params))

    assert out.shape == (N, H // 2, W // 2, Cout), out.shape
    # bf16 MXU inputs and bf16 intermediates (f32 accumulation) vs f32 reference.
    np.testing.assert_allclose(np.asarray(out), np.asarray(ref), rtol=4e-2, atol=4e-2)

    print("KERNEL_OK")
</pallas_src>

<mosaic_0001>
module attributes {stable_mosaic.version = 11 : i64} {
  func.func @_maxpool_kernel(%arg0: i32, %arg1: memref<8x2x8x8xbf16, #tpu.memory_space<vmem>>, %arg2: memref<8x8x4xbf16, #tpu.memory_space<vmem>>) attributes {dimension_semantics = [#tpu.dimension_semantics<parallel>], iteration_bounds = array<i64: 2>, scalar_prefetch = 0 : i64, scratch_operands = 0 : i64, tpu.core_type = #tpu.core_type<tc>, window_params = [{transform_indices = @transform_0, window_bounds = array<i64: 8, 2, 8, 8>}, {transform_indices = @transform_1, window_bounds = array<i64: 8, 8, 4>}]} {
    %c0 = arith.constant 0 : index
    %c0_0 = arith.constant 0 : index
    %c0_1 = arith.constant 0 : index
    %c0_2 = arith.constant 0 : index
    %0 = vector.load %arg1[%c0, %c0_0, %c0_1, %c0_2] : memref<8x2x8x8xbf16, #tpu.memory_space<vmem>>, vector<8x2x8x8xbf16>
    %1 = vector.extract_strided_slice %0 {offsets = [0, 0, 0, 0], sizes = [8, 1, 8, 8], strides = [1, 1, 1, 1]} : vector<8x2x8x8xbf16> to vector<8x1x8x8xbf16>
    %2 = vector.shape_cast %1 : vector<8x1x8x8xbf16> to vector<8x8x8xbf16>
    %3 = vector.extract_strided_slice %0 {offsets = [0, 1, 0, 0], sizes = [8, 1, 8, 8], strides = [1, 1, 1, 1]} : vector<8x2x8x8xbf16> to vector<8x1x8x8xbf16>
    %4 = vector.shape_cast %3 : vector<8x1x8x8xbf16> to vector<8x8x8xbf16>
    %5 = arith.maximumf %2, %4 : vector<8x8x8xbf16>
    %6 = vector.extract_strided_slice %5 {offsets = [0, 0, 0], sizes = [8, 8, 4], strides = [1, 1, 1]} : vector<8x8x8xbf16> to vector<8x8x4xbf16>
    %7 = vector.extract_strided_slice %5 {offsets = [0, 0, 4], sizes = [8, 8, 4], strides = [1, 1, 1]} : vector<8x8x8xbf16> to vector<8x8x4xbf16>
    %8 = arith.maximumf %6, %7 : vector<8x8x4xbf16>
    %c0_3 = arith.constant 0 : index
    %c0_4 = arith.constant 0 : index
    %c0_5 = arith.constant 0 : index
    %9 = vector.load %arg2[%c0_3, %c0_4, %c0_5] : memref<8x8x4xbf16, #tpu.memory_space<vmem>>, vector<8x8x4xbf16>
    tpu.vector_store %arg2[%c0_3, %c0_4, %c0_5], %8 {strides = array<i32>} : memref<8x8x4xbf16, #tpu.memory_space<vmem>>, vector<8x8x4xbf16>,
    return
  }
  func.func @transform_0(%arg0: i32) -> (i32, i32, i32, i32) {
    %c0_i32 = arith.constant 0 : i32
    %c0_i32_0 = arith.constant 0 : i32
    %c0_i32_1 = arith.constant 0 : i32
    %c0_i32_2 = arith.constant 0 : i32
    return %arg0, %c0_i32, %c0_i32_0, %c0_i32_1 : i32, i32, i32, i32
  }
  func.func @transform_1(%arg0: i32) -> (i32, i32, i32) {
    %c0_i32 = arith.constant 0 : i32
    %c0_i32_0 = arith.constant 0 : i32
    %c0_i32_1 = arith.constant 0 : i32
    return %arg0, %c0_i32, %c0_i32_0 : i32, i32, i32
  }
}

module attributes {stable_mosaic.version = 11 : i64} {
  func.func @_fused_conv_kernel(%arg0: i32, %arg1: i32, %arg2: memref<1x8x9x8xbf16, #tpu.memory_space<vmem>>, %arg3: memref<1x1x9x8xbf16, #tpu.memory_space<vmem>>, %arg4: memref<1x8x9x8xbf16, #tpu.memory_space<vmem>>, %arg5: memref<36x8xbf16, #tpu.memory_space<vmem>>, %arg6: memref<1x8xf32, #tpu.memory_space<vmem>>, %arg7: memref<1x8x8x8xbf16, #tpu.memory_space<vmem>>) attributes {dimension_semantics = [#tpu.dimension_semantics<parallel>, #tpu.dimension_semantics<parallel>], iteration_bounds = array<i64: 2, 1>, scalar_prefetch = 0 : i64, scratch_operands = 0 : i64, tpu.core_type = #tpu.core_type<tc>, window_params = [{transform_indices = @transform_0, window_bounds = array<i64: 1, 8, 9, 8>}, {transform_indices = @transform_1, window_bounds = array<i64: 1, 1, 9, 8>}, {transform_indices = @transform_2, window_bounds = array<i64: 1, 8, 9, 8>}, {pipeline_mode = #tpu.pipeline_mode<synchronous>, transform_indices = @transform_3, window_bounds = array<i64: 36, 8>}, {pipeline_mode = #tpu.pipeline_mode<synchronous>, transform_indices = @transform_4, window_bounds = array<i64: 1, 8>}, {transform_indices = @transform_5, window_bounds = array<i64: 1, 8, 8, 8>}]} {
    %c0 = arith.constant 0 : index
    %c0_0 = arith.constant 0 : index
    %c0_1 = arith.constant 0 : index
    %c0_2 = arith.constant 0 : index
    %0 = vector.load %arg2[%c0, %c0_0, %c0_1, %c0_2] : memref<1x8x9x8xbf16, #tpu.memory_space<vmem>>, vector<1x8x9x8xbf16>
    %1 = vector.shape_cast %0 : vector<1x8x9x8xbf16> to vector<8x9x8xbf16>
    %c0_3 = arith.constant 0 : index
    %c0_4 = arith.constant 0 : index
    %c0_5 = arith.constant 0 : index
    %c0_6 = arith.constant 0 : index
    %2 = vector.load %arg3[%c0_3, %c0_4, %c0_5, %c0_6] : memref<1x1x9x8xbf16, #tpu.memory_space<vmem>>, vector<1x1x9x8xbf16>
    %3 = vector.shape_cast %2 : vector<1x1x9x8xbf16> to vector<1x9x8xbf16>
    %4 = tpu.concatenate %1, %3 in 0 : vector<8x9x8xbf16>, vector<1x9x8xbf16> -> vector<9x9x8xbf16>
    %c0_7 = arith.constant 0 : index
    %c0_8 = arith.constant 0 : index
    %c0_9 = arith.constant 0 : index
    %c0_10 = arith.constant 0 : index
    %5 = vector.load %arg4[%c0_7, %c0_8, %c0_9, %c0_10] : memref<1x8x9x8xbf16, #tpu.memory_space<vmem>>, vector<1x8x9x8xbf16>
    %6 = vector.shape_cast %5 : vector<1x8x9x8xbf16> to vector<8x9x8xbf16>
    %7 = vector.extract_strided_slice %4 {offsets = [0, 0, 0], sizes = [8, 8, 4], strides = [1, 1, 1]} : vector<9x9x8xbf16> to vector<8x8x4xbf16>
    %8 = vector.extract_strided_slice %4 {offsets = [0, 0, 4], sizes = [8, 8, 4], strides = [1, 1, 1]} : vector<9x9x8xbf16> to vector<8x8x4xbf16>
    %9 = vector.extract_strided_slice %4 {offsets = [0, 1, 0], sizes = [8, 8, 4], strides = [1, 1, 1]} : vector<9x9x8xbf16> to vector<8x8x4xbf16>
    %10 = vector.extract_strided_slice %6 {offsets = [0, 0, 0], sizes = [8, 8, 4], strides = [1, 1, 1]} : vector<8x9x8xbf16> to vector<8x8x4xbf16>
    %11 = vector.extract_strided_slice %6 {offsets = [0, 0, 4], sizes = [8, 8, 4], strides = [1, 1, 1]} : vector<8x9x8xbf16> to vector<8x8x4xbf16>
    %12 = vector.extract_strided_slice %6 {offsets = [0, 1, 0], sizes = [8, 8, 4], strides = [1, 1, 1]} : vector<8x9x8xbf16> to vector<8x8x4xbf16>
    %13 = vector.extract_strided_slice %4 {offsets = [1, 0, 0], sizes = [8, 8, 4], strides = [1, 1, 1]} : vector<9x9x8xbf16> to vector<8x8x4xbf16>
    %14 = vector.extract_strided_slice %4 {offsets = [1, 0, 4], sizes = [8, 8, 4], strides = [1, 1, 1]} : vector<9x9x8xbf16> to vector<8x8x4xbf16>
    %15 = vector.extract_strided_slice %4 {offsets = [1, 1, 0], sizes = [8, 8, 4], strides = [1, 1, 1]} : vector<9x9x8xbf16> to vector<8x8x4xbf16>
    %16 = tpu.concatenate %7, %8, %9, %10, %11, %12, %13, %14, %15 in 2 : vector<8x8x4xbf16>, vector<8x8x4xbf16>, vector<8x8x4xbf16>, vector<8x8x4xbf16>, vector<8x8x4xbf16>, vector<8x8x4xbf16>, vector<8x8x4xbf16>, vector<8x8x4xbf16>, vector<8x8x4xbf16> -> vector<8x8x36xbf16>
    %17 = vector.shape_cast %16 : vector<8x8x36xbf16> to vector<64x36xbf16>
    %c0_11 = arith.constant 0 : index
    %c0_12 = arith.constant 0 : index
    %18 = vector.load %arg5[%c0_11, %c0_12] : memref<36x8xbf16, #tpu.memory_space<vmem>>, vector<36x8xbf16>
    %cst = arith.constant dense<0.000000e+00> : vector<64x8xf32>
    %19 = tpu.matmul %17, %18, %cst {dimension_numbers = #tpu.dot_dimension_numbers<[1], [0], [0], [1], [0, 0, 1, 1], [], []>} : vector<64x36xbf16>, vector<36x8xbf16>, vector<64x8xf32> -> vector<64x8xf32>
    %c0_13 = arith.constant 0 : index
    %c0_14 = arith.constant 0 : index
    %20 = vector.load %arg6[%c0_13, %c0_14] : memref<1x8xf32, #tpu.memory_space<vmem>>, vector<1x8xf32>
    %21 = vector.broadcast %20 : vector<1x8xf32> to vector<64x8xf32>
    %22 = arith.addf %19, %21 : vector<64x8xf32>
    %cst_15 = arith.constant 0.000000e+00 : f32
    %23 = vector.broadcast %cst_15 : f32 to vector<64x8xf32>
    %24 = arith.maximumf %22, %23 : vector<64x8xf32>
    %25 = vector.shape_cast %24 : vector<64x8xf32> to vector<8x8x8xf32>
    %26 = arith.truncf %25 : vector<8x8x8xf32> to vector<8x8x8xbf16>
    %c0_16 = arith.constant 0 : index
    %c0_17 = arith.constant 0 : index
    %c0_18 = arith.constant 0 : index
    %c0_19 = arith.constant 0 : index
    %27 = vector.load %arg7[%c0_16, %c0_17, %c0_18, %c0_19] : memref<1x8x8x8xbf16, #tpu.memory_space<vmem>>, vector<1x8x8x8xbf16>
    %28 = vector.shape_cast %27 : vector<1x8x8x8xbf16> to vector<8x8x8xbf16>
    %29 = vector.shape_cast %26 : vector<8x8x8xbf16> to vector<1x8x8x8xbf16>
    tpu.vector_store %arg7[%c0_16, %c0_17, %c0_18, %c0_19], %29 {strides = array<i32>} : memref<1x8x8x8xbf16, #tpu.memory_space<vmem>>, vector<1x8x8x8xbf16>,
    return
  }
  func.func @transform_0(%arg0: i32, %arg1: i32) -> (i32, i32, i32, i32) {
    %c0_i32 = arith.constant 0 : i32
    %c0_i32_0 = arith.constant 0 : i32
    %c0_i32_1 = arith.constant 0 : i32
    return %arg0, %arg1, %c0_i32, %c0_i32_0 : i32, i32, i32, i32
  }
  func.func @transform_1(%arg0: i32, %arg1: i32) -> (i32, i32, i32, i32) {
    %c1_i32 = arith.constant 1 : i32
    %0 = arith.addi %arg1, %c1_i32 : i32
    %c8_i32 = arith.constant 8 : i32
    %1 = arith.muli %0, %c8_i32 : i32
    %c0_i32 = arith.constant 0 : i32
    %2 = arith.addi %1, %c0_i32 : i32
    %c0_i32_0 = arith.constant 0 : i32
    %c0_i32_1 = arith.constant 0 : i32
    %c0_i32_2 = arith.constant 0 : i32
    return %arg0, %2, %c0_i32_0, %c0_i32_1 : i32, i32, i32, i32
  }
  func.func @transform_2(%arg0: i32, %arg1: i32) -> (i32, i32, i32, i32) {
    %c0_i32 = arith.constant 0 : i32
    %c0_i32_0 = arith.constant 0 : i32
    %c0_i32_1 = arith.constant 0 : i32
    return %arg0, %arg1, %c0_i32, %c0_i32_0 : i32, i32, i32, i32
  }
  func.func @transform_3(%arg0: i32, %arg1: i32) -> (i32, i32) {
    %c0_i32 = arith.constant 0 : i32
    %c0_i32_0 = arith.constant 0 : i32
    %c0_i32_1 = arith.constant 0 : i32
    return %c0_i32, %c0_i32_0 : i32, i32
  }
  func.func @transform_4(%arg0: i32, %arg1: i32) -> (i32, i32) {
    %c0_i32 = arith.constant 0 : i32
    %c0_i32_0 = arith.constant 0 : i32
    %c0_i32_1 = arith.constant 0 : i32
    return %c0_i32, %c0_i32_0 : i32, i32
  }
  func.func @transform_5(%arg0: i32, %arg1: i32) -> (i32, i32, i32, i32) {
    %c0_i32 = arith.constant 0 : i32
    %c0_i32_0 = arith.constant 0 : i32
    %c0_i32_1 = arith.constant 0 : i32
    return %arg0, %arg1, %c0_i32, %c0_i32_0 : i32, i32, i32, i32
  }
}

module attributes {stable_mosaic.version = 11 : i64} {
  func.func @_fused_conv_kernel(%arg0: i32, %arg1: i32, %arg2: memref<1x8x10x8xbf16, #tpu.memory_space<vmem>>, %arg3: memref<1x1x10x8xbf16, #tpu.memory_space<vmem>>, %arg4: memref<1x1x10x8xbf16, #tpu.memory_space<vmem>>, %arg5: memref<1x8x8x4xbf16, #tpu.memory_space<vmem>>, %arg6: memref<76x8xbf16, #tpu.memory_space<vmem>>, %arg7: memref<1x8xf32, #tpu.memory_space<vmem>>, %arg8: memref<1x8x8x8xbf16, #tpu.memory_space<vmem>>) attributes {dimension_semantics = [#tpu.dimension_semantics<parallel>, #tpu.dimension_semantics<parallel>], iteration_bounds = array<i64: 2, 1>, scalar_prefetch = 0 : i64, scratch_operands = 0 : i64, tpu.core_type = #tpu.core_type<tc>, window_params = [{transform_indices = @transform_0, window_bounds = array<i64: 1, 8, 10, 8>}, {transform_indices = @transform_1, window_bounds = array<i64: 1, 1, 10, 8>}, {transform_indices = @transform_2, window_bounds = array<i64: 1, 1, 10, 8>}, {transform_indices = @transform_3, window_bounds = array<i64: 1, 8, 8, 4>}, {pipeline_mode = #tpu.pipeline_mode<synchronous>, transform_indices = @transform_4, window_bounds = array<i64: 76, 8>}, {pipeline_mode = #tpu.pipeline_mode<synchronous>, transform_indices = @transform_5, window_bounds = array<i64: 1, 8>}, {transform_indices = @transform_6, window_bounds = array<i64: 1, 8, 8, 8>}]} {
    %c0 = arith.constant 0 : index
    %c0_0 = arith.constant 0 : index
    %c0_1 = arith.constant 0 : index
    %c0_2 = arith.constant 0 : index
    %0 = vector.load %arg2[%c0, %c0_0, %c0_1, %c0_2] : memref<1x8x10x8xbf16, #tpu.memory_space<vmem>>, vector<1x8x10x8xbf16>
    %1 = vector.shape_cast %0 : vector<1x8x10x8xbf16> to vector<8x10x8xbf16>
    %c0_3 = arith.constant 0 : index
    %c0_4 = arith.constant 0 : index
    %c0_5 = arith.constant 0 : index
    %c0_6 = arith.constant 0 : index
    %2 = vector.load %arg3[%c0_3, %c0_4, %c0_5, %c0_6] : memref<1x1x10x8xbf16, #tpu.memory_space<vmem>>, vector<1x1x10x8xbf16>
    %3 = vector.shape_cast %2 : vector<1x1x10x8xbf16> to vector<1x10x8xbf16>
    %c0_7 = arith.constant 0 : index
    %c0_8 = arith.constant 0 : index
    %c0_9 = arith.constant 0 : index
    %c0_10 = arith.constant 0 : index
    %4 = vector.load %arg4[%c0_7, %c0_8, %c0_9, %c0_10] : memref<1x1x10x8xbf16, #tpu.memory_space<vmem>>, vector<1x1x10x8xbf16>
    %5 = vector.shape_cast %4 : vector<1x1x10x8xbf16> to vector<1x10x8xbf16>
    %6 = tpu.concatenate %1, %3, %5 in 0 : vector<8x10x8xbf16>, vector<1x10x8xbf16>, vector<1x10x8xbf16> -> vector<10x10x8xbf16>
    %7 = vector.extract_strided_slice %6 {offsets = [0, 0, 0], sizes = [8, 8, 8], strides = [1, 1, 1]} : vector<10x10x8xbf16> to vector<8x8x8xbf16>
    %8 = vector.extract_strided_slice %6 {offsets = [0, 1, 0], sizes = [8, 8, 8], strides = [1, 1, 1]} : vector<10x10x8xbf16> to vector<8x8x8xbf16>
    %9 = vector.extract_strided_slice %6 {offsets = [0, 2, 0], sizes = [8, 8, 8], strides = [1, 1, 1]} : vector<10x10x8xbf16> to vector<8x8x8xbf16>
    %10 = vector.extract_strided_slice %6 {offsets = [1, 0, 0], sizes = [8, 8, 8], strides = [1, 1, 1]} : vector<10x10x8xbf16> to vector<8x8x8xbf16>
    %11 = vector.extract_strided_slice %6 {offsets = [1, 1, 0], sizes = [8, 8, 8], strides = [1, 1, 1]} : vector<10x10x8xbf16> to vector<8x8x8xbf16>
    %12 = vector.extract_strided_slice %6 {offsets = [1, 2, 0], sizes = [8, 8, 8], strides = [1, 1, 1]} : vector<10x10x8xbf16> to vector<8x8x8xbf16>
    %13 = vector.extract_strided_slice %6 {offsets = [2, 0, 0], sizes = [8, 8, 8], strides = [1, 1, 1]} : vector<10x10x8xbf16> to vector<8x8x8xbf16>
    %14 = vector.extract_strided_slice %6 {offsets = [2, 1, 0], sizes = [8, 8, 8], strides = [1, 1, 1]} : vector<10x10x8xbf16> to vector<8x8x8xbf16>
    %15 = vector.extract_strided_slice %6 {offsets = [2, 2, 0], sizes = [8, 8, 8], strides = [1, 1, 1]} : vector<10x10x8xbf16> to vector<8x8x8xbf16>
    %c0_11 = arith.constant 0 : index
    %c0_12 = arith.constant 0 : index
    %c0_13 = arith.constant 0 : index
    %c0_14 = arith.constant 0 : index
    %16 = vector.load %arg5[%c0_11, %c0_12, %c0_13, %c0_14] : memref<1x8x8x4xbf16, #tpu.memory_space<vmem>>, vector<1x8x8x4xbf16>
    %17 = vector.shape_cast %16 : vector<1x8x8x4xbf16> to vector<8x8x4xbf16>
    %18 = tpu.concatenate %7, %8, %9, %10, %11, %12, %13, %14, %15, %17 in 2 : vector<8x8x8xbf16>, vector<8x8x8xbf16>, vector<8x8x8xbf16>, vector<8x8x8xbf16>, vector<8x8x8xbf16>, vector<8x8x8xbf16>, vector<8x8x8xbf16>, vector<8x8x8xbf16>, vector<8x8x8xbf16>, vector<8x8x4xbf16> -> vector<8x8x76xbf16>
    %19 = vector.shape_cast %18 : vector<8x8x76xbf16> to vector<64x76xbf16>
    %c0_15 = arith.constant 0 : index
    %c0_16 = arith.constant 0 : index
    %20 = vector.load %arg6[%c0_15, %c0_16] : memref<76x8xbf16, #tpu.memory_space<vmem>>, vector<76x8xbf16>
    %cst = arith.constant dense<0.000000e+00> : vector<64x8xf32>
    %21 = tpu.matmul %19, %20, %cst {dimension_numbers = #tpu.dot_dimension_numbers<[1], [0], [0], [1], [0, 0, 1, 1], [], []>} : vector<64x76xbf16>, vector<76x8xbf16>, vector<64x8xf32> -> vector<64x8xf32>
    %c0_17 = arith.constant 0 : index
    %c0_18 = arith.constant 0 : index
    %22 = vector.load %arg7[%c0_17, %c0_18] : memref<1x8xf32, #tpu.memory_space<vmem>>, vector<1x8xf32>
    %23 = vector.broadcast %22 : vector<1x8xf32> to vector<64x8xf32>
    %24 = arith.addf %21, %23 : vector<64x8xf32>
    %cst_19 = arith.constant 0.000000e+00 : f32
    %25 = vector.broadcast %cst_19 : f32 to vector<64x8xf32>
    %26 = arith.maximumf %24, %25 : vector<64x8xf32>
    %27 = vector.shape_cast %26 : vector<64x8xf32> to vector<8x8x8xf32>
    %28 = arith.truncf %27 : vector<8x8x8xf32> to vector<8x8x8xbf16>
    %c0_20 = arith.constant 0 : index
    %c0_21 = arith.constant 0 : index
    %c0_22 = arith.constant 0 : index
    %c0_23 = arith.constant 0 : index
    %29 = vector.load %arg8[%c0_20, %c0_21, %c0_22, %c0_23] : memref<1x8x8x8xbf16, #tpu.memory_space<vmem>>, vector<1x8x8x8xbf16>
    %30 = vector.shape_cast %29 : vector<1x8x8x8xbf16> to vector<8x8x8xbf16>
    %31 = vector.shape_cast %28 : vector<8x8x8xbf16> to vector<1x8x8x8xbf16>
    tpu.vector_store %arg8[%c0_20, %c0_21, %c0_22, %c0_23], %31 {strides = array<i32>} : memref<1x8x8x8xbf16, #tpu.memory_space<vmem>>, vector<1x8x8x8xbf16>,
    return
  }
  func.func @transform_0(%arg0: i32, %arg1: i32) -> (i32, i32, i32, i32) {
    %c0_i32 = arith.constant 0 : i32
    %c0_i32_0 = arith.constant 0 : i32
    %c0_i32_1 = arith.constant 0 : i32
    return %arg0, %arg1, %c0_i32, %c0_i32_0 : i32, i32, i32, i32
  }
  func.func @transform_1(%arg0: i32, %arg1: i32) -> (i32, i32, i32, i32) {
    %c1_i32 = arith.constant 1 : i32
    %0 = arith.addi %arg1, %c1_i32 : i32
    %c8_i32 = arith.constant 8 : i32
    %1 = arith.muli %0, %c8_i32 : i32
    %c0_i32 = arith.constant 0 : i32
    %2 = arith.addi %1, %c0_i32 : i32
    %c0_i32_0 = arith.constant 0 : i32
    %c0_i32_1 = arith.constant 0 : i32
    %c0_i32_2 = arith.constant 0 : i32
    return %arg0, %2, %c0_i32_0, %c0_i32_1 : i32, i32, i32, i32
  }
  func.func @transform_2(%arg0: i32, %arg1: i32) -> (i32, i32, i32, i32) {
    %c1_i32 = arith.constant 1 : i32
    %0 = arith.addi %arg1, %c1_i32 : i32
    %c8_i32 = arith.constant 8 : i32
    %1 = arith.muli %0, %c8_i32 : i32
    %c1_i32_0 = arith.constant 1 : i32
    %2 = arith.addi %1, %c1_i32_0 : i32
    %c0_i32 = arith.constant 0 : i32
    %c0_i32_1 = arith.constant 0 : i32
    %c0_i32_2 = arith.constant 0 : i32
    return %arg0, %2, %c0_i32, %c0_i32_1 : i32, i32, i32, i32
  }
  func.func @transform_3(%arg0: i32, %arg1: i32) -> (i32, i32, i32, i32) {
    %c0_i32 = arith.constant 0 : i32
    %c0_i32_0 = arith.constant 0 : i32
    %c0_i32_1 = arith.constant 0 : i32
    return %arg0, %arg1, %c0_i32, %c0_i32_0 : i32, i32, i32, i32
  }
  func.func @transform_4(%arg0: i32, %arg1: i32) -> (i32, i32) {
    %c0_i32 = arith.constant 0 : i32
    %c0_i32_0 = arith.constant 0 : i32
    %c0_i32_1 = arith.constant 0 : i32
    return %c0_i32, %c0_i32_0 : i32, i32
  }
  func.func @transform_5(%arg0: i32, %arg1: i32) -> (i32, i32) {
    %c0_i32 = arith.constant 0 : i32
    %c0_i32_0 = arith.constant 0 : i32
    %c0_i32_1 = arith.constant 0 : i32
    return %c0_i32, %c0_i32_0 : i32, i32
  }
  func.func @transform_6(%arg0: i32, %arg1: i32) -> (i32, i32, i32, i32) {
    %c0_i32 = arith.constant 0 : i32
    %c0_i32_0 = arith.constant 0 : i32
    %c0_i32_1 = arith.constant 0 : i32
    return %arg0, %arg1, %c0_i32, %c0_i32_0 : i32, i32, i32, i32
  }
}

module attributes {stable_mosaic.version = 11 : i64} {
  func.func @_fused_conv_kernel(%arg0: i32, %arg1: i32, %arg2: memref<1x8x10x8xbf16, #tpu.memory_space<vmem>>, %arg3: memref<1x1x10x8xbf16, #tpu.memory_space<vmem>>, %arg4: memref<1x1x10x8xbf16, #tpu.memory_space<vmem>>, %arg5: memref<72x8xbf16, #tpu.memory_space<vmem>>, %arg6: memref<1x8xf32, #tpu.memory_space<vmem>>, %arg7: memref<1x8x8x8xbf16, #tpu.memory_space<vmem>>) attributes {dimension_semantics = [#tpu.dimension_semantics<parallel>, #tpu.dimension_semantics<parallel>], iteration_bounds = array<i64: 2, 1>, scalar_prefetch = 0 : i64, scratch_operands = 0 : i64, tpu.core_type = #tpu.core_type<tc>, window_params = [{transform_indices = @transform_0, window_bounds = array<i64: 1, 8, 10, 8>}, {transform_indices = @transform_1, window_bounds = array<i64: 1, 1, 10, 8>}, {transform_indices = @transform_2, window_bounds = array<i64: 1, 1, 10, 8>}, {pipeline_mode = #tpu.pipeline_mode<synchronous>, transform_indices = @transform_3, window_bounds = array<i64: 72, 8>}, {pipeline_mode = #tpu.pipeline_mode<synchronous>, transform_indices = @transform_4, window_bounds = array<i64: 1, 8>}, {transform_indices = @transform_5, window_bounds = array<i64: 1, 8, 8, 8>}]} {
    %c0 = arith.constant 0 : index
    %c0_0 = arith.constant 0 : index
    %c0_1 = arith.constant 0 : index
    %c0_2 = arith.constant 0 : index
    %0 = vector.load %arg2[%c0, %c0_0, %c0_1, %c0_2] : memref<1x8x10x8xbf16, #tpu.memory_space<vmem>>, vector<1x8x10x8xbf16>
    %1 = vector.shape_cast %0 : vector<1x8x10x8xbf16> to vector<8x10x8xbf16>
    %c0_3 = arith.constant 0 : index
    %c0_4 = arith.constant 0 : index
    %c0_5 = arith.constant 0 : index
    %c0_6 = arith.constant 0 : index
    %2 = vector.load %arg3[%c0_3, %c0_4, %c0_5, %c0_6] : memref<1x1x10x8xbf16, #tpu.memory_space<vmem>>, vector<1x1x10x8xbf16>
    %3 = vector.shape_cast %2 : vector<1x1x10x8xbf16> to vector<1x10x8xbf16>
    %c0_7 = arith.constant 0 : index
    %c0_8 = arith.constant 0 : index
    %c0_9 = arith.constant 0 : index
    %c0_10 = arith.constant 0 : index
    %4 = vector.load %arg4[%c0_7, %c0_8, %c0_9, %c0_10] : memref<1x1x10x8xbf16, #tpu.memory_space<vmem>>, vector<1x1x10x8xbf16>
    %5 = vector.shape_cast %4 : vector<1x1x10x8xbf16> to vector<1x10x8xbf16>
    %6 = tpu.concatenate %1, %3, %5 in 0 : vector<8x10x8xbf16>, vector<1x10x8xbf16>, vector<1x10x8xbf16> -> vector<10x10x8xbf16>
    %7 = vector.extract_strided_slice %6 {offsets = [0, 0, 0], sizes = [8, 8, 8], strides = [1, 1, 1]} : vector<10x10x8xbf16> to vector<8x8x8xbf16>
    %8 = vector.extract_strided_slice %6 {offsets = [0, 1, 0], sizes = [8, 8, 8], strides = [1, 1, 1]} : vector<10x10x8xbf16> to vector<8x8x8xbf16>
    %9 = vector.extract_strided_slice %6 {offsets = [0, 2, 0], sizes = [8, 8, 8], strides = [1, 1, 1]} : vector<10x10x8xbf16> to vector<8x8x8xbf16>
    %10 = vector.extract_strided_slice %6 {offsets = [1, 0, 0], sizes = [8, 8, 8], strides = [1, 1, 1]} : vector<10x10x8xbf16> to vector<8x8x8xbf16>
    %11 = vector.extract_strided_slice %6 {offsets = [1, 1, 0], sizes = [8, 8, 8], strides = [1, 1, 1]} : vector<10x10x8xbf16> to vector<8x8x8xbf16>
    %12 = vector.extract_strided_slice %6 {offsets = [1, 2, 0], sizes = [8, 8, 8], strides = [1, 1, 1]} : vector<10x10x8xbf16> to vector<8x8x8xbf16>
    %13 = vector.extract_strided_slice %6 {offsets = [2, 0, 0], sizes = [8, 8, 8], strides = [1, 1, 1]} : vector<10x10x8xbf16> to vector<8x8x8xbf16>
    %14 = vector.extract_strided_slice %6 {offsets = [2, 1, 0], sizes = [8, 8, 8], strides = [1, 1, 1]} : vector<10x10x8xbf16> to vector<8x8x8xbf16>
    %15 = vector.extract_strided_slice %6 {offsets = [2, 2, 0], sizes = [8, 8, 8], strides = [1, 1, 1]} : vector<10x10x8xbf16> to vector<8x8x8xbf16>
    %16 = tpu.concatenate %7, %8, %9, %10, %11, %12, %13, %14, %15 in 2 : vector<8x8x8xbf16>, vector<8x8x8xbf16>, vector<8x8x8xbf16>, vector<8x8x8xbf16>, vector<8x8x8xbf16>, vector<8x8x8xbf16>, vector<8x8x8xbf16>, vector<8x8x8xbf16>, vector<8x8x8xbf16> -> vector<8x8x72xbf16>
    %17 = vector.shape_cast %16 : vector<8x8x72xbf16> to vector<64x72xbf16>
    %c0_11 = arith.constant 0 : index
    %c0_12 = arith.constant 0 : index
    %18 = vector.load %arg5[%c0_11, %c0_12] : memref<72x8xbf16, #tpu.memory_space<vmem>>, vector<72x8xbf16>
    %cst = arith.constant dense<0.000000e+00> : vector<64x8xf32>
    %19 = tpu.matmul %17, %18, %cst {dimension_numbers = #tpu.dot_dimension_numbers<[1], [0], [0], [1], [0, 0, 1, 1], [], []>} : vector<64x72xbf16>, vector<72x8xbf16>, vector<64x8xf32> -> vector<64x8xf32>
    %c0_13 = arith.constant 0 : index
    %c0_14 = arith.constant 0 : index
    %20 = vector.load %arg6[%c0_13, %c0_14] : memref<1x8xf32, #tpu.memory_space<vmem>>, vector<1x8xf32>
    %21 = vector.broadcast %20 : vector<1x8xf32> to vector<64x8xf32>
    %22 = arith.addf %19, %21 : vector<64x8xf32>
    %cst_15 = arith.constant 0.000000e+00 : f32
    %23 = vector.broadcast %cst_15 : f32 to vector<64x8xf32>
    %24 = arith.maximumf %22, %23 : vector<64x8xf32>
    %25 = vector.shape_cast %24 : vector<64x8xf32> to vector<8x8x8xf32>
    %26 = arith.truncf %25 : vector<8x8x8xf32> to vector<8x8x8xbf16>
    %c0_16 = arith.constant 0 : index
    %c0_17 = arith.constant 0 : index
    %c0_18 = arith.constant 0 : index
    %c0_19 = arith.constant 0 : index
    %27 = vector.load %arg7[%c0_16, %c0_17, %c0_18, %c0_19] : memref<1x8x8x8xbf16, #tpu.memory_space<vmem>>, vector<1x8x8x8xbf16>
    %28 = vector.shape_cast %27 : vector<1x8x8x8xbf16> to vector<8x8x8xbf16>
    %29 = vector.shape_cast %26 : vector<8x8x8xbf16> to vector<1x8x8x8xbf16>
    tpu.vector_store %arg7[%c0_16, %c0_17, %c0_18, %c0_19], %29 {strides = array<i32>} : memref<1x8x8x8xbf16, #tpu.memory_space<vmem>>, vector<1x8x8x8xbf16>,
    return
  }
  func.func @transform_0(%arg0: i32, %arg1: i32) -> (i32, i32, i32, i32) {
    %c0_i32 = arith.constant 0 : i32
    %c0_i32_0 = arith.constant 0 : i32
    %c0_i32_1 = arith.constant 0 : i32
    return %arg0, %arg1, %c0_i32, %c0_i32_0 : i32, i32, i32, i32
  }
  func.func @transform_1(%arg0: i32, %arg1: i32) -> (i32, i32, i32, i32) {
    %c1_i32 = arith.constant 1 : i32
    %0 = arith.addi %arg1, %c1_i32 : i32
    %c8_i32 = arith.constant 8 : i32
    %1 = arith.muli %0, %c8_i32 : i32
    %c0_i32 = arith.constant 0 : i32
    %2 = arith.addi %1, %c0_i32 : i32
    %c0_i32_0 = arith.constant 0 : i32
    %c0_i32_1 = arith.constant 0 : i32
    %c0_i32_2 = arith.constant 0 : i32
    return %arg0, %2, %c0_i32_0, %c0_i32_1 : i32, i32, i32, i32
  }
  func.func @transform_2(%arg0: i32, %arg1: i32) -> (i32, i32, i32, i32) {
    %c1_i32 = arith.constant 1 : i32
    %0 = arith.addi %arg1, %c1_i32 : i32
    %c8_i32 = arith.constant 8 : i32
    %1 = arith.muli %0, %c8_i32 : i32
    %c1_i32_0 = arith.constant 1 : i32
    %2 = arith.addi %1, %c1_i32_0 : i32
    %c0_i32 = arith.constant 0 : i32
    %c0_i32_1 = arith.constant 0 : i32
    %c0_i32_2 = arith.constant 0 : i32
    return %arg0, %2, %c0_i32, %c0_i32_1 : i32, i32, i32, i32
  }
  func.func @transform_3(%arg0: i32, %arg1: i32) -> (i32, i32) {
    %c0_i32 = arith.constant 0 : i32
    %c0_i32_0 = arith.constant 0 : i32
    %c0_i32_1 = arith.constant 0 : i32
    return %c0_i32, %c0_i32_0 : i32, i32
  }
  func.func @transform_4(%arg0: i32, %arg1: i32) -> (i32, i32) {
    %c0_i32 = arith.constant 0 : i32
    %c0_i32_0 = arith.constant 0 : i32
    %c0_i32_1 = arith.constant 0 : i32
    return %c0_i32, %c0_i32_0 : i32, i32
  }
  func.func @transform_5(%arg0: i32, %arg1: i32) -> (i32, i32, i32, i32) {
    %c0_i32 = arith.constant 0 : i32
    %c0_i32_0 = arith.constant 0 : i32
    %c0_i32_1 = arith.constant 0 : i32
    return %arg0, %arg1, %c0_i32, %c0_i32_0 : i32, i32, i32, i32
  }
}

module attributes {stable_mosaic.version = 11 : i64} {
  func.func @_fused_conv_kernel(%arg0: i32, %arg1: i32, %arg2: memref<1x8x10x8xbf16, #tpu.memory_space<vmem>>, %arg3: memref<1x1x10x8xbf16, #tpu.memory_space<vmem>>, %arg4: memref<1x1x10x8xbf16, #tpu.memory_space<vmem>>, %arg5: memref<72x8xbf16, #tpu.memory_space<vmem>>, %arg6: memref<1x8xf32, #tpu.memory_space<vmem>>, %arg7: memref<1x8x8x8xbf16, #tpu.memory_space<vmem>>, %arg8: memref<1x8x8x8xbf16, #tpu.memory_space<vmem>>) attributes {dimension_semantics = [#tpu.dimension_semantics<parallel>, #tpu.dimension_semantics<parallel>], iteration_bounds = array<i64: 2, 1>, scalar_prefetch = 0 : i64, scratch_operands = 0 : i64, tpu.core_type = #tpu.core_type<tc>, window_params = [{transform_indices = @transform_0, window_bounds = array<i64: 1, 8, 10, 8>}, {transform_indices = @transform_1, window_bounds = array<i64: 1, 1, 10, 8>}, {transform_indices = @transform_2, window_bounds = array<i64: 1, 1, 10, 8>}, {pipeline_mode = #tpu.pipeline_mode<synchronous>, transform_indices = @transform_3, window_bounds = array<i64: 72, 8>}, {pipeline_mode = #tpu.pipeline_mode<synchronous>, transform_indices = @transform_4, window_bounds = array<i64: 1, 8>}, {transform_indices = @transform_5, window_bounds = array<i64: 1, 8, 8, 8>}, {transform_indices = @transform_6, window_bounds = array<i64: 1, 8, 8, 8>}]} {
    %c0 = arith.constant 0 : index
    %c0_0 = arith.constant 0 : index
    %c0_1 = arith.constant 0 : index
    %c0_2 = arith.constant 0 : index
    %0 = vector.load %arg2[%c0, %c0_0, %c0_1, %c0_2] : memref<1x8x10x8xbf16, #tpu.memory_space<vmem>>, vector<1x8x10x8xbf16>
    %1 = vector.shape_cast %0 : vector<1x8x10x8xbf16> to vector<8x10x8xbf16>
    %c0_3 = arith.constant 0 : index
    %c0_4 = arith.constant 0 : index
    %c0_5 = arith.constant 0 : index
    %c0_6 = arith.constant 0 : index
    %2 = vector.load %arg3[%c0_3, %c0_4, %c0_5, %c0_6] : memref<1x1x10x8xbf16, #tpu.memory_space<vmem>>, vector<1x1x10x8xbf16>
    %3 = vector.shape_cast %2 : vector<1x1x10x8xbf16> to vector<1x10x8xbf16>
    %c0_7 = arith.constant 0 : index
    %c0_8 = arith.constant 0 : index
    %c0_9 = arith.constant 0 : index
    %c0_10 = arith.constant 0 : index
    %4 = vector.load %arg4[%c0_7, %c0_8, %c0_9, %c0_10] : memref<1x1x10x8xbf16, #tpu.memory_space<vmem>>, vector<1x1x10x8xbf16>
    %5 = vector.shape_cast %4 : vector<1x1x10x8xbf16> to vector<1x10x8xbf16>
    %6 = tpu.concatenate %1, %3, %5 in 0 : vector<8x10x8xbf16>, vector<1x10x8xbf16>, vector<1x10x8xbf16> -> vector<10x10x8xbf16>
    %7 = vector.extract_strided_slice %6 {offsets = [0, 0, 0], sizes = [8, 8, 8], strides = [1, 1, 1]} : vector<10x10x8xbf16> to vector<8x8x8xbf16>
    %8 = vector.extract_strided_slice %6 {offsets = [0, 1, 0], sizes = [8, 8, 8], strides = [1, 1, 1]} : vector<10x10x8xbf16> to vector<8x8x8xbf16>
    %9 = vector.extract_strided_slice %6 {offsets = [0, 2, 0], sizes = [8, 8, 8], strides = [1, 1, 1]} : vector<10x10x8xbf16> to vector<8x8x8xbf16>
    %10 = vector.extract_strided_slice %6 {offsets = [1, 0, 0], sizes = [8, 8, 8], strides = [1, 1, 1]} : vector<10x10x8xbf16> to vector<8x8x8xbf16>
    %11 = vector.extract_strided_slice %6 {offsets = [1, 1, 0], sizes = [8, 8, 8], strides = [1, 1, 1]} : vector<10x10x8xbf16> to vector<8x8x8xbf16>
    %12 = vector.extract_strided_slice %6 {offsets = [1, 2, 0], sizes = [8, 8, 8], strides = [1, 1, 1]} : vector<10x10x8xbf16> to vector<8x8x8xbf16>
    %13 = vector.extract_strided_slice %6 {offsets = [2, 0, 0], sizes = [8, 8, 8], strides = [1, 1, 1]} : vector<10x10x8xbf16> to vector<8x8x8xbf16>
    %14 = vector.extract_strided_slice %6 {offsets = [2, 1, 0], sizes = [8, 8, 8], strides = [1, 1, 1]} : vector<10x10x8xbf16> to vector<8x8x8xbf16>
    %15 = vector.extract_strided_slice %6 {offsets = [2, 2, 0], sizes = [8, 8, 8], strides = [1, 1, 1]} : vector<10x10x8xbf16> to vector<8x8x8xbf16>
    %16 = tpu.concatenate %7, %8, %9, %10, %11, %12, %13, %14, %15 in 2 : vector<8x8x8xbf16>, vector<8x8x8xbf16>, vector<8x8x8xbf16>, vector<8x8x8xbf16>, vector<8x8x8xbf16>, vector<8x8x8xbf16>, vector<8x8x8xbf16>, vector<8x8x8xbf16>, vector<8x8x8xbf16> -> vector<8x8x72xbf16>
    %17 = vector.shape_cast %16 : vector<8x8x72xbf16> to vector<64x72xbf16>
    %c0_11 = arith.constant 0 : index
    %c0_12 = arith.constant 0 : index
    %18 = vector.load %arg5[%c0_11, %c0_12] : memref<72x8xbf16, #tpu.memory_space<vmem>>, vector<72x8xbf16>
    %cst = arith.constant dense<0.000000e+00> : vector<64x8xf32>
    %19 = tpu.matmul %17, %18, %cst {dimension_numbers = #tpu.dot_dimension_numbers<[1], [0], [0], [1], [0, 0, 1, 1], [], []>} : vector<64x72xbf16>, vector<72x8xbf16>, vector<64x8xf32> -> vector<64x8xf32>
    %c0_13 = arith.constant 0 : index
    %c0_14 = arith.constant 0 : index
    %20 = vector.load %arg6[%c0_13, %c0_14] : memref<1x8xf32, #tpu.memory_space<vmem>>, vector<1x8xf32>
    %21 = vector.broadcast %20 : vector<1x8xf32> to vector<64x8xf32>
    %22 = arith.addf %19, %21 : vector<64x8xf32>
    %c0_15 = arith.constant 0 : index
    %c0_16 = arith.constant 0 : index
    %c0_17 = arith.constant 0 : index
    %c0_18 = arith.constant 0 : index
    %23 = vector.load %arg7[%c0_15, %c0_16, %c0_17, %c0_18] : memref<1x8x8x8xbf16, #tpu.memory_space<vmem>>, vector<1x8x8x8xbf16>
    %24 = vector.shape_cast %23 : vector<1x8x8x8xbf16> to vector<8x8x8xbf16>
    %25 = vector.shape_cast %24 : vector<8x8x8xbf16> to vector<64x8xbf16>
    %26 = arith.extf %25 : vector<64x8xbf16> to vector<64x8xf32>
    %27 = arith.addf %22, %26 : vector<64x8xf32>
    %cst_19 = arith.constant 0.000000e+00 : f32
    %28 = vector.broadcast %cst_19 : f32 to vector<64x8xf32>
    %29 = arith.maximumf %27, %28 : vector<64x8xf32>
    %30 = vector.shape_cast %29 : vector<64x8xf32> to vector<8x8x8xf32>
    %31 = arith.truncf %30 : vector<8x8x8xf32> to vector<8x8x8xbf16>
    %c0_20 = arith.constant 0 : index
    %c0_21 = arith.constant 0 : index
    %c0_22 = arith.constant 0 : index
    %c0_23 = arith.constant 0 : index
    %32 = vector.load %arg8[%c0_20, %c0_21, %c0_22, %c0_23] : memref<1x8x8x8xbf16, #tpu.memory_space<vmem>>, vector<1x8x8x8xbf16>
    %33 = vector.shape_cast %32 : vector<1x8x8x8xbf16> to vector<8x8x8xbf16>
    %34 = vector.shape_cast %31 : vector<8x8x8xbf16> to vector<1x8x8x8xbf16>
    tpu.vector_store %arg8[%c0_20, %c0_21, %c0_22, %c0_23], %34 {strides = array<i32>} : memref<1x8x8x8xbf16, #tpu.memory_space<vmem>>, vector<1x8x8x8xbf16>,
    return
  }
  func.func @transform_0(%arg0: i32, %arg1: i32) -> (i32, i32, i32, i32) {
    %c0_i32 = arith.constant 0 : i32
    %c0_i32_0 = arith.constant 0 : i32
    %c0_i32_1 = arith.constant 0 : i32
    return %arg0, %arg1, %c0_i32, %c0_i32_0 : i32, i32, i32, i32
  }
  func.func @transform_1(%arg0: i32, %arg1: i32) -> (i32, i32, i32, i32) {
    %c1_i32 = arith.constant 1 : i32
    %0 = arith.addi %arg1, %c1_i32 : i32
    %c8_i32 = arith.constant 8 : i32
    %1 = arith.muli %0, %c8_i32 : i32
    %c0_i32 = arith.constant 0 : i32
    %2 = arith.addi %1, %c0_i32 : i32
    %c0_i32_0 = arith.constant 0 : i32
    %c0_i32_1 = arith.constant 0 : i32
    %c0_i32_2 = arith.constant 0 : i32
    return %arg0, %2, %c0_i32_0, %c0_i32_1 : i32, i32, i32, i32
  }
  func.func @transform_2(%arg0: i32, %arg1: i32) -> (i32, i32, i32, i32) {
    %c1_i32 = arith.constant 1 : i32
    %0 = arith.addi %arg1, %c1_i32 : i32
    %c8_i32 = arith.constant 8 : i32
    %1 = arith.muli %0, %c8_i32 : i32
    %c1_i32_0 = arith.constant 1 : i32
    %2 = arith.addi %1, %c1_i32_0 : i32
    %c0_i32 = arith.constant 0 : i32
    %c0_i32_1 = arith.constant 0 : i32
    %c0_i32_2 = arith.constant 0 : i32
    return %arg0, %2, %c0_i32, %c0_i32_1 : i32, i32, i32, i32
  }
  func.func @transform_3(%arg0: i32, %arg1: i32) -> (i32, i32) {
    %c0_i32 = arith.constant 0 : i32
    %c0_i32_0 = arith.constant 0 : i32
    %c0_i32_1 = arith.constant 0 : i32
    return %c0_i32, %c0_i32_0 : i32, i32
  }
  func.func @transform_4(%arg0: i32, %arg1: i32) -> (i32, i32) {
    %c0_i32 = arith.constant 0 : i32
    %c0_i32_0 = arith.constant 0 : i32
    %c0_i32_1 = arith.constant 0 : i32
    return %c0_i32, %c0_i32_0 : i32, i32
  }
  func.func @transform_5(%arg0: i32, %arg1: i32) -> (i32, i32, i32, i32) {
    %c0_i32 = arith.constant 0 : i32
    %c0_i32_0 = arith.constant 0 : i32
    %c0_i32_1 = arith.constant 0 : i32
    return %arg0, %arg1, %c0_i32, %c0_i32_0 : i32, i32, i32, i32
  }
  func.func @transform_6(%arg0: i32, %arg1: i32) -> (i32, i32, i32, i32) {
    %c0_i32 = arith.constant 0 : i32
    %c0_i32_0 = arith.constant 0 : i32
    %c0_i32_1 = arith.constant 0 : i32
    return %arg0, %arg1, %c0_i32, %c0_i32_0 : i32, i32, i32, i32
  }
}

module attributes {stable_mosaic.version = 11 : i64} {
  func.func @_fused_conv_kernel(%arg0: i32, %arg1: i32, %arg2: memref<1x8x8x8xbf16, #tpu.memory_space<vmem>>, %arg3: memref<1x8x8x8xbf16, #tpu.memory_space<vmem>>, %arg4: memref<1x8x8x4xbf16, #tpu.memory_space<vmem>>, %arg5: memref<20x8xbf16, #tpu.memory_space<vmem>>, %arg6: memref<1x8xf32, #tpu.memory_space<vmem>>, %arg7: memref<1x8x8x8xf32, #tpu.memory_space<vmem>>) attributes {dimension_semantics = [#tpu.dimension_semantics<parallel>, #tpu.dimension_semantics<parallel>], iteration_bounds = array<i64: 2, 1>, scalar_prefetch = 0 : i64, scratch_operands = 0 : i64, tpu.core_type = #tpu.core_type<tc>, window_params = [{transform_indices = @transform_0, window_bounds = array<i64: 1, 8, 8, 8>}, {transform_indices = @transform_1, window_bounds = array<i64: 1, 8, 8, 8>}, {transform_indices = @transform_2, window_bounds = array<i64: 1, 8, 8, 4>}, {pipeline_mode = #tpu.pipeline_mode<synchronous>, transform_indices = @transform_3, window_bounds = array<i64: 20, 8>}, {pipeline_mode = #tpu.pipeline_mode<synchronous>, transform_indices = @transform_4, window_bounds = array<i64: 1, 8>}, {transform_indices = @transform_5, window_bounds = array<i64: 1, 8, 8, 8>}]} {
    %c0 = arith.constant 0 : index
    %c0_0 = arith.constant 0 : index
    %c0_1 = arith.constant 0 : index
    %c0_2 = arith.constant 0 : index
    %0 = vector.load %arg2[%c0, %c0_0, %c0_1, %c0_2] : memref<1x8x8x8xbf16, #tpu.memory_space<vmem>>, vector<1x8x8x8xbf16>
    %1 = vector.shape_cast %0 : vector<1x8x8x8xbf16> to vector<8x8x8xbf16>
    %c0_3 = arith.constant 0 : index
    %c0_4 = arith.constant 0 : index
    %c0_5 = arith.constant 0 : index
    %c0_6 = arith.constant 0 : index
    %2 = vector.load %arg3[%c0_3, %c0_4, %c0_5, %c0_6] : memref<1x8x8x8xbf16, #tpu.memory_space<vmem>>, vector<1x8x8x8xbf16>
    %3 = vector.shape_cast %2 : vector<1x8x8x8xbf16> to vector<8x8x8xbf16>
    %c0_7 = arith.constant 0 : index
    %c0_8 = arith.constant 0 : index
    %c0_9 = arith.constant 0 : index
    %c0_10 = arith.constant 0 : index
    %4 = vector.load %arg4[%c0_7, %c0_8, %c0_9, %c0_10] : memref<1x8x8x4xbf16, #tpu.memory_space<vmem>>, vector<1x8x8x4xbf16>
    %5 = vector.shape_cast %4 : vector<1x8x8x4xbf16> to vector<8x8x4xbf16>
    %6 = tpu.concatenate %1, %3, %5 in 2 : vector<8x8x8xbf16>, vector<8x8x8xbf16>, vector<8x8x4xbf16> -> vector<8x8x20xbf16>
    %7 = vector.shape_cast %6 : vector<8x8x20xbf16> to vector<64x20xbf16>
    %c0_11 = arith.constant 0 : index
    %c0_12 = arith.constant 0 : index
    %8 = vector.load %arg5[%c0_11, %c0_12] : memref<20x8xbf16, #tpu.memory_space<vmem>>, vector<20x8xbf16>
    %cst = arith.constant dense<0.000000e+00> : vector<64x8xf32>
    %9 = tpu.matmul %7, %8, %cst {dimension_numbers = #tpu.dot_dimension_numbers<[1], [0], [0], [1], [0, 0, 1, 1], [], []>} : vector<64x20xbf16>, vector<20x8xbf16>, vector<64x8xf32> -> vector<64x8xf32>
    %c0_13 = arith.constant 0 : index
    %c0_14 = arith.constant 0 : index
    %10 = vector.load %arg6[%c0_13, %c0_14] : memref<1x8xf32, #tpu.memory_space<vmem>>, vector<1x8xf32>
    %11 = vector.broadcast %10 : vector<1x8xf32> to vector<64x8xf32>
    %12 = arith.addf %9, %11 : vector<64x8xf32>
    %cst_15 = arith.constant 0.000000e+00 : f32
    %13 = vector.broadcast %cst_15 : f32 to vector<64x8xf32>
    %14 = arith.maximumf %12, %13 : vector<64x8xf32>
    %15 = vector.shape_cast %14 : vector<64x8xf32> to vector<8x8x8xf32>
    %c0_16 = arith.constant 0 : index
    %c0_17 = arith.constant 0 : index
    %c0_18 = arith.constant 0 : index
    %c0_19 = arith.constant 0 : index
    %16 = vector.load %arg7[%c0_16, %c0_17, %c0_18, %c0_19] : memref<1x8x8x8xf32, #tpu.memory_space<vmem>>, vector<1x8x8x8xf32>
    %17 = vector.shape_cast %16 : vector<1x8x8x8xf32> to vector<8x8x8xf32>
    %18 = vector.shape_cast %15 : vector<8x8x8xf32> to vector<1x8x8x8xf32>
    tpu.vector_store %arg7[%c0_16, %c0_17, %c0_18, %c0_19], %18 {strides = array<i32>} : memref<1x8x8x8xf32, #tpu.memory_space<vmem>>, vector<1x8x8x8xf32>,
    return
  }
  func.func @transform_0(%arg0: i32, %arg1: i32) -> (i32, i32, i32, i32) {
    %c0_i32 = arith.constant 0 : i32
    %c0_i32_0 = arith.constant 0 : i32
    %c0_i32_1 = arith.constant 0 : i32
    return %arg0, %arg1, %c0_i32, %c0_i32_0 : i32, i32, i32, i32
  }
  func.func @transform_1(%arg0: i32, %arg1: i32) -> (i32, i32, i32, i32) {
    %c0_i32 = arith.constant 0 : i32
    %c0_i32_0 = arith.constant 0 : i32
    %c0_i32_1 = arith.constant 0 : i32
    return %arg0, %arg1, %c0_i32, %c0_i32_0 : i32, i32, i32, i32
  }
  func.func @transform_2(%arg0: i32, %arg1: i32) -> (i32, i32, i32, i32) {
    %c0_i32 = arith.constant 0 : i32
    %c0_i32_0 = arith.constant 0 : i32
    %c0_i32_1 = arith.constant 0 : i32
    return %arg0, %arg1, %c0_i32, %c0_i32_0 : i32, i32, i32, i32
  }
  func.func @transform_3(%arg0: i32, %arg1: i32) -> (i32, i32) {
    %c0_i32 = arith.constant 0 : i32
    %c0_i32_0 = arith.constant 0 : i32
    %c0_i32_1 = arith.constant 0 : i32
    return %c0_i32, %c0_i32_0 : i32, i32
  }
  func.func @transform_4(%arg0: i32, %arg1: i32) -> (i32, i32) {
    %c0_i32 = arith.constant 0 : i32
    %c0_i32_0 = arith.constant 0 : i32
    %c0_i32_1 = arith.constant 0 : i32
    return %c0_i32, %c0_i32_0 : i32, i32
  }
  func.func @transform_5(%arg0: i32, %arg1: i32) -> (i32, i32, i32, i32) {
    %c0_i32 = arith.constant 0 : i32
    %c0_i32_0 = arith.constant 0 : i32
    %c0_i32_1 = arith.constant 0 : i32
    return %arg0, %arg1, %c0_i32, %c0_i32_0 : i32, i32, i32, i32
  }
}

</mosaic_0001>

<llo_original>
// kernel: _lambda_.6
$region0: #{_lambda_.6}
  #allocation0 [shape = 'u32[]', space=smem, size = 0x4, offset = 0x4, fixed_abs, tag = 'smem constant byte address 0x4 - core index']
  #allocation1 [shape = 'u32[144,128]{1,0:T(1,128)}', space=vmem, size = 0x12000, scoped, tag = 'internal scratch']
  %s0 = inlined_call_operand.vmem [shape: bf16[16,2,8,8], index: 0, kind: input, shape index: {}]
  %s1 = inlined_call_operand.vmem [shape: bf16[16,8,4], index: 1, kind: output, shape index: {}]
  %s2 = sld [smem:[#allocation0]]
  $region37: #{_lambda_.6} parent=0
    _
  %s4 = ssub.s32 1, %s2
  %s5 = scalar_select 0, %s4, %s2
  loop: start=0, step=1, limit=4
  $region2: #{_lambda_.6} parent=0 // loop_pre_header
    _
  $region3: #{_lambda_.6} parent=0 // loop_header
    %s7 = sphi 0, %s11
    %p8 = scmp.ge.s32.totalorder %s7, 4
    %s17 = sphi 0, %s19
    %s20 = sphi 0, %s17
    %s21 = sphi 0, %s20
    %s37 = sphi 0, %s21
    %s43 = sphi 0, %s45
    %s46 = sphi 0, %s43
    %s47 = sphi 0, %s46
    %s63 = sphi 0, %s47
  $region4: #{_lambda_.6} parent=0 // loop_header_branch
    %10 = sbr.rel (%p8) target = $region8
  $region5: #{_lambda_.6} parent=0 // loop_body
    %s12 = ssub.s32 %s7, 1
    %s13 = ssub.s32 %s7, 2
    %s14 = sadd.s32 %s7, 1
    %s15 = ssub.s32 %s7, %s14
    %p16 = scmp.eq.s32.totalorder %s15, 0
    %s18 = sadd.s32 %s17, 1
    %s19 = scalar_select %p16, %s17, %s18
    %p22 = pneg %p16
    %p23 = scmp.eq.s32.totalorder %s7, 1
    %p24 = por %p22, %p23
    %p25 = scmp.ne.s32.totalorder %s17, %s20
    %p26 = scmp.eq.s32.totalorder %s7, 0
    %p27 = por %p25, %p26
    %p28 = scmp.ne.s32.totalorder %s17, %s20
    %p29 = scmp.eq.s32.totalorder %s12, 1
    %p30 = por %p28, %p29
    %p31 = scmp.ne.s32.totalorder %s20, %s21
    %p32 = scmp.eq.s32.totalorder %s12, 0
    %p33 = por %p31, %p32
    %p34 = scmp.ne.s32.totalorder %s20, %s21
    %p35 = scmp.eq.s32.totalorder %s13, 1
    %p36 = por %p34, %p35
    %p38 = scmp.ne.s32.totalorder %s21, %s37
    %p39 = scmp.eq.s32.totalorder %s13, 0
    %p40 = por %p38, %p39
    %s41 = ssub.s32 %s7, %s14
    %p42 = scmp.eq.s32.totalorder %s41, 0
    %s44 = sadd.s32 %s43, 1
    %s45 = scalar_select %p42, %s43, %s44
    %p48 = pneg %p42
    %p49 = scmp.eq.s32.totalorder %s7, 1
    %p50 = por %p48, %p49
    %p51 = scmp.ne.s32.totalorder %s43, %s46
    %p52 = scmp.eq.s32.totalorder %s7, 0
    %p53 = por %p51, %p52
    %p54 = scmp.ne.s32.totalorder %s43, %s46
    %p55 = scmp.eq.s32.totalorder %s12, 1
    %p56 = por %p54, %p55
    %p57 = scmp.ne.s32.totalorder %s46, %s47
    %p58 = scmp.eq.s32.totalorder %s12, 0
    %p59 = por %p57, %p58
    %p60 = scmp.ne.s32.totalorder %s46, %s47
    %p61 = scmp.eq.s32.totalorder %s13, 1
    %p62 = por %p60, %p61
    %p64 = scmp.ne.s32.totalorder %s47, %s63
    %p65 = scmp.eq.s32.totalorder %s13, 0
    %p66 = por %p64, %p65
    %p67 = scmp.le.s32.totalorder 1, %s7
    %p68 = scmp.lt.s32.totalorder %s7, 3
    %p69 = pnand %p67, %p68
    %p70 = pneg %p69
    // Predicated region
    $region9: #{_lambda_.6} parent=5 // pred_check
      _
    $region10: #{_lambda_.6} parent=5 // pred_check_branch
      %72 = sbr.rel (%p69) target = $region12
    $region11: #{_lambda_.6} parent=5 // pred_region
      %s73 = ssub.s32 %s7, 1
    $region12: #{_lambda_.6} parent=5 // pred_fallthru
      _
    %p74 = scmp.lt.s32.totalorder %s7, 2
    // Predicated region
    $region13: #{_lambda_.6} parent=5 // pred_check
      %p75 = pneg %p74
    $region14: #{_lambda_.6} parent=5 // pred_check_branch
      %77 = sbr.rel (%p75) target = $region16
    $region15: #{_lambda_.6} parent=5 // pred_region
      // Predicated region
      $region17: #{_lambda_.6} parent=15 // pred_check
        %p78 = pneg %p27
      $region18: #{_lambda_.6} parent=15 // pred_check_branch
        %80 = sbr.rel (%p78) target = $region20
      $region19: #{_lambda_.6} parent=15 // pred_region
        %s81 = smul.u32 8, %s7
        %p82 = scmp.lt.s32.totalorder %s81, 15
        %s83 = scalar_select %p82, %s81, 15
        %s84 = smul.addr %s83, 2
        %s85 = smul.addr %s84, 4
        %s86 = scalar_lea.vmem %s0, %s85
        %s87 = smul.u32 8, %s7
      $region20: #{_lambda_.6} parent=15 // pred_fallthru
        _
    $region16: #{_lambda_.6} parent=5 // pred_fallthru
      _
    %p88 = scmp.le.s32.totalorder 1, %s7
    %p89 = scmp.lt.s32.totalorder %s7, 3
    %p90 = pnand %p88, %p89
    %p91 = pneg %p90
    // Predicated region
    $region21: #{_lambda_.6} parent=5 // pred_check
      _
    $region22: #{_lambda_.6} parent=5 // pred_check_branch
      %93 = sbr.rel (%p90) target = $region24
    $region23: #{_lambda_.6} parent=5 // pred_region
      %s94 = ssub.s32 %s7, 1
      %s95 = smul.u32 8, %s12
      %p96 = scmp.lt.s32.totalorder %s95, 15
      %s97 = scalar_select %p96, %s95, 15
      %s98 = smul.addr %s97, 2
      %s99 = smul.addr %s98, 4
      %s100 = scalar_lea.vmem %s0, %s99
      %p101 = pneg %p33
      %p102 = pneg %p30
      %p103 = pneg %p59
      %p104 = pneg %p56
      %s105 = smul.u32 8, %s12
      %p106 = scmp.lt.s32.totalorder %s105, 15
      %s107 = scalar_select %p106, %s105, 15
      %s108 = smul.addr %s107, 4
      %s109 = scalar_lea.vmem %s1, %s108
      %s110 = smul.u32 8, %s12
      %p111 = scmp.lt.s32.totalorder %s110, 15
      %s112 = scalar_select %p111, %s110, 15
      %s113 = smul.addr %s112, 2
      %s114 = smul.addr %s113, 4
      %s115 = scalar_lea.vmem %s0, %s114
      %s116 = smul.u32 8, %s12
      %s117 = smul.u32 8, %s12
      %p118 = scmp.lt.s32.totalorder %s117, 15
      %s119 = scalar_select %p118, %s117, 15
      %s120 = smul.addr %s119, 4
      %s121 = scalar_lea.vmem %s1, %s120
      %s122 = smul.u32 8, %s12
      %v123 = vld [vmem:[%s115] sm:$0xf]
      %v124 = vld [vmem:[%s115 + $0x4] sm:$0xf]
      %v125 = vld [vmem:[%s115 + $0x8] sm:$0xf]
      %v126 = vld [vmem:[%s115 + $0xc] sm:$0xf]
      %v127 = vld [vmem:[%s115 + $0x10] sm:$0xf]
      %v128 = vld [vmem:[%s115 + $0x14] sm:$0xf]
      %v129 = vld [vmem:[%s115 + $0x18] sm:$0xf]
      %v130 = vld [vmem:[%s115 + $0x1c] sm:$0xf]
      %v131 = vld [vmem:[%s115 + $0x20] sm:$0xf]
      %v132 = vld [vmem:[%s115 + $0x24] sm:$0xf]
      %v133 = vld [vmem:[%s115 + $0x28] sm:$0xf]
      %v134 = vld [vmem:[%s115 + $0x2c] sm:$0xf]
      %v135 = vld [vmem:[%s115 + $0x30] sm:$0xf]
      %v136 = vld [vmem:[%s115 + $0x34] sm:$0xf]
      %v137 = vld [vmem:[%s115 + $0x38] sm:$0xf]
      %v138 = vld [vmem:[%s115 + $0x3c] sm:$0xf]
      %v139 = vmax.bf16 %v123, %v124
      %v140 = vmax.bf16 %v125, %v126
      %v141 = vmax.bf16 %v127, %v128
      %v142 = vmax.bf16 %v129, %v130
      %v143 = vmax.bf16 %v131, %v132
      %v144 = vmax.bf16 %v133, %v134
      %v145 = vmax.bf16 %v135, %v136
      %v146 = vmax.bf16 %v137, %v138
      %155 = vrot.lane.b32.xlu0 %v139, 124
      %v156 = vpop.permute.xlu0 %155
      %157 = vrot.lane.b32.xlu0 %v140, 124
      %v158 = vpop.permute.xlu0 %157
      %159 = vrot.lane.b32.xlu0 %v141, 124
      %v160 = vpop.permute.xlu0 %159
      %161 = vrot.lane.b32.xlu0 %v142, 124
      %v162 = vpop.permute.xlu0 %161
      %163 = vrot.lane.b32.xlu0 %v143, 124
      %v164 = vpop.permute.xlu0 %163
      %165 = vrot.lane.b32.xlu0 %v144, 124
      %v166 = vpop.permute.xlu0 %165
      %167 = vrot.lane.b32.xlu0 %v145, 124
      %v168 = vpop.permute.xlu0 %167
      %169 = vrot.lane.b32.xlu0 %v146, 124
      %v170 = vpop.permute.xlu0 %169
      %v179 = vmax.bf16 %v139, %v156
      %v180 = vmax.bf16 %v140, %v158
      %v181 = vmax.bf16 %v141, %v160
      %v182 = vmax.bf16 %v142, %v162
      %v183 = vmax.bf16 %v143, %v164
      %v184 = vmax.bf16 %v144, %v166
      %v185 = vmax.bf16 %v145, %v168
      %v186 = vmax.bf16 %v146, %v170
      %vm187 = vcmask 27648
      %188 = vst.msk [vmem:[%s121] sm:$0xf] %vm187, %v179
      %189 = vst.msk [vmem:[%s121 + $0x4] sm:$0xf] %vm187, %v180
      %190 = vst.msk [vmem:[%s121 + $0x8] sm:$0xf] %vm187, %v181
      %191 = vst.msk [vmem:[%s121 + $0xc] sm:$0xf] %vm187, %v182
      %192 = vst.msk [vmem:[%s121 + $0x10] sm:$0xf] %vm187, %v183
      %193 = vst.msk [vmem:[%s121 + $0x14] sm:$0xf] %vm187, %v184
      %194 = vst.msk [vmem:[%s121 + $0x18] sm:$0xf] %vm187, %v185
      %195 = vst.msk [vmem:[%s121 + $0x1c] sm:$0xf] %vm187, %v186
      %s196 = smul.u32 8, %s12
      %p197 = scmp.lt.s32.totalorder %s196, 15
      %s198 = scalar_select %p197, %s196, 15
      %s199 = smul.addr %s198, 4
      %s200 = scalar_lea.vmem %s1, %s199
      // Predicated region
      $region25: #{_lambda_.6} parent=23 // pred_check
        %p201 = pneg %p56
      $region26: #{_lambda_.6} parent=23 // pred_check_branch
        %203 = sbr.rel (%p201) target = $region28
      $region27: #{_lambda_.6} parent=23 // pred_region
        %s204 = smul.u32 8, %s12
      $region28: #{_lambda_.6} parent=23 // pred_fallthru
        _
    $region24: #{_lambda_.6} parent=5 // pred_fallthru
      _
    %p205 = scmp.le.s32.totalorder 2, %s7
    // Predicated region
    $region29: #{_lambda_.6} parent=5 // pred_check
      %p206 = pneg %p205
    $region30: #{_lambda_.6} parent=5 // pred_check_branch
      %208 = sbr.rel (%p206) target = $region32
    $region31: #{_lambda_.6} parent=5 // pred_region
      %s209 = ssub.s32 %s7, 2
      // Predicated region
      $region33: #{_lambda_.6} parent=31 // pred_check
        %p210 = pneg %p62
      $region34: #{_lambda_.6} parent=31 // pred_check_branch
        %212 = sbr.rel (%p210) target = $region36
      $region35: #{_lambda_.6} parent=31 // pred_region
        %s213 = smul.u32 8, %s13
        %p214 = scmp.lt.s32.totalorder %s213, 15
        %s215 = scalar_select %p214, %s213, 15
        %s216 = smul.addr %s215, 4
        %s217 = scalar_lea.vmem %s1, %s216
      $region36: #{_lambda_.6} parent=31 // pred_fallthru
        _
    $region32: #{_lambda_.6} parent=5 // pred_fallthru
      _
  $region6: #{_lambda_.6} parent=0 // loop_footer
    %s11 = sadd.s32 1, %s7
  $region7: #{_lambda_.6} parent=0 // loop_footer_branch
    %6 = sbr.rel target = $region3
  $region8: #{_lambda_.6} parent=0 // loop_exit
    _

// kernel: _lambda_.7
$region0: #{_lambda_.7}
  #allocation0 [shape = 'u32[]', space=smem, size = 0x4, offset = 0x4, fixed_abs, tag = 'smem constant byte address 0x4 - core index']
  #allocation1 [shape = 'u32[144,128]{1,0:T(1,128)}', space=vmem, size = 0x12000, scoped, tag = 'internal scratch']
  %s0 = inlined_call_operand.vmem [shape: bf16[2,9,9,8], index: 0, kind: input, shape index: {}, may-alias: {0,1}]
  %s1 = inlined_call_operand.vmem [shape: bf16[2,9,9,8], index: 1, kind: input, shape index: {}, may-alias: {0,1}]
  %s2 = inlined_call_operand.vmem [shape: bf16[2,9,9,8], index: 2, kind: input, shape index: {}]
  %s3 = inlined_call_operand.vmem [shape: bf16[36,8], index: 3, kind: input, shape index: {}]
  %s4 = inlined_call_operand.vmem [shape: f32[1,8], index: 4, kind: input, shape index: {}]
  %s5 = inlined_call_operand.vmem [shape: bf16[2,8,8,8], index: 5, kind: output, shape index: {}]
  %s6 = sld [smem:[#allocation0]]
  $region53: #{_lambda_.7} parent=0
    _
  %s8 = ssub.s32 1, %s6
  %s9 = scalar_select 0, %s8, %s6
  loop: start=0, step=1, limit=4
  $region2: #{_lambda_.7} parent=0 // loop_pre_header
    _
  $region3: #{_lambda_.7} parent=0 // loop_header
    %s11 = sphi 0, %s15
    %p12 = scmp.ge.s32.totalorder %s11, 4
    %s18 = sphi 0, %s30
    %s19 = sphi 0, %s26
    %s20 = sphi 0, %s18
    %s21 = sphi 0, %s19
    %s22 = sphi 0, %s20
    %s23 = sphi 0, %s21
    %s35 = sphi 0, %s37
    %s38 = sphi 0, %s35
    %s39 = sphi 0, %s38
    %s55 = sphi 0, %s39
    %s67 = sphi 0, %s69
    %s70 = sphi 0, %s67
    %s71 = sphi 0, %s70
    %s87 = sphi 0, %s71
    %s95 = sphi 0, %s97
    %s98 = sphi 0, %s95
    %s99 = sphi 0, %s98
    %s115 = sphi 0, %s99
    %s119 = sphi 0, %s119
    %s121 = sphi 0, %s119
    %s122 = sphi 0, %s121
    %s136 = sphi 0, %s122
    %s140 = sphi 0, %s140
    %s142 = sphi 0, %s140
    %s143 = sphi 0, %s142
    %s157 = sphi 0, %s143
    %s165 = sphi 0, %s167
    %s168 = sphi 0, %s165
    %s169 = sphi 0, %s168
    %s185 = sphi 0, %s169
  $region4: #{_lambda_.7} parent=0 // loop_header_branch
    %14 = sbr.rel (%p12) target = $region8
  $region5: #{_lambda_.7} parent=0 // loop_body
    %s16 = ssub.s32 %s11, 1
    %s17 = ssub.s32 %s11, 2
    %s24 = sadd.s32 1, %s19
    %p25 = scmp.ge.s32.totalorder %s24, 1
    %s26 = scalar_select %p25, 0, %s24
    %s27 = sadd.s32 1, %s18
    %s28 = scalar_select %p25, %s27, %s18
    %p29 = scmp.ge.s32.totalorder %s28, 2
    %s30 = scalar_select %p29, 0, %s28
    %s31 = ssub.s32 %s18, %s30
    %s32 = ssub.s32 %s19, %s26
    %s33 = sor.u32 %s31, %s32
    %p34 = scmp.eq.s32.totalorder %s33, 0
    %s36 = sadd.s32 %s35, 1
    %s37 = scalar_select %p34, %s35, %s36
    %p40 = pneg %p34
    %p41 = scmp.eq.s32.totalorder %s11, 1
    %p42 = por %p40, %p41
    %p43 = scmp.ne.s32.totalorder %s35, %s38
    %p44 = scmp.eq.s32.totalorder %s11, 0
    %p45 = por %p43, %p44
    %p46 = scmp.ne.s32.totalorder %s35, %s38
    %p47 = scmp.eq.s32.totalorder %s16, 1
    %p48 = por %p46, %p47
    %p49 = scmp.ne.s32.totalorder %s38, %s39
    %p50 = scmp.eq.s32.totalorder %s16, 0
    %p51 = por %p49, %p50
    %p52 = scmp.ne.s32.totalorder %s38, %s39
    %p53 = scmp.eq.s32.totalorder %s17, 1
    %p54 = por %p52, %p53
    %p56 = scmp.ne.s32.totalorder %s39, %s55
    %p57 = scmp.eq.s32.totalorder %s17, 0
    %p58 = por %p56, %p57
    %s59 = sadd.s32 %s19, 1
    %s60 = smul.u32 %s59, 8
    %s61 = sadd.s32 %s26, 1
    %s62 = smul.u32 %s61, 8
    %s63 = ssub.s32 %s18, %s30
    %s64 = ssub.s32 %s60, %s62
    %s65 = sor.u32 %s63, %s64
    %p66 = scmp.eq.s32.totalorder %s65, 0
    %s68 = sadd.s32 %s67, 1
    %s69 = scalar_select %p66, %s67, %s68
    %p72 = pneg %p66
    %p73 = scmp.eq.s32.totalorder %s11, 1
    %p74 = por %p72, %p73
    %p75 = scmp.ne.s32.totalorder %s67, %s70
    %p76 = scmp.eq.s32.totalorder %s11, 0
    %p77 = por %p75, %p76
    %p78 = scmp.ne.s32.totalorder %s67, %s70
    %p79 = scmp.eq.s32.totalorder %s16, 1
    %p80 = por %p78, %p79
    %p81 = scmp.ne.s32.totalorder %s70, %s71
    %p82 = scmp.eq.s32.totalorder %s16, 0
    %p83 = por %p81, %p82
    %p84 = scmp.ne.s32.totalorder %s70, %s71
    %p85 = scmp.eq.s32.totalorder %s17, 1
    %p86 = por %p84, %p85
    %p88 = scmp.ne.s32.totalorder %s71, %s87
    %p89 = scmp.eq.s32.totalorder %s17, 0
    %p90 = por %p88, %p89
    %s91 = ssub.s32 %s18, %s30
    %s92 = ssub.s32 %s19, %s26
    %s93 = sor.u32 %s91, %s92
    %p94 = scmp.eq.s32.totalorder %s93, 0
    %s96 = sadd.s32 %s95, 1
    %s97 = scalar_select %p94, %s95, %s96
    %p100 = pneg %p94
    %p101 = scmp.eq.s32.totalorder %s11, 1
    %p102 = por %p100, %p101
    %p103 = scmp.ne.s32.totalorder %s95, %s98
    %p104 = scmp.eq.s32.totalorder %s11, 0
    %p105 = por %p103, %p104
    %p106 = scmp.ne.s32.totalorder %s95, %s98
    %p107 = scmp.eq.s32.totalorder %s16, 1
    %p108 = por %p106, %p107
    %p109 = scmp.ne.s32.totalorder %s98, %s99
    %p110 = scmp.eq.s32.totalorder %s16, 0
    %p111 = por %p109, %p110
    %p112 = scmp.ne.s32.totalorder %s98, %s99
    %p113 = scmp.eq.s32.totalorder %s17, 1
    %p114 = por %p112, %p113
    %p116 = scmp.ne.s32.totalorder %s99, %s115
    %p117 = scmp.eq.s32.totalorder %s17, 0
    %p118 = por %p116, %p117
    %s120 = sadd.s32 %s119, 1
    %p123 = scmp.eq.s32.totalorder %s11, 1
    %p124 = scmp.ne.s32.totalorder %s119, %s121
    %p125 = scmp.eq.s32.totalorder %s11, 0
    %p126 = por %p124, %p125
    %p127 = scmp.ne.s32.totalorder %s119, %s121
    %p128 = scmp.eq.s32.totalorder %s16, 1
    %p129 = por %p127, %p128
    %p130 = scmp.ne.s32.totalorder %s121, %s122
    %p131 = scmp.eq.s32.totalorder %s16, 0
    %p132 = por %p130, %p131
    %p133 = scmp.ne.s32.totalorder %s121, %s122
    %p134 = scmp.eq.s32.totalorder %s17, 1
    %p135 = por %p133, %p134
    %p137 = scmp.ne.s32.totalorder %s122, %s136
    %p138 = scmp.eq.s32.totalorder %s17, 0
    %p139 = por %p137, %p138
    %s141 = sadd.s32 %s140, 1
    %p144 = scmp.eq.s32.totalorder %s11, 1
    %p145 = scmp.ne.s32.totalorder %s140, %s142
    %p146 = scmp.eq.s32.totalorder %s11, 0
    %p147 = por %p145, %p146
    %p148 = scmp.ne.s32.totalorder %s140, %s142
    %p149 = scmp.eq.s32.totalorder %s16, 1
    %p150 = por %p148, %p149
    %p151 = scmp.ne.s32.totalorder %s142, %s143
    %p152 = scmp.eq.s32.totalorder %s16, 0
    %p153 = por %p151, %p152
    %p154 = scmp.ne.s32.totalorder %s142, %s143
    %p155 = scmp.eq.s32.totalorder %s17, 1
    %p156 = por %p154, %p155
    %p158 = scmp.ne.s32.totalorder %s143, %s157
    %p159 = scmp.eq.s32.totalorder %s17, 0
    %p160 = por %p158, %p159
    %s161 = ssub.s32 %s18, %s30
    %s162 = ssub.s32 %s19, %s26
    %s163 = sor.u32 %s161, %s162
    %p164 = scmp.eq.s32.totalorder %s163, 0
    %s166 = sadd.s32 %s165, 1
    %s167 = scalar_select %p164, %s165, %s166
    %p170 = pneg %p164
    %p171 = scmp.eq.s32.totalorder %s11, 1
    %p172 = por %p170, %p171
    %p173 = scmp.ne.s32.totalorder %s165, %s168
    %p174 = scmp.eq.s32.totalorder %s11, 0
    %p175 = por %p173, %p174
    %p176 = scmp.ne.s32.totalorder %s165, %s168
    %p177 = scmp.eq.s32.totalorder %s16, 1
    %p178 = por %p176, %p177
    %p179 = scmp.ne.s32.totalorder %s168, %s169
    %p180 = scmp.eq.s32.totalorder %s16, 0
    %p181 = por %p179, %p180
    %p182 = scmp.ne.s32.totalorder %s168, %s169
    %p183 = scmp.eq.s32.totalorder %s17, 1
    %p184 = por %p182, %p183
    %p186 = scmp.ne.s32.totalorder %s169, %s185
    %p187 = scmp.eq.s32.totalorder %s17, 0
    %p188 = por %p186, %p187
    %p189 = scmp.le.s32.totalorder 1, %s11
    %p190 = scmp.lt.s32.totalorder %s11, 3
    %p191 = pnand %p189, %p190
    %p192 = pneg %p191
    // Predicated region
    $region9: #{_lambda_.7} parent=5 // pred_check
      _
    $region10: #{_lambda_.7} parent=5 // pred_check_branch
      %194 = sbr.rel (%p191) target = $region12
    $region11: #{_lambda_.7} parent=5 // pred_region
      %s195 = ssub.s32 %s11, 1
      // Predicated region
      $region13: #{_lambda_.7} parent=11 // pred_check
        %p196 = pneg %p132
      $region14: #{_lambda_.7} parent=11 // pred_check_branch
        %198 = sbr.rel (%p196) target = $region16
      $region15: #{_lambda_.7} parent=11 // pred_region
        _
      $region16: #{_lambda_.7} parent=11 // pred_fallthru
        _
      // Predicated region
      $region17: #{_lambda_.7} parent=11 // pred_check
        %p199 = pneg %p153
      $region18: #{_lambda_.7} parent=11 // pred_check_branch
        %201 = sbr.rel (%p199) target = $region20
      $region19: #{_lambda_.7} parent=11 // pred_region
        _
      $region20: #{_lambda_.7} parent=11 // pred_fallthru
        _
    $region12: #{_lambda_.7} parent=5 // pred_fallthru
      _
    %p202 = scmp.lt.s32.totalorder %s11, 2
    // Predicated region
    $region21: #{_lambda_.7} parent=5 // pred_check
      %p203 = pneg %p202
    $region22: #{_lambda_.7} parent=5 // pred_check_branch
      %205 = sbr.rel (%p203) target = $region24
    $region23: #{_lambda_.7} parent=5 // pred_region
      // Predicated region
      $region25: #{_lambda_.7} parent=23 // pred_check
        %p206 = pneg %p45
      $region26: #{_lambda_.7} parent=23 // pred_check_branch
        %208 = sbr.rel (%p206) target = $region28
      $region27: #{_lambda_.7} parent=23 // pred_region
        %s209 = smul.u32 8, %s19
        %s210 = ssub.s32 9, %s209
        %p211 = scmp.lt.s32.totalorder %s210, 8
        %s212 = scalar_select %p211, %s210, 8
        %s213 = smul.u32 64, %s212
        %s214 = smul.u32 %s213, 2
        %p215 = scmp.lt.s32.totalorder %s18, 1
        %s216 = scalar_select %p215, %s18, 1
        %p217 = scmp.lt.s32.totalorder %s209, 8
        %s218 = scalar_select %p217, %s209, 8
        %s219 = smul.addr %s218, 2
        %s220 = smul.addr %s216, 18
        %s221 = sadd.s32 %s219, %s220
        %s222 = smul.addr %s221, 4
        %s223 = scalar_lea.vmem %s0, %s222
        %s224 = smul.u32 8, %s19
        %s225 = ssub.s32 9, %s224
        %p226 = scmp.lt.s32.totalorder %s225, 8
        %s227 = scalar_select %p226, %s225, 8
        %s228 = smul.u32 64, %s227
        %s229 = smul.u32 %s228, 2
      $region28: #{_lambda_.7} parent=23 // pred_fallthru
        _
      // Predicated region
      $region29: #{_lambda_.7} parent=23 // pred_check
        %p230 = pneg %p77
      $region30: #{_lambda_.7} parent=23 // pred_check_branch
        %232 = sbr.rel (%p230) target = $region32
      $region31: #{_lambda_.7} parent=23 // pred_region
        %s233 = sadd.s32 %s19, 1
        %s234 = smul.u32 %s233, 8
        %p235 = scmp.lt.s32.totalorder %s18, 1
        %s236 = scalar_select %p235, %s18, 1
        %p237 = scmp.lt.s32.totalorder %s234, 8
        %s238 = scalar_select %p237, %s234, 8
        %s239 = smul.addr %s238, 2
        %s240 = smul.addr %s236, 18
        %s241 = sadd.s32 %s239, %s240
        %s242 = smul.addr %s241, 4
        %s243 = scalar_lea.vmem %s1, %s242
        %s244 = sadd.s32 %s19, 1
        %s245 = smul.u32 %s244, 8
      $region32: #{_lambda_.7} parent=23 // pred_fallthru
        _
      // Predicated region
      $region33: #{_lambda_.7} parent=23 // pred_check
        %p246 = pneg %p105
      $region34: #{_lambda_.7} parent=23 // pred_check_branch
        %248 = sbr.rel (%p246) target = $region36
      $region35: #{_lambda_.7} parent=23 // pred_region
        %s249 = smul.u32 8, %s19
        %s250 = ssub.s32 9, %s249
        %p251 = scmp.lt.s32.totalorder %s250, 8
        %s252 = scalar_select %p251, %s250, 8
        %s253 = smul.u32 64, %s252
        %s254 = smul.u32 %s253, 2
        %p255 = scmp.lt.s32.totalorder %s18, 1
        %s256 = scalar_select %p255, %s18, 1
        %p257 = scmp.lt.s32.totalorder %s249, 8
        %s258 = scalar_select %p257, %s249, 8
        %s259 = smul.addr %s258, 2
        %s260 = smul.addr %s256, 18
        %s261 = sadd.s32 %s259, %s260
        %s262 = smul.addr %s261, 4
        %s263 = scalar_lea.vmem %s2, %s262
        %s264 = smul.u32 8, %s19
        %s265 = ssub.s32 9, %s264
        %p266 = scmp.lt.s32.totalorder %s265, 8
        %s267 = scalar_select %p266, %s265, 8
        %s268 = smul.u32 64, %s267
        %s269 = smul.u32 %s268, 2
      $region36: #{_lambda_.7} parent=23 // pred_fallthru
        _
    $region24: #{_lambda_.7} parent=5 // pred_fallthru
      _
    %p270 = scmp.le.s32.totalorder 1, %s11
    %p271 = scmp.lt.s32.totalorder %s11, 3
    %p272 = pnand %p270, %p271
    %p273 = pneg %p272
    // Predicated region
    $region37: #{_lambda_.7} parent=5 // pred_check
      _
    $region38: #{_lambda_.7} parent=5 // pred_check_branch
      %275 = sbr.rel (%p272) target = $region40
    $region39: #{_lambda_.7} parent=5 // pred_region
      %s276 = ssub.s32 %s11, 1
      %s277 = smul.u32 8, %s21
      %s278 = ssub.s32 9, %s277
      %p279 = scmp.lt.s32.totalorder %s278, 8
      %s280 = scalar_select %p279, %s278, 8
      %s281 = smul.u32 64, %s280
      %s282 = smul.u32 %s281, 2
      %p283 = scmp.lt.s32.totalorder %s20, 1
      %s284 = scalar_select %p283, %s20, 1
      %p285 = scmp.lt.s32.totalorder %s277, 8
      %s286 = scalar_select %p285, %s277, 8
      %s287 = smul.addr %s286, 2
      %s288 = smul.addr %s284, 18
      %s289 = sadd.s32 %s287, %s288
      %s290 = smul.addr %s289, 4
      %s291 = scalar_lea.vmem %s0, %s290
      %p292 = pneg %p51
      %p293 = pneg %p48
      %s294 = sadd.s32 %s21, 1
      %s295 = smul.u32 %s294, 8
      %p296 = scmp.lt.s32.totalorder %s20, 1
      %s297 = scalar_select %p296, %s20, 1
      %p298 = scmp.lt.s32.totalorder %s295, 8
      %s299 = scalar_select %p298, %s295, 8
      %s300 = smul.addr %s299, 2
      %s301 = smul.addr %s297, 18
      %s302 = sadd.s32 %s300, %s301
      %s303 = smul.addr %s302, 4
      %s304 = scalar_lea.vmem %s1, %s303
      %p305 = pneg %p83
      %p306 = pneg %p80
      %s307 = smul.u32 8, %s21
      %s308 = ssub.s32 9, %s307
      %p309 = scmp.lt.s32.totalorder %s308, 8
      %s310 = scalar_select %p309, %s308, 8
      %s311 = smul.u32 64, %s310
      %s312 = smul.u32 %s311, 2
      %p313 = scmp.lt.s32.totalorder %s20, 1
      %s314 = scalar_select %p313, %s20, 1
      %p315 = scmp.lt.s32.totalorder %s307, 8
      %s316 = scalar_select %p315, %s307, 8
      %s317 = smul.addr %s316, 2
      %s318 = smul.addr %s314, 18
      %s319 = sadd.s32 %s317, %s318
      %s320 = smul.addr %s319, 4
      %s321 = scalar_lea.vmem %s2, %s320
      %p322 = pneg %p111
      %p323 = pneg %p108
      %p324 = pneg %p132
      %p325 = pneg %p129
      %p326 = pneg %p153
      %p327 = pneg %p150
      %p328 = pneg %p181
      %p329 = pneg %p178
      %s330 = smul.u32 8, %s21
      %p331 = scmp.lt.s32.totalorder %s20, 1
      %s332 = scalar_select %p331, %s20, 1
      %p333 = scmp.lt.s32.totalorder %s330, 7
      %s334 = scalar_select %p333, %s330, 7
      %s335 = smul.addr %s332, 8
      %s336 = sadd.s32 %s334, %s335
      %s337 = smul.addr %s336, 4
      %s338 = scalar_lea.vmem %s5, %s337
      %s339 = smul.u32 8, %s21
      %s340 = ssub.s32 9, %s339
      %p341 = scmp.lt.s32.totalorder %s340, 8
      %s342 = scalar_select %p341, %s340, 8
      %s343 = smul.u32 64, %s342
      %s344 = smul.u32 %s343, 2
      %p345 = scmp.lt.s32.totalorder %s20, 1
      %s346 = scalar_select %p345, %s20, 1
      %p347 = scmp.lt.s32.totalorder %s339, 8
      %s348 = scalar_select %p347, %s339, 8
      %s349 = smul.addr %s348, 2
      %s350 = smul.addr %s346, 18
      %s351 = sadd.s32 %s349, %s350
      %s352 = smul.addr %s351, 4
      %s353 = scalar_lea.vmem %s0, %s352
      %s354 = smul.u32 8, %s21
      %s355 = ssub.s32 9, %s354
      %p356 = scmp.lt.s32.totalorder %s355, 8
      %s357 = scalar_select %p356, %s355, 8
      %s358 = smul.u32 64, %s357
      %s359 = smul.u32 %s358, 2
      %s360 = sadd.s32 %s21, 1
      %s361 = smul.u32 %s360, 8
      %p362 = scmp.lt.s32.totalorder %s20, 1
      %s363 = scalar_select %p362, %s20, 1
      %p364 = scmp.lt.s32.totalorder %s361, 8
      %s365 = scalar_select %p364, %s361, 8
      %s366 = smul.addr %s365, 2
      %s367 = smul.addr %s363, 18
      %s368 = sadd.s32 %s366, %s367
      %s369 = smul.addr %s368, 4
      %s370 = scalar_lea.vmem %s1, %s369
      %s371 = sadd.s32 %s21, 1
      %s372 = smul.u32 %s371, 8
      %s373 = smul.u32 8, %s21
      %s374 = ssub.s32 9, %s373
      %p375 = scmp.lt.s32.totalorder %s374, 8
      %s376 = scalar_select %p375, %s374, 8
      %s377 = smul.u32 64, %s376
      %s378 = smul.u32 %s377, 2
      %p379 = scmp.lt.s32.totalorder %s20, 1
      %s380 = scalar_select %p379, %s20, 1
      %p381 = scmp.lt.s32.totalorder %s373, 8
      %s382 = scalar_select %p381, %s373, 8
      %s383 = smul.addr %s382, 2
      %s384 = smul.addr %s380, 18
      %s385 = sadd.s32 %s383, %s384
      %s386 = smul.addr %s385, 4
      %s387 = scalar_lea.vmem %s2, %s386
      %s388 = smul.u32 8, %s21
      %s389 = ssub.s32 9, %s388
      %p390 = scmp.lt.s32.totalorder %s389, 8
      %s391 = scalar_select %p390, %s389, 8
      %s392 = smul.u32 64, %s391
      %s393 = smul.u32 %s392, 2
      %s394 = smul.u32 8, %s21
      %p395 = scmp.lt.s32.totalorder %s20, 1
      %s396 = scalar_select %p395, %s20, 1
      %p397 = scmp.lt.s32.totalorder %s394, 7
      %s398 = scalar_select %p397, %s394, 7
      %s399 = smul.addr %s396, 8
      %s400 = sadd.s32 %s398, %s399
      %s401 = smul.addr %s400, 4
      %s402 = scalar_lea.vmem %s5, %s401
      %s403 = smul.u32 8, %s21
      %v405 = vld [vmem:[%s353] sm:$0xf]
      %v406 = vld [vmem:[%s353 + $0x4] sm:$0x1]
      %v407 = vld [vmem:[%s353 + $0x8] sm:$0xf]
      %v408 = vld [vmem:[%s353 + $0xc] sm:$0x1]
      %v409 = vld [vmem:[%s353 + $0x10] sm:$0xf]
      %v410 = vld [vmem:[%s353 + $0x14] sm:$0x1]
      %v411 = vld [vmem:[%s353 + $0x18] sm:$0xf]
      %v412 = vld [vmem:[%s353 + $0x1c] sm:$0x1]
      %v413 = vld [vmem:[%s353 + $0x20] sm:$0xf]
      %v414 = vld [vmem:[%s353 + $0x24] sm:$0x1]
      %v415 = vld [vmem:[%s353 + $0x28] sm:$0xf]
      %v416 = vld [vmem:[%s353 + $0x2c] sm:$0x1]
      %v417 = vld [vmem:[%s353 + $0x30] sm:$0xf]
      %v418 = vld [vmem:[%s353 + $0x34] sm:$0x1]
      %v419 = vld [vmem:[%s353 + $0x38] sm:$0xf]
      %v420 = vld [vmem:[%s353 + $0x3c] sm:$0x1]
      %v421 = vld [vmem:[%s370] sm:$0xf]
      %v422 = vld [vmem:[%s370 + $0x4] sm:$0x1]
      %v423 = vld [vmem:[%s387] sm:$0xf]
      %v424 = vld [vmem:[%s387 + $0x4] sm:$0x1]
      %v425 = vld [vmem:[%s387 + $0x8] sm:$0xf]
      %v426 = vld [vmem:[%s387 + $0xc] sm:$0x1]
      %v427 = vld [vmem:[%s387 + $0x10] sm:$0xf]
      %v428 = vld [vmem:[%s387 + $0x14] sm:$0x1]
      %v429 = vld [vmem:[%s387 + $0x18] sm:$0xf]
      %v430 = vld [vmem:[%s387 + $0x1c] sm:$0x1]
      %v431 = vld [vmem:[%s387 + $0x20] sm:$0xf]
      %v432 = vld [vmem:[%s387 + $0x24] sm:$0x1]
      %v433 = vld [vmem:[%s387 + $0x28] sm:$0xf]
      %v434 = vld [vmem:[%s387 + $0x2c] sm:$0x1]
      %v435 = vld [vmem:[%s387 + $0x30] sm:$0xf]
      %v436 = vld [vmem:[%s387 + $0x34] sm:$0x1]
      %v437 = vld [vmem:[%s387 + $0x38] sm:$0xf]
      %v438 = vld [vmem:[%s387 + $0x3c] sm:$0x1]
      %v455 = vunpack.c.l.b16 %v405
      %v456 = vunpack.c.l.b16 %v406
      %v457 = vunpack.c.l.b16 %v407
      %v458 = vunpack.c.l.b16 %v408
      %v459 = vunpack.c.l.b16 %v409
      %v460 = vunpack.c.l.b16 %v410
      %v461 = vunpack.c.l.b16 %v411
      %v462 = vunpack.c.l.b16 %v412
      %v463 = vunpack.c.l.b16 %v413
      %v464 = vunpack.c.l.b16 %v414
      %v465 = vunpack.c.l.b16 %v415
      %v466 = vunpack.c.l.b16 %v416
      %v467 = vunpack.c.l.b16 %v417
      %v468 = vunpack.c.l.b16 %v418
      %v469 = vunpack.c.l.b16 %v419
      %v470 = vunpack.c.l.b16 %v420
      %v471 = vpack.c.b16 %v456, %v455
      %v472 = vpack.c.b16 %v458, %v457
      %v473 = vpack.c.b16 %v460, %v459
      %v474 = vpack.c.b16 %v462, %v461
      %v475 = vpack.c.b16 %v464, %v463
      %v476 = vpack.c.b16 %v466, %v465
      %v477 = vpack.c.b16 %v468, %v467
      %v478 = vpack.c.b16 %v470, %v469
      %v480 = vshrl.u32 %v471, 16
      %v482 = vshll.u32 %v471, 16
      %v484 = vrot.slane %v482, 1
      %v485 = vor.u32 %v480, %v484
      %v487 = vshrl.u32 %v472, 16
      %v489 = vshll.u32 %v472, 16
      %v491 = vrot.slane %v489, 1
      %v492 = vor.u32 %v487, %v491
      %v494 = vshrl.u32 %v473, 16
      %v496 = vshll.u32 %v473, 16
      %v498 = vrot.slane %v496, 1
      %v499 = vor.u32 %v494, %v498
      %v501 = vshrl.u32 %v474, 16
      %v503 = vshll.u32 %v474, 16
      %v505 = vrot.slane %v503, 1
      %v506 = vor.u32 %v501, %v505
      %v508 = vshrl.u32 %v475, 16
      %v510 = vshll.u32 %v475, 16
      %v512 = vrot.slane %v510, 1
      %v513 = vor.u32 %v508, %v512
      %v515 = vshrl.u32 %v476, 16
      %v517 = vshll.u32 %v476, 16
      %v519 = vrot.slane %v517, 1
      %v520 = vor.u32 %v515, %v519
      %v522 = vshrl.u32 %v477, 16
      %v524 = vshll.u32 %v477, 16
      %v526 = vrot.slane %v524, 1
      %v527 = vor.u32 %v522, %v526
      %v529 = vshrl.u32 %v478, 16
      %v531 = vshll.u32 %v478, 16
      %v533 = vrot.slane %v531, 1
      %v534 = vor.u32 %v529, %v533
      %535 = vrot.lane.b32.xlu0 %v485, 8
      %v536 = vpop.permute.xlu0 %535
      %537 = vrot.lane.b32.xlu0 %v492, 8
      %v538 = vpop.permute.xlu0 %537
      %539 = vrot.lane.b32.xlu0 %v499, 8
      %v540 = vpop.permute.xlu0 %539
      %541 = vrot.lane.b32.xlu0 %v506, 8
      %v542 = vpop.permute.xlu0 %541
      %543 = vrot.lane.b32.xlu0 %v513, 8
      %v544 = vpop.permute.xlu0 %543
      %545 = vrot.lane.b32.xlu0 %v520, 8
      %v546 = vpop.permute.xlu0 %545
      %547 = vrot.lane.b32.xlu0 %v527, 8
      %v548 = vpop.permute.xlu0 %547
      %549 = vrot.lane.b32.xlu0 %v534, 8
      %v550 = vpop.permute.xlu0 %549
      %v559 = vunpack.c.l.b16 %v423
      %v560 = vunpack.c.l.b16 %v425
      %v561 = vunpack.c.l.b16 %v427
      %v562 = vunpack.c.l.b16 %v429
      %v563 = vunpack.c.l.b16 %v431
      %v564 = vunpack.c.l.b16 %v433
      %v565 = vunpack.c.l.b16 %v435
      %v566 = vunpack.c.l.b16 %v437
      %v567 = vpack.c.b16 %v559, %v559
      %v568 = vpack.c.b16 %v560, %v560
      %v569 = vpack.c.b16 %v561, %v561
      %v570 = vpack.c.b16 %v562, %v562
      %v571 = vpack.c.b16 %v563, %v563
      %v572 = vpack.c.b16 %v564, %v564
      %v573 = vpack.c.b16 %v565, %v565
      %v574 = vpack.c.b16 %v566, %v566
      %575 = vrot.lane.b32.xlu0 %v567, 12
      %v576 = vpop.permute.xlu0 %575
      %577 = vrot.lane.b32.xlu0 %v568, 12
      %v578 = vpop.permute.xlu0 %577
      %579 = vrot.lane.b32.xlu0 %v569, 12
      %v580 = vpop.permute.xlu0 %579
      %581 = vrot.lane.b32.xlu0 %v570, 12
      %v582 = vpop.permute.xlu0 %581
      %583 = vrot.lane.b32.xlu0 %v571, 12
      %v584 = vpop.permute.xlu0 %583
      %585 = vrot.lane.b32.xlu0 %v572, 12
      %v586 = vpop.permute.xlu0 %585
      %587 = vrot.lane.b32.xlu0 %v573, 12
      %v588 = vpop.permute.xlu0 %587
      %589 = vrot.lane.b32.xlu0 %v574, 12
      %v590 = vpop.permute.xlu0 %589
      %v599 = vunpack.c.l.b16 %v424
      %v600 = vunpack.c.l.b16 %v426
      %v601 = vunpack.c.l.b16 %v428
      %v602 = vunpack.c.l.b16 %v430
      %v603 = vunpack.c.l.b16 %v432
      %v604 = vunpack.c.l.b16 %v434
      %v605 = vunpack.c.l.b16 %v436
      %v606 = vunpack.c.l.b16 %v438
      %v607 = vpack.c.b16 %v599, %v559
      %v608 = vpack.c.b16 %v600, %v560
      %v609 = vpack.c.b16 %v601, %v561
      %v610 = vpack.c.b16 %v602, %v562
      %v611 = vpack.c.b16 %v603, %v563
      %v612 = vpack.c.b16 %v604, %v564
      %v613 = vpack.c.b16 %v605, %v565
      %v614 = vpack.c.b16 %v606, %v566
      %v616 = vshrl.u32 %v607, 16
      %v618 = vshll.u32 %v607, 16
      %v620 = vrot.slane %v618, 1
      %v621 = vor.u32 %v616, %v620
      %v623 = vshrl.u32 %v608, 16
      %v625 = vshll.u32 %v608, 16
      %v627 = vrot.slane %v625, 1
      %v628 = vor.u32 %v623, %v627
      %v630 = vshrl.u32 %v609, 16
      %v632 = vshll.u32 %v609, 16
      %v634 = vrot.slane %v632, 1
      %v635 = vor.u32 %v630, %v634
      %v637 = vshrl.u32 %v610, 16
      %v639 = vshll.u32 %v610, 16
      %v641 = vrot.slane %v639, 1
      %v642 = vor.u32 %v637, %v641
      %v644 = vshrl.u32 %v611, 16
      %v646 = vshll.u32 %v611, 16
      %v648 = vrot.slane %v646, 1
      %v649 = vor.u32 %v644, %v648
      %v651 = vshrl.u32 %v612, 16
      %v653 = vshll.u32 %v612, 16
      %v655 = vrot.slane %v653, 1
      %v656 = vor.u32 %v651, %v655
      %v658 = vshrl.u32 %v613, 16
      %v660 = vshll.u32 %v613, 16
      %v662 = vrot.slane %v660, 1
      %v663 = vor.u32 %v658, %v662
      %v665 = vshrl.u32 %v614, 16
      %v667 = vshll.u32 %v614, 16
      %v669 = vrot.slane %v667, 1
      %v670 = vor.u32 %v665, %v669
      %671 = vrot.lane.b32.xlu0 %v621, 20
      %v672 = vpop.permute.xlu0 %671
      %673 = vrot.lane.b32.xlu0 %v628, 20
      %v674 = vpop.permute.xlu0 %673
      %675 = vrot.lane.b32.xlu0 %v635, 20
      %v676 = vpop.permute.xlu0 %675
      %677 = vrot.lane.b32.xlu0 %v642, 20
      %v678 = vpop.permute.xlu0 %677
      %679 = vrot.lane.b32.xlu0 %v649, 20
      %v680 = vpop.permute.xlu0 %679
      %681 = vrot.lane.b32.xlu0 %v656, 20
      %v682 = vpop.permute.xlu0 %681
      %683 = vrot.lane.b32.xlu0 %v663, 20
      %v684 = vpop.permute.xlu0 %683
      %685 = vrot.lane.b32.xlu0 %v670, 20
      %v686 = vpop.permute.xlu0 %685
      %v688 = vunpack.c.l.b16 %v421
      %v689 = vpack.c.b16 %v457, %v457
      %v690 = vpack.c.b16 %v459, %v459
      %v691 = vpack.c.b16 %v461, %v461
      %v692 = vpack.c.b16 %v463, %v463
      %v693 = vpack.c.b16 %v465, %v465
      %v694 = vpack.c.b16 %v467, %v467
      %v695 = vpack.c.b16 %v469, %v469
      %v696 = vpack.c.b16 %v688, %v688
      %697 = vrot.lane.b32.xlu0 %v689, 24
      %v698 = vpop.permute.xlu0 %697
      %699 = vrot.lane.b32.xlu0 %v690, 24
      %v700 = vpop.permute.xlu0 %699
      %701 = vrot.lane.b32.xlu0 %v691, 24
      %v702 = vpop.permute.xlu0 %701
      %703 = vrot.lane.b32.xlu0 %v692, 24
      %v704 = vpop.permute.xlu0 %703
      %705 = vrot.lane.b32.xlu0 %v693, 24
      %v706 = vpop.permute.xlu0 %705
      %707 = vrot.lane.b32.xlu0 %v694, 24
      %v708 = vpop.permute.xlu0 %707
      %709 = vrot.lane.b32.xlu0 %v695, 24
      %v710 = vpop.permute.xlu0 %709
      %711 = vrot.lane.b32.xlu0 %v696, 24
      %v712 = vpop.permute.xlu0 %711
      %v714 = vunpack.c.l.b16 %v422
      %v715 = vpack.c.b16 %v714, %v688
      %v717 = vshrl.u32 %v715, 16
      %v719 = vshll.u32 %v715, 16
      %v721 = vrot.slane %v719, 1
      %v722 = vor.u32 %v717, %v721
      %723 = vrot.lane.b32.xlu0 %v492, 32
      %v724 = vpop.permute.xlu0 %723
      %725 = vrot.lane.b32.xlu0 %v499, 32
      %v726 = vpop.permute.xlu0 %725
      %727 = vrot.lane.b32.xlu0 %v506, 32
      %v728 = vpop.permute.xlu0 %727
      %729 = vrot.lane.b32.xlu0 %v513, 32
      %v730 = vpop.permute.xlu0 %729
      %731 = vrot.lane.b32.xlu0 %v520, 32
      %v732 = vpop.permute.xlu0 %731
      %733 = vrot.lane.b32.xlu0 %v527, 32
      %v734 = vpop.permute.xlu0 %733
      %735 = vrot.lane.b32.xlu0 %v534, 32
      %v736 = vpop.permute.xlu0 %735
      %737 = vrot.lane.b32.xlu0 %v722, 32
      %v738 = vpop.permute.xlu0 %737
      %vm747 = vcmask 64512
      %v749 = vsel %vm747, %v405, %v536
      %v751 = vsel %vm747, %v407, %v538
      %v753 = vsel %vm747, %v409, %v540
      %v755 = vsel %vm747, %v411, %v542
      %v757 = vsel %vm747, %v413, %v544
      %v759 = vsel %vm747, %v415, %v546
      %v761 = vsel %vm747, %v417, %v548
      %v763 = vsel %vm747, %v419, %v550
      %vm764 = vcmask 97280
      %v766 = vsel %vm764, %v749, %v576
      %v768 = vsel %vm764, %v751, %v578
      %v770 = vsel %vm764, %v753, %v580
      %v772 = vsel %vm764, %v755, %v582
      %v774 = vsel %vm764, %v757, %v584
      %v776 = vsel %vm764, %v759, %v586
      %v778 = vsel %vm764, %v761, %v588
      %v780 = vsel %vm764, %v763, %v590
      %vm781 = vcmask 130048
      %v782 = vsel %vm781, %v766, %v576
      %v783 = vsel %vm781, %v768, %v578
      %v784 = vsel %vm781, %v770, %v580
      %v785 = vsel %vm781, %v772, %v582
      %v786 = vsel %vm781, %v774, %v584
      %v787 = vsel %vm781, %v776, %v586
      %v788 = vsel %vm781, %v778, %v588
      %v789 = vsel %vm781, %v780, %v590
      %vm790 = vcmask 162816
      %v792 = vsel %vm790, %v782, %v672
      %v794 = vsel %vm790, %v783, %v674
      %v796 = vsel %vm790, %v784, %v676
      %v798 = vsel %vm790, %v785, %v678
      %v800 = vsel %vm790, %v786, %v680
      %v802 = vsel %vm790, %v787, %v682
      %v804 = vsel %vm790, %v788, %v684
      %v806 = vsel %vm790, %v789, %v686
      %vm807 = vcmask 195584
      %v809 = vsel %vm807, %v792, %v698
      %v811 = vsel %vm807, %v794, %v700
      %v813 = vsel %vm807, %v796, %v702
      %v815 = vsel %vm807, %v798, %v704
      %v817 = vsel %vm807, %v800, %v706
      %v819 = vsel %vm807, %v802, %v708
      %v821 = vsel %vm807, %v804, %v710
      %v823 = vsel %vm807, %v806, %v712
      %vm824 = vcmask 228352
      %v825 = vsel %vm824, %v809, %v698
      %v826 = vsel %vm824, %v811, %v700
      %v827 = vsel %vm824, %v813, %v702
      %v828 = vsel %vm824, %v815, %v704
      %v829 = vsel %vm824, %v817, %v706
      %v830 = vsel %vm824, %v819, %v708
      %v831 = vsel %vm824, %v821, %v710
      %v832 = vsel %vm824, %v823, %v712
      %vm833 = vcmask 261120
      %v835 = vsel %vm833, %v825, %v724
      %v837 = vsel %vm833, %v826, %v726
      %v839 = vsel %vm833, %v827, %v728
      %v841 = vsel %vm833, %v828, %v730
      %v843 = vsel %vm833, %v829, %v732
      %v845 = vsel %vm833, %v830, %v734
      %v847 = vsel %vm833, %v831, %v736
      %v849 = vsel %vm833, %v832, %v738
      %v850 = vld [vmem:[%s3] sm:$0xf]
      %v851 = vld [vmem:[%s3 + $0x4] sm:$0xf]
      %v852 = vld [vmem:[%s3 + $0x8] sm:$0xf]
      %v853 = vld [vmem:[%s3 + $0xc] sm:$0xf]
      %v854 = vld [vmem:[%s3 + $0x10] sm:$0x3]
      %v855 = vld [vmem:[%s4] sm:$0x1]
      %v857 = vlaneseq
      %v858 = vshrl.u32 %v857, 7
      %v859 = vsub.s32 0, %v858
      %v860 = vrot.slane %v855, %v859
      %v870 = vunpack.c.l.b16 %v835
      %v871 = vunpack.c.l.b16 %v837
      %v872 = vunpack.c.l.b16 %v839
      %v873 = vunpack.c.l.b16 %v841
      %v874 = vunpack.c.l.b16 %v843
      %v875 = vunpack.c.l.b16 %v845
      %v876 = vunpack.c.l.b16 %v847
      %v877 = vunpack.c.l.b16 %v849
      %v878 = vpack.c.b16 %v871, %v870
      %v879 = vpack.c.b16 %v873, %v872
      %v880 = vpack.c.b16 %v875, %v874
      %v881 = vpack.c.b16 %v877, %v876
      %v887 = vunpack.c.l.b16 %v850
      %v888 = vunpack.c.l.b16 %v851
      %v889 = vunpack.c.l.b16 %v852
      %v890 = vunpack.c.l.b16 %v853
      %v891 = vunpack.c.l.b16 %v854
      %v892 = vpack.c.b16 %v888, %v887
      %v893 = vpack.c.b16 %v890, %v889
      %v894 = vpack.c.b16 %v891, %v891
      %vm897 = vcmask 293888
      %v899 = vsel %vm897, %v878, 0
      %v902 = vsel %vm897, %v879, 0
      %v905 = vsel %vm897, %v880, 0
      %v908 = vsel %vm897, %v881, 0
      %vm910 = vcmask 1041408
      %v912 = vsel %vm910, %v894, 0
      %914 = vmatprep.subr.bf16.mxu0 0
      %915 = vmatpush1.bf16.msra.mxu0 %v892
      %916 = vmatprep.subr.bf16.mxu0 0
      %917 = vmatpush1.bf16.msra.mxu0 %v893
      %918 = vmatprep.subr.bf16.mxu0 0
      %919 = vmatpush1.bf16.msra.mxu0 %v912
      %920 = vmatprep.subr.bf16.mxu0 0
      %921 = vmatpush1.bf16.msra.mxu0 0
      %922 = vmatprep.subr.bf16.mxu0 0
      %923 = vmatpush1.bf16.msra.mxu0 0
      %924 = vmatprep.subr.bf16.mxu0 0
      %925 = vmatpush1.bf16.msra.mxu0 0
      %926 = vmatprep.subr.bf16.mxu0 0
      %927 = vmatpush1.bf16.msra.mxu0 0
      %928 = vmatprep.subr.bf16.mxu0 0
      %929 = vmatpush1.bf16.msra.mxu0 0
      %930 = vmatprep.subr.bf16.mxu0 0
      %931 = vmatpush1.bf16.msra.mxu0 0
      %932 = vmatprep.subr.bf16.mxu0 0
      %933 = vmatpush1.bf16.msra.mxu0 0
      %934 = vmatprep.subr.bf16.mxu0 0
      %935 = vmatpush1.bf16.msra.mxu0 0
      %936 = vmatprep.subr.bf16.mxu0 0
      %937 = vmatpush1.bf16.msra.mxu0 0
      %938 = vmatprep.subr.bf16.mxu0 0
      %939 = vmatpush1.bf16.msra.mxu0 0
      %940 = vmatprep.subr.bf16.mxu0 0
      %941 = vmatpush1.bf16.msra.mxu0 0
      %942 = vmatprep.subr.bf16.mxu0 0
      %943 = vmatpush1.bf16.msra.mxu0 0
      %944 = vmatprep.subr.bf16.mxu0 0
      %945 = vmatpush1.bf16.msra.mxu0 0
      %946 = vmatprep.mubr.bf16.mxu0 0
      %947 = vmatmul.mubr.bf16.gmra.mrb[0].mxu0 %v899
      %v948 = vpop.f32.mrb[0].mxu0
      %v949 = vadd.f32 %v860, %v948
      %v950 = vpop.f32.mrb[0].mxu0
      %v951 = vpop.f32.mrb[0].mxu0
      %v952 = vadd.f32 %v860, %v951
      %v953 = vpop.f32.mrb[0].mxu0
      %954 = vmatprep.mubr.bf16.mxu0 0
      %955 = vmatmul.mubr.bf16.gmra.mrb[0].mxu0 %v902
      %v956 = vpop.f32.mrb[0].mxu0
      %v957 = vadd.f32 %v860, %v956
      %v958 = vpop.f32.mrb[0].mxu0
      %v959 = vpop.f32.mrb[0].mxu0
      %v960 = vadd.f32 %v860, %v959
      %v961 = vpop.f32.mrb[0].mxu0
      %962 = vmatprep.mubr.bf16.mxu0 0
      %963 = vmatmul.mubr.bf16.gmra.mrb[0].mxu0 %v905
      %v964 = vpop.f32.mrb[0].mxu0
      %v965 = vadd.f32 %v860, %v964
      %v966 = vpop.f32.mrb[0].mxu0
      %v967 = vpop.f32.mrb[0].mxu0
      %v968 = vadd.f32 %v860, %v967
      %v969 = vpop.f32.mrb[0].mxu0
      %970 = vmatprep.mubr.bf16.mxu0 0
      %971 = vmatmul.mubr.bf16.gmra.mrb[0].mxu0 %v908
      %v972 = vpop.f32.mrb[0].mxu0
      %v973 = vadd.f32 %v860, %v972
      %v974 = vpop.f32.mrb[0].mxu0
      %v975 = vpop.f32.mrb[0].mxu0
      %v976 = vadd.f32 %v860, %v975
      %v977 = vpop.f32.mrb[0].mxu0
      %978 = vdwg.mxu0
      %v979 = vmax.f32 %v949, 0.0
      %v980 = vmax.f32 %v952, 0.0
      %v981 = vmax.f32 %v957, 0.0
      %v982 = vmax.f32 %v960, 0.0
      %v983 = vmax.f32 %v965, 0.0
      %v984 = vmax.f32 %v968, 0.0
      %v985 = vmax.f32 %v973, 0.0
      %v986 = vmax.f32 %v976, 0.0
      %v987 = vpack.c.bf16 %v979, %v979
      %v988 = vpack.c.bf16 %v980, %v980
      %v989 = vpack.c.bf16 %v981, %v981
      %v990 = vpack.c.bf16 %v982, %v982
      %v991 = vpack.c.bf16 %v983, %v983
      %v992 = vpack.c.bf16 %v984, %v984
      %v993 = vpack.c.bf16 %v985, %v985
      %v994 = vpack.c.bf16 %v986, %v986
      %vm995 = vcmask 60416
      %996 = vst.msk [vmem:[%s402] sm:$0xf] %vm995, %v987
      %997 = vst.msk [vmem:[%s402 + $0x4] sm:$0xf] %vm995, %v988
      %998 = vst.msk [vmem:[%s402 + $0x8] sm:$0xf] %vm995, %v989
      %999 = vst.msk [vmem:[%s402 + $0xc] sm:$0xf] %vm995, %v990
      %1000 = vst.msk [vmem:[%s402 + $0x10] sm:$0xf] %vm995, %v991
      %1001 = vst.msk [vmem:[%s402 + $0x14] sm:$0xf] %vm995, %v992
      %1002 = vst.msk [vmem:[%s402 + $0x18] sm:$0xf] %vm995, %v993
      %1003 = vst.msk [vmem:[%s402 + $0x1c] sm:$0xf] %vm995, %v994
      %s1004 = smul.u32 8, %s21
      %p1005 = scmp.lt.s32.totalorder %s20, 1
      %s1006 = scalar_select %p1005, %s20, 1
      %p1007 = scmp.lt.s32.totalorder %s1004, 7
      %s1008 = scalar_select %p1007, %s1004, 7
      %s1009 = smul.addr %s1006, 8
      %s1010 = sadd.s32 %s1008, %s1009
      %s1011 = smul.addr %s1010, 4
      %s1012 = scalar_lea.vmem %s5, %s1011
      // Predicated region
      $region41: #{_lambda_.7} parent=39 // pred_check
        %p1013 = pneg %p178
      $region42: #{_lambda_.7} parent=39 // pred_check_branch
        %1015 = sbr.rel (%p1013) target = $region44
      $region43: #{_lambda_.7} parent=39 // pred_region
        %s1016 = smul.u32 8, %s21
      $region44: #{_lambda_.7} parent=39 // pred_fallthru
        _
    $region40: #{_lambda_.7} parent=5 // pred_fallthru
      _
    %p1017 = scmp.le.s32.totalorder 2, %s11
    // Predicated region
    $region45: #{_lambda_.7} parent=5 // pred_check
      %p1018 = pneg %p1017
    $region46: #{_lambda_.7} parent=5 // pred_check_branch
      %1020 = sbr.rel (%p1018) target = $region48
    $region47: #{_lambda_.7} parent=5 // pred_region
      %s1021 = ssub.s32 %s11, 2
      // Predicated region
      $region49: #{_lambda_.7} parent=47 // pred_check
        %p1022 = pneg %p184
      $region50: #{_lambda_.7} parent=47 // pred_check_branch
        %1024 = sbr.rel (%p1022) target = $region52
      $region51: #{_lambda_.7} parent=47 // pred_region
        %s1025 = smul.u32 8, %s23
        %p1026 = scmp.lt.s32.totalorder %s22, 1
        %s1027 = scalar_select %p1026, %s22, 1
        %p1028 = scmp.lt.s32.totalorder %s1025, 7
        %s1029 = scalar_select %p1028, %s1025, 7
        %s1030 = smul.addr %s1027, 8
        %s1031 = sadd.s32 %s1029, %s1030
        %s1032 = smul.addr %s1031, 4
        %s1033 = scalar_lea.vmem %s5, %s1032
      $region52: #{_lambda_.7} parent=47 // pred_fallthru
        _
    $region48: #{_lambda_.7} parent=5 // pred_fallthru
      _
  $region6: #{_lambda_.7} parent=0 // loop_footer
    %s15 = sadd.s32 1, %s11
  $region7: #{_lambda_.7} parent=0 // loop_footer_branch
    %10 = sbr.rel target = $region3
  $region8: #{_lambda_.7} parent=0 // loop_exit
    _

// kernel: _lambda_.8
$region0: #{_lambda_.8}
  #allocation0 [shape = 'u32[]', space=smem, size = 0x4, offset = 0x4, fixed_abs, tag = 'smem constant byte address 0x4 - core index']
  #allocation1 [shape = 'u32[144,128]{1,0:T(1,128)}', space=vmem, size = 0x12000, scoped, tag = 'internal scratch']
  %s0 = inlined_call_operand.vmem [shape: bf16[2,10,10,8], index: 0, kind: input, shape index: {}, may-alias: {0,1,2}]
  %s1 = inlined_call_operand.vmem [shape: bf16[2,10,10,8], index: 1, kind: input, shape index: {}, may-alias: {0,1,2}]
  %s2 = inlined_call_operand.vmem [shape: bf16[2,10,10,8], index: 2, kind: input, shape index: {}, may-alias: {0,1,2}]
  %s3 = inlined_call_operand.vmem [shape: bf16[2,8,8,4], index: 3, kind: input, shape index: {}]
  %s4 = inlined_call_operand.vmem [shape: bf16[76,8], index: 4, kind: input, shape index: {}]
  %s5 = inlined_call_operand.vmem [shape: f32[1,8], index: 5, kind: input, shape index: {}]
  %s6 = inlined_call_operand.vmem [shape: bf16[2,8,8,8], index: 6, kind: output, shape index: {}]
  %s7 = sld [smem:[#allocation0]]
  $region57: #{_lambda_.8} parent=0
    _
  %s9 = ssub.s32 1, %s7
  %s10 = scalar_select 0, %s9, %s7
  loop: start=0, step=1, limit=4
  $region2: #{_lambda_.8} parent=0 // loop_pre_header
    _
  $region3: #{_lambda_.8} parent=0 // loop_header
    %s12 = sphi 0, %s16
    %p13 = scmp.ge.s32.totalorder %s12, 4
    %s19 = sphi 0, %s31
    %s20 = sphi 0, %s27
    %s21 = sphi 0, %s19
    %s22 = sphi 0, %s20
    %s23 = sphi 0, %s21
    %s24 = sphi 0, %s22
    %s36 = sphi 0, %s38
    %s39 = sphi 0, %s36
    %s40 = sphi 0, %s39
    %s56 = sphi 0, %s40
    %s68 = sphi 0, %s70
    %s71 = sphi 0, %s68
    %s72 = sphi 0, %s71
    %s88 = sphi 0, %s72
    %s102 = sphi 0, %s104
    %s105 = sphi 0, %s102
    %s106 = sphi 0, %s105
    %s122 = sphi 0, %s106
    %s130 = sphi 0, %s132
    %s133 = sphi 0, %s130
    %s134 = sphi 0, %s133
    %s150 = sphi 0, %s134
    %s154 = sphi 0, %s154
    %s156 = sphi 0, %s154
    %s157 = sphi 0, %s156
    %s171 = sphi 0, %s157
    %s175 = sphi 0, %s175
    %s177 = sphi 0, %s175
    %s178 = sphi 0, %s177
    %s192 = sphi 0, %s178
    %s200 = sphi 0, %s202
    %s203 = sphi 0, %s200
    %s204 = sphi 0, %s203
    %s220 = sphi 0, %s204
  $region4: #{_lambda_.8} parent=0 // loop_header_branch
    %15 = sbr.rel (%p13) target = $region8
  $region5: #{_lambda_.8} parent=0 // loop_body
    %s17 = ssub.s32 %s12, 1
    %s18 = ssub.s32 %s12, 2
    %s25 = sadd.s32 1, %s20
    %p26 = scmp.ge.s32.totalorder %s25, 1
    %s27 = scalar_select %p26, 0, %s25
    %s28 = sadd.s32 1, %s19
    %s29 = scalar_select %p26, %s28, %s19
    %p30 = scmp.ge.s32.totalorder %s29, 2
    %s31 = scalar_select %p30, 0, %s29
    %s32 = ssub.s32 %s19, %s31
    %s33 = ssub.s32 %s20, %s27
    %s34 = sor.u32 %s32, %s33
    %p35 = scmp.eq.s32.totalorder %s34, 0
    %s37 = sadd.s32 %s36, 1
    %s38 = scalar_select %p35, %s36, %s37
    %p41 = pneg %p35
    %p42 = scmp.eq.s32.totalorder %s12, 1
    %p43 = por %p41, %p42
    %p44 = scmp.ne.s32.totalorder %s36, %s39
    %p45 = scmp.eq.s32.totalorder %s12, 0
    %p46 = por %p44, %p45
    %p47 = scmp.ne.s32.totalorder %s36, %s39
    %p48 = scmp.eq.s32.totalorder %s17, 1
    %p49 = por %p47, %p48
    %p50 = scmp.ne.s32.totalorder %s39, %s40
    %p51 = scmp.eq.s32.totalorder %s17, 0
    %p52 = por %p50, %p51
    %p53 = scmp.ne.s32.totalorder %s39, %s40
    %p54 = scmp.eq.s32.totalorder %s18, 1
    %p55 = por %p53, %p54
    %p57 = scmp.ne.s32.totalorder %s40, %s56
    %p58 = scmp.eq.s32.totalorder %s18, 0
    %p59 = por %p57, %p58
    %s60 = sadd.s32 %s20, 1
    %s61 = smul.u32 %s60, 8
    %s62 = sadd.s32 %s27, 1
    %s63 = smul.u32 %s62, 8
    %s64 = ssub.s32 %s19, %s31
    %s65 = ssub.s32 %s61, %s63
    %s66 = sor.u32 %s64, %s65
    %p67 = scmp.eq.s32.totalorder %s66, 0
    %s69 = sadd.s32 %s68, 1
    %s70 = scalar_select %p67, %s68, %s69
    %p73 = pneg %p67
    %p74 = scmp.eq.s32.totalorder %s12, 1
    %p75 = por %p73, %p74
    %p76 = scmp.ne.s32.totalorder %s68, %s71
    %p77 = scmp.eq.s32.totalorder %s12, 0
    %p78 = por %p76, %p77
    %p79 = scmp.ne.s32.totalorder %s68, %s71
    %p80 = scmp.eq.s32.totalorder %s17, 1
    %p81 = por %p79, %p80
    %p82 = scmp.ne.s32.totalorder %s71, %s72
    %p83 = scmp.eq.s32.totalorder %s17, 0
    %p84 = por %p82, %p83
    %p85 = scmp.ne.s32.totalorder %s71, %s72
    %p86 = scmp.eq.s32.totalorder %s18, 1
    %p87 = por %p85, %p86
    %p89 = scmp.ne.s32.totalorder %s72, %s88
    %p90 = scmp.eq.s32.totalorder %s18, 0
    %p91 = por %p89, %p90
    %s92 = sadd.s32 %s20, 1
    %s93 = smul.u32 %s92, 8
    %s94 = sadd.s32 %s93, 1
    %s95 = sadd.s32 %s27, 1
    %s96 = smul.u32 %s95, 8
    %s97 = sadd.s32 %s96, 1
    %s98 = ssub.s32 %s19, %s31
    %s99 = ssub.s32 %s94, %s97
    %s100 = sor.u32 %s98, %s99
    %p101 = scmp.eq.s32.totalorder %s100, 0
    %s103 = sadd.s32 %s102, 1
    %s104 = scalar_select %p101, %s102, %s103
    %p107 = pneg %p101
    %p108 = scmp.eq.s32.totalorder %s12, 1
    %p109 = por %p107, %p108
    %p110 = scmp.ne.s32.totalorder %s102, %s105
    %p111 = scmp.eq.s32.totalorder %s12, 0
    %p112 = por %p110, %p111
    %p113 = scmp.ne.s32.totalorder %s102, %s105
    %p114 = scmp.eq.s32.totalorder %s17, 1
    %p115 = por %p113, %p114
    %p116 = scmp.ne.s32.totalorder %s105, %s106
    %p117 = scmp.eq.s32.totalorder %s17, 0
    %p118 = por %p116, %p117
    %p119 = scmp.ne.s32.totalorder %s105, %s106
    %p120 = scmp.eq.s32.totalorder %s18, 1
    %p121 = por %p119, %p120
    %p123 = scmp.ne.s32.totalorder %s106, %s122
    %p124 = scmp.eq.s32.totalorder %s18, 0
    %p125 = por %p123, %p124
    %s126 = ssub.s32 %s19, %s31
    %s127 = ssub.s32 %s20, %s27
    %s128 = sor.u32 %s126, %s127
    %p129 = scmp.eq.s32.totalorder %s128, 0
    %s131 = sadd.s32 %s130, 1
    %s132 = scalar_select %p129, %s130, %s131
    %p135 = pneg %p129
    %p136 = scmp.eq.s32.totalorder %s12, 1
    %p137 = por %p135, %p136
    %p138 = scmp.ne.s32.totalorder %s130, %s133
    %p139 = scmp.eq.s32.totalorder %s12, 0
    %p140 = por %p138, %p139
    %p141 = scmp.ne.s32.totalorder %s130, %s133
    %p142 = scmp.eq.s32.totalorder %s17, 1
    %p143 = por %p141, %p142
    %p144 = scmp.ne.s32.totalorder %s133, %s134
    %p145 = scmp.eq.s32.totalorder %s17, 0
    %p146 = por %p144, %p145
    %p147 = scmp.ne.s32.totalorder %s133, %s134
    %p148 = scmp.eq.s32.totalorder %s18, 1
    %p149 = por %p147, %p148
    %p151 = scmp.ne.s32.totalorder %s134, %s150
    %p152 = scmp.eq.s32.totalorder %s18, 0
    %p153 = por %p151, %p152
    %s155 = sadd.s32 %s154, 1
    %p158 = scmp.eq.s32.totalorder %s12, 1
    %p159 = scmp.ne.s32.totalorder %s154, %s156
    %p160 = scmp.eq.s32.totalorder %s12, 0
    %p161 = por %p159, %p160
    %p162 = scmp.ne.s32.totalorder %s154, %s156
    %p163 = scmp.eq.s32.totalorder %s17, 1
    %p164 = por %p162, %p163
    %p165 = scmp.ne.s32.totalorder %s156, %s157
    %p166 = scmp.eq.s32.totalorder %s17, 0
    %p167 = por %p165, %p166
    %p168 = scmp.ne.s32.totalorder %s156, %s157
    %p169 = scmp.eq.s32.totalorder %s18, 1
    %p170 = por %p168, %p169
    %p172 = scmp.ne.s32.totalorder %s157, %s171
    %p173 = scmp.eq.s32.totalorder %s18, 0
    %p174 = por %p172, %p173
    %s176 = sadd.s32 %s175, 1
    %p179 = scmp.eq.s32.totalorder %s12, 1
    %p180 = scmp.ne.s32.totalorder %s175, %s177
    %p181 = scmp.eq.s32.totalorder %s12, 0
    %p182 = por %p180, %p181
    %p183 = scmp.ne.s32.totalorder %s175, %s177
    %p184 = scmp.eq.s32.totalorder %s17, 1
    %p185 = por %p183, %p184
    %p186 = scmp.ne.s32.totalorder %s177, %s178
    %p187 = scmp.eq.s32.totalorder %s17, 0
    %p188 = por %p186, %p187
    %p189 = scmp.ne.s32.totalorder %s177, %s178
    %p190 = scmp.eq.s32.totalorder %s18, 1
    %p191 = por %p189, %p190
    %p193 = scmp.ne.s32.totalorder %s178, %s192
    %p194 = scmp.eq.s32.totalorder %s18, 0
    %p195 = por %p193, %p194
    %s196 = ssub.s32 %s19, %s31
    %s197 = ssub.s32 %s20, %s27
    %s198 = sor.u32 %s196, %s197
    %p199 = scmp.eq.s32.totalorder %s198, 0
    %s201 = sadd.s32 %s200, 1
    %s202 = scalar_select %p199, %s200, %s201
    %p205 = pneg %p199
    %p206 = scmp.eq.s32.totalorder %s12, 1
    %p207 = por %p205, %p206
    %p208 = scmp.ne.s32.totalorder %s200, %s203
    %p209 = scmp.eq.s32.totalorder %s12, 0
    %p210 = por %p208, %p209
    %p211 = scmp.ne.s32.totalorder %s200, %s203
    %p212 = scmp.eq.s32.totalorder %s17, 1
    %p213 = por %p211, %p212
    %p214 = scmp.ne.s32.totalorder %s203, %s204
    %p215 = scmp.eq.s32.totalorder %s17, 0
    %p216 = por %p214, %p215
    %p217 = scmp.ne.s32.totalorder %s203, %s204
    %p218 = scmp.eq.s32.totalorder %s18, 1
    %p219 = por %p217, %p218
    %p221 = scmp.ne.s32.totalorder %s204, %s220
    %p222 = scmp.eq.s32.totalorder %s18, 0
    %p223 = por %p221, %p222
    %p224 = scmp.le.s32.totalorder 1, %s12
    %p225 = scmp.lt.s32.totalorder %s12, 3
    %p226 = pnand %p224, %p225
    %p227 = pneg %p226
    // Predicated region
    $region9: #{_lambda_.8} parent=5 // pred_check
      _
    $region10: #{_lambda_.8} parent=5 // pred_check_branch
      %229 = sbr.rel (%p226) target = $region12
    $region11: #{_lambda_.8} parent=5 // pred_region
      %s230 = ssub.s32 %s12, 1
      // Predicated region
      $region13: #{_lambda_.8} parent=11 // pred_check
        %p231 = pneg %p167
      $region14: #{_lambda_.8} parent=11 // pred_check_branch
        %233 = sbr.rel (%p231) target = $region16
      $region15: #{_lambda_.8} parent=11 // pred_region
        _
      $region16: #{_lambda_.8} parent=11 // pred_fallthru
        _
      // Predicated region
      $region17: #{_lambda_.8} parent=11 // pred_check
        %p234 = pneg %p188
      $region18: #{_lambda_.8} parent=11 // pred_check_branch
        %236 = sbr.rel (%p234) target = $region20
      $region19: #{_lambda_.8} parent=11 // pred_region
        _
      $region20: #{_lambda_.8} parent=11 // pred_fallthru
        _
    $region12: #{_lambda_.8} parent=5 // pred_fallthru
      _
    %p237 = scmp.lt.s32.totalorder %s12, 2
    // Predicated region
    $region21: #{_lambda_.8} parent=5 // pred_check
      %p238 = pneg %p237
    $region22: #{_lambda_.8} parent=5 // pred_check_branch
      %240 = sbr.rel (%p238) target = $region24
    $region23: #{_lambda_.8} parent=5 // pred_region
      // Predicated region
      $region25: #{_lambda_.8} parent=23 // pred_check
        %p241 = pneg %p46
      $region26: #{_lambda_.8} parent=23 // pred_check_branch
        %243 = sbr.rel (%p241) target = $region28
      $region27: #{_lambda_.8} parent=23 // pred_region
        %s244 = smul.u32 8, %s20
        %s245 = ssub.s32 10, %s244
        %p246 = scmp.lt.s32.totalorder %s245, 8
        %s247 = scalar_select %p246, %s245, 8
        %s248 = smul.u32 64, %s247
        %s249 = smul.u32 %s248, 2
        %p250 = scmp.lt.s32.totalorder %s19, 1
        %s251 = scalar_select %p250, %s19, 1
        %p252 = scmp.lt.s32.totalorder %s244, 9
        %s253 = scalar_select %p252, %s244, 9
        %s254 = smul.addr %s253, 2
        %s255 = smul.addr %s251, 20
        %s256 = sadd.s32 %s254, %s255
        %s257 = smul.addr %s256, 4
        %s258 = scalar_lea.vmem %s0, %s257
        %s259 = smul.u32 8, %s20
        %s260 = ssub.s32 10, %s259
        %p261 = scmp.lt.s32.totalorder %s260, 8
        %s262 = scalar_select %p261, %s260, 8
        %s263 = smul.u32 64, %s262
        %s264 = smul.u32 %s263, 2
      $region28: #{_lambda_.8} parent=23 // pred_fallthru
        _
      // Predicated region
      $region29: #{_lambda_.8} parent=23 // pred_check
        %p265 = pneg %p78
      $region30: #{_lambda_.8} parent=23 // pred_check_branch
        %267 = sbr.rel (%p265) target = $region32
      $region31: #{_lambda_.8} parent=23 // pred_region
        %s268 = sadd.s32 %s20, 1
        %s269 = smul.u32 %s268, 8
        %p270 = scmp.lt.s32.totalorder %s19, 1
        %s271 = scalar_select %p270, %s19, 1
        %p272 = scmp.lt.s32.totalorder %s269, 9
        %s273 = scalar_select %p272, %s269, 9
        %s274 = smul.addr %s273, 2
        %s275 = smul.addr %s271, 20
        %s276 = sadd.s32 %s274, %s275
        %s277 = smul.addr %s276, 4
        %s278 = scalar_lea.vmem %s1, %s277
        %s279 = sadd.s32 %s20, 1
        %s280 = smul.u32 %s279, 8
      $region32: #{_lambda_.8} parent=23 // pred_fallthru
        _
      // Predicated region
      $region33: #{_lambda_.8} parent=23 // pred_check
        %p281 = pneg %p112
      $region34: #{_lambda_.8} parent=23 // pred_check_branch
        %283 = sbr.rel (%p281) target = $region36
      $region35: #{_lambda_.8} parent=23 // pred_region
        %s284 = sadd.s32 %s20, 1
        %s285 = smul.u32 %s284, 8
        %s286 = sadd.s32 %s285, 1
        %p287 = scmp.lt.s32.totalorder %s19, 1
        %s288 = scalar_select %p287, %s19, 1
        %p289 = scmp.lt.s32.totalorder %s286, 9
        %s290 = scalar_select %p289, %s286, 9
        %s291 = smul.addr %s290, 2
        %s292 = smul.addr %s288, 20
        %s293 = sadd.s32 %s291, %s292
        %s294 = smul.addr %s293, 4
        %s295 = scalar_lea.vmem %s2, %s294
        %s296 = sadd.s32 %s20, 1
        %s297 = smul.u32 %s296, 8
        %s298 = sadd.s32 %s297, 1
      $region36: #{_lambda_.8} parent=23 // pred_fallthru
        _
      // Predicated region
      $region37: #{_lambda_.8} parent=23 // pred_check
        %p299 = pneg %p140
      $region38: #{_lambda_.8} parent=23 // pred_check_branch
        %301 = sbr.rel (%p299) target = $region40
      $region39: #{_lambda_.8} parent=23 // pred_region
        %s302 = smul.u32 8, %s20
        %p303 = scmp.lt.s32.totalorder %s19, 1
        %s304 = scalar_select %p303, %s19, 1
        %p305 = scmp.lt.s32.totalorder %s302, 7
        %s306 = scalar_select %p305, %s302, 7
        %s307 = smul.addr %s304, 8
        %s308 = sadd.s32 %s306, %s307
        %s309 = smul.addr %s308, 4
        %s310 = scalar_lea.vmem %s3, %s309
        %s311 = smul.u32 8, %s20
      $region40: #{_lambda_.8} parent=23 // pred_fallthru
        _
    $region24: #{_lambda_.8} parent=5 // pred_fallthru
      _
    %p312 = scmp.le.s32.totalorder 1, %s12
    %p313 = scmp.lt.s32.totalorder %s12, 3
    %p314 = pnand %p312, %p313
    %p315 = pneg %p314
    // Predicated region
    $region41: #{_lambda_.8} parent=5 // pred_check
      _
    $region42: #{_lambda_.8} parent=5 // pred_check_branch
      %317 = sbr.rel (%p314) target = $region44
    $region43: #{_lambda_.8} parent=5 // pred_region
      %s318 = ssub.s32 %s12, 1
      %s319 = smul.u32 8, %s22
      %s320 = ssub.s32 10, %s319
      %p321 = scmp.lt.s32.totalorder %s320, 8
      %s322 = scalar_select %p321, %s320, 8
      %s323 = smul.u32 64, %s322
      %s324 = smul.u32 %s323, 2
      %p325 = scmp.lt.s32.totalorder %s21, 1
      %s326 = scalar_select %p325, %s21, 1
      %p327 = scmp.lt.s32.totalorder %s319, 9
      %s328 = scalar_select %p327, %s319, 9
      %s329 = smul.addr %s328, 2
      %s330 = smul.addr %s326, 20
      %s331 = sadd.s32 %s329, %s330
      %s332 = smul.addr %s331, 4
      %s333 = scalar_lea.vmem %s0, %s332
      %p334 = pneg %p52
      %p335 = pneg %p49
      %s336 = sadd.s32 %s22, 1
      %s337 = smul.u32 %s336, 8
      %p338 = scmp.lt.s32.totalorder %s21, 1
      %s339 = scalar_select %p338, %s21, 1
      %p340 = scmp.lt.s32.totalorder %s337, 9
      %s341 = scalar_select %p340, %s337, 9
      %s342 = smul.addr %s341, 2
      %s343 = smul.addr %s339, 20
      %s344 = sadd.s32 %s342, %s343
      %s345 = smul.addr %s344, 4
      %s346 = scalar_lea.vmem %s1, %s345
      %p347 = pneg %p84
      %p348 = pneg %p81
      %s349 = sadd.s32 %s22, 1
      %s350 = smul.u32 %s349, 8
      %s351 = sadd.s32 %s350, 1
      %p352 = scmp.lt.s32.totalorder %s21, 1
      %s353 = scalar_select %p352, %s21, 1
      %p354 = scmp.lt.s32.totalorder %s351, 9
      %s355 = scalar_select %p354, %s351, 9
      %s356 = smul.addr %s355, 2
      %s357 = smul.addr %s353, 20
      %s358 = sadd.s32 %s356, %s357
      %s359 = smul.addr %s358, 4
      %s360 = scalar_lea.vmem %s2, %s359
      %p361 = pneg %p118
      %p362 = pneg %p115
      %s363 = smul.u32 8, %s22
      %p364 = scmp.lt.s32.totalorder %s21, 1
      %s365 = scalar_select %p364, %s21, 1
      %p366 = scmp.lt.s32.totalorder %s363, 7
      %s367 = scalar_select %p366, %s363, 7
      %s368 = smul.addr %s365, 8
      %s369 = sadd.s32 %s367, %s368
      %s370 = smul.addr %s369, 4
      %s371 = scalar_lea.vmem %s3, %s370
      %p372 = pneg %p146
      %p373 = pneg %p143
      %p374 = pneg %p167
      %p375 = pneg %p164
      %p376 = pneg %p188
      %p377 = pneg %p185
      %p378 = pneg %p216
      %p379 = pneg %p213
      %s380 = smul.u32 8, %s22
      %p381 = scmp.lt.s32.totalorder %s21, 1
      %s382 = scalar_select %p381, %s21, 1
      %p383 = scmp.lt.s32.totalorder %s380, 7
      %s384 = scalar_select %p383, %s380, 7
      %s385 = smul.addr %s382, 8
      %s386 = sadd.s32 %s384, %s385
      %s387 = smul.addr %s386, 4
      %s388 = scalar_lea.vmem %s6, %s387
      %s389 = smul.u32 8, %s22
      %s390 = ssub.s32 10, %s389
      %p391 = scmp.lt.s32.totalorder %s390, 8
      %s392 = scalar_select %p391, %s390, 8
      %s393 = smul.u32 64, %s392
      %s394 = smul.u32 %s393, 2
      %p395 = scmp.lt.s32.totalorder %s21, 1
      %s396 = scalar_select %p395, %s21, 1
      %p397 = scmp.lt.s32.totalorder %s389, 9
      %s398 = scalar_select %p397, %s389, 9
      %s399 = smul.addr %s398, 2
      %s400 = smul.addr %s396, 20
      %s401 = sadd.s32 %s399, %s400
      %s402 = smul.addr %s401, 4
      %s403 = scalar_lea.vmem %s0, %s402
      %s404 = smul.u32 8, %s22
      %s405 = ssub.s32 10, %s404
      %p406 = scmp.lt.s32.totalorder %s405, 8
      %s407 = scalar_select %p406, %s405, 8
      %s408 = smul.u32 64, %s407
      %s409 = smul.u32 %s408, 2
      %s410 = sadd.s32 %s22, 1
      %s411 = smul.u32 %s410, 8
      %p412 = scmp.lt.s32.totalorder %s21, 1
      %s413 = scalar_select %p412, %s21, 1
      %p414 = scmp.lt.s32.totalorder %s411, 9
      %s415 = scalar_select %p414, %s411, 9
      %s416 = smul.addr %s415, 2
      %s417 = smul.addr %s413, 20
      %s418 = sadd.s32 %s416, %s417
      %s419 = smul.addr %s418, 4
      %s420 = scalar_lea.vmem %s1, %s419
      %s421 = sadd.s32 %s22, 1
      %s422 = smul.u32 %s421, 8
      %s423 = sadd.s32 %s22, 1
      %s424 = smul.u32 %s423, 8
      %s425 = sadd.s32 %s424, 1
      %p426 = scmp.lt.s32.totalorder %s21, 1
      %s427 = scalar_select %p426, %s21, 1
      %p428 = scmp.lt.s32.totalorder %s425, 9
      %s429 = scalar_select %p428, %s425, 9
      %s430 = smul.addr %s429, 2
      %s431 = smul.addr %s427, 20
      %s432 = sadd.s32 %s430, %s431
      %s433 = smul.addr %s432, 4
      %s434 = scalar_lea.vmem %s2, %s433
      %s435 = sadd.s32 %s22, 1
      %s436 = smul.u32 %s435, 8
      %s437 = sadd.s32 %s436, 1
      %s438 = smul.u32 8, %s22
      %p439 = scmp.lt.s32.totalorder %s21, 1
      %s440 = scalar_select %p439, %s21, 1
      %p441 = scmp.lt.s32.totalorder %s438, 7
      %s442 = scalar_select %p441, %s438, 7
      %s443 = smul.addr %s440, 8
      %s444 = sadd.s32 %s442, %s443
      %s445 = smul.addr %s444, 4
      %s446 = scalar_lea.vmem %s3, %s445
      %s447 = smul.u32 8, %s22
      %s448 = smul.u32 8, %s22
      %p449 = scmp.lt.s32.totalorder %s21, 1
      %s450 = scalar_select %p449, %s21, 1
      %p451 = scmp.lt.s32.totalorder %s448, 7
      %s452 = scalar_select %p451, %s448, 7
      %s453 = smul.addr %s450, 8
      %s454 = sadd.s32 %s452, %s453
      %s455 = smul.addr %s454, 4
      %s456 = scalar_lea.vmem %s6, %s455
      %s457 = smul.u32 8, %s22
      %v459 = vld [vmem:[%s403] sm:$0xf]
      %v460 = vld [vmem:[%s403 + $0x4] sm:$0x1]
      %v461 = vld [vmem:[%s403 + $0x8] sm:$0xf]
      %v462 = vld [vmem:[%s403 + $0xc] sm:$0x1]
      %v463 = vld [vmem:[%s403 + $0x10] sm:$0xf]
      %v464 = vld [vmem:[%s403 + $0x14] sm:$0x1]
      %v465 = vld [vmem:[%s403 + $0x18] sm:$0xf]
      %v466 = vld [vmem:[%s403 + $0x1c] sm:$0x1]
      %v467 = vld [vmem:[%s403 + $0x20] sm:$0xf]
      %v468 = vld [vmem:[%s403 + $0x24] sm:$0x1]
      %v469 = vld [vmem:[%s403 + $0x28] sm:$0xf]
      %v470 = vld [vmem:[%s403 + $0x2c] sm:$0x1]
      %v471 = vld [vmem:[%s403 + $0x30] sm:$0xf]
      %v472 = vld [vmem:[%s403 + $0x34] sm:$0x1]
      %v473 = vld [vmem:[%s403 + $0x38] sm:$0xf]
      %v474 = vld [vmem:[%s403 + $0x3c] sm:$0x1]
      %v475 = vld [vmem:[%s420] sm:$0xf]
      %v476 = vld [vmem:[%s420 + $0x4] sm:$0x1]
      %v477 = vld [vmem:[%s434] sm:$0xf]
      %v478 = vld [vmem:[%s434 + $0x4] sm:$0x1]
      %v479 = vld [vmem:[%s446] sm:$0xf]
      %v480 = vld [vmem:[%s446 + $0x4] sm:$0xf]
      %v481 = vld [vmem:[%s446 + $0x8] sm:$0xf]
      %v482 = vld [vmem:[%s446 + $0xc] sm:$0xf]
      %v483 = vld [vmem:[%s446 + $0x10] sm:$0xf]
      %v484 = vld [vmem:[%s446 + $0x14] sm:$0xf]
      %v485 = vld [vmem:[%s446 + $0x18] sm:$0xf]
      %v486 = vld [vmem:[%s446 + $0x1c] sm:$0xf]
      %v503 = vunpack.c.l.b16 %v459
      %v504 = vunpack.c.l.b16 %v460
      %v505 = vunpack.c.l.b16 %v461
      %v506 = vunpack.c.l.b16 %v462
      %v507 = vunpack.c.l.b16 %v463
      %v508 = vunpack.c.l.b16 %v464
      %v509 = vunpack.c.l.b16 %v465
      %v510 = vunpack.c.l.b16 %v466
      %v511 = vunpack.c.l.b16 %v467
      %v512 = vunpack.c.l.b16 %v468
      %v513 = vunpack.c.l.b16 %v469
      %v514 = vunpack.c.l.b16 %v470
      %v515 = vunpack.c.l.b16 %v471
      %v516 = vunpack.c.l.b16 %v472
      %v517 = vunpack.c.l.b16 %v473
      %v518 = vunpack.c.l.b16 %v474
      %v519 = vpack.c.b16 %v504, %v503
      %v520 = vpack.c.b16 %v506, %v505
      %v521 = vpack.c.b16 %v508, %v507
      %v522 = vpack.c.b16 %v510, %v509
      %v523 = vpack.c.b16 %v512, %v511
      %v524 = vpack.c.b16 %v514, %v513
      %v525 = vpack.c.b16 %v516, %v515
      %v526 = vpack.c.b16 %v518, %v517
      %v528 = vshrl.u32 %v519, 16
      %v530 = vshll.u32 %v519, 16
      %v532 = vrot.slane %v530, 1
      %v533 = vor.u32 %v528, %v532
      %v535 = vshrl.u32 %v520, 16
      %v537 = vshll.u32 %v520, 16
      %v539 = vrot.slane %v537, 1
      %v540 = vor.u32 %v535, %v539
      %v542 = vshrl.u32 %v521, 16
      %v544 = vshll.u32 %v521, 16
      %v546 = vrot.slane %v544, 1
      %v547 = vor.u32 %v542, %v546
      %v549 = vshrl.u32 %v522, 16
      %v551 = vshll.u32 %v522, 16
      %v553 = vrot.slane %v551, 1
      %v554 = vor.u32 %v549, %v553
      %v556 = vshrl.u32 %v523, 16
      %v558 = vshll.u32 %v523, 16
      %v560 = vrot.slane %v558, 1
      %v561 = vor.u32 %v556, %v560
      %v563 = vshrl.u32 %v524, 16
      %v565 = vshll.u32 %v524, 16
      %v567 = vrot.slane %v565, 1
      %v568 = vor.u32 %v563, %v567
      %v570 = vshrl.u32 %v525, 16
      %v572 = vshll.u32 %v525, 16
      %v574 = vrot.slane %v572, 1
      %v575 = vor.u32 %v570, %v574
      %v577 = vshrl.u32 %v526, 16
      %v579 = vshll.u32 %v526, 16
      %v581 = vrot.slane %v579, 1
      %v582 = vor.u32 %v577, %v581
      %583 = vrot.lane.b32.xlu0 %v533, 8
      %v584 = vpop.permute.xlu0 %583
      %585 = vrot.lane.b32.xlu0 %v540, 8
      %v586 = vpop.permute.xlu0 %585
      %587 = vrot.lane.b32.xlu0 %v547, 8
      %v588 = vpop.permute.xlu0 %587
      %589 = vrot.lane.b32.xlu0 %v554, 8
      %v590 = vpop.permute.xlu0 %589
      %591 = vrot.lane.b32.xlu0 %v561, 8
      %v592 = vpop.permute.xlu0 %591
      %593 = vrot.lane.b32.xlu0 %v568, 8
      %v594 = vpop.permute.xlu0 %593
      %595 = vrot.lane.b32.xlu0 %v575, 8
      %v596 = vpop.permute.xlu0 %595
      %597 = vrot.lane.b32.xlu0 %v582, 8
      %v598 = vpop.permute.xlu0 %597
      %v599 = vrot.slane %v519, 1
      %v600 = vrot.slane %v520, 1
      %v601 = vrot.slane %v521, 1
      %v602 = vrot.slane %v522, 1
      %v603 = vrot.slane %v523, 1
      %v604 = vrot.slane %v524, 1
      %v605 = vrot.slane %v525, 1
      %v606 = vrot.slane %v526, 1
      %607 = vrot.lane.b32.xlu0 %v599, 16
      %v608 = vpop.permute.xlu0 %607
      %609 = vrot.lane.b32.xlu0 %v600, 16
      %v610 = vpop.permute.xlu0 %609
      %611 = vrot.lane.b32.xlu0 %v601, 16
      %v612 = vpop.permute.xlu0 %611
      %613 = vrot.lane.b32.xlu0 %v602, 16
      %v614 = vpop.permute.xlu0 %613
      %615 = vrot.lane.b32.xlu0 %v603, 16
      %v616 = vpop.permute.xlu0 %615
      %617 = vrot.lane.b32.xlu0 %v604, 16
      %v618 = vpop.permute.xlu0 %617
      %619 = vrot.lane.b32.xlu0 %v605, 16
      %v620 = vpop.permute.xlu0 %619
      %621 = vrot.lane.b32.xlu0 %v606, 16
      %v622 = vpop.permute.xlu0 %621
      %v624 = vunpack.c.l.b16 %v475
      %v625 = vpack.c.b16 %v505, %v505
      %v626 = vpack.c.b16 %v507, %v507
      %v627 = vpack.c.b16 %v509, %v509
      %v628 = vpack.c.b16 %v511, %v511
      %v629 = vpack.c.b16 %v513, %v513
      %v630 = vpack.c.b16 %v515, %v515
      %v631 = vpack.c.b16 %v517, %v517
      %v632 = vpack.c.b16 %v624, %v624
      %633 = vrot.lane.b32.xlu0 %v625, 24
      %v634 = vpop.permute.xlu0 %633
      %635 = vrot.lane.b32.xlu0 %v626, 24
      %v636 = vpop.permute.xlu0 %635
      %637 = vrot.lane.b32.xlu0 %v627, 24
      %v638 = vpop.permute.xlu0 %637
      %639 = vrot.lane.b32.xlu0 %v628, 24
      %v640 = vpop.permute.xlu0 %639
      %641 = vrot.lane.b32.xlu0 %v629, 24
      %v642 = vpop.permute.xlu0 %641
      %643 = vrot.lane.b32.xlu0 %v630, 24
      %v644 = vpop.permute.xlu0 %643
      %645 = vrot.lane.b32.xlu0 %v631, 24
      %v646 = vpop.permute.xlu0 %645
      %647 = vrot.lane.b32.xlu0 %v632, 24
      %v648 = vpop.permute.xlu0 %647
      %v650 = vunpack.c.l.b16 %v476
      %v651 = vpack.c.b16 %v650, %v624
      %v653 = vshrl.u32 %v651, 16
      %v655 = vshll.u32 %v651, 16
      %v657 = vrot.slane %v655, 1
      %v658 = vor.u32 %v653, %v657
      %659 = vrot.lane.b32.xlu0 %v540, 32
      %v660 = vpop.permute.xlu0 %659
      %661 = vrot.lane.b32.xlu0 %v547, 32
      %v662 = vpop.permute.xlu0 %661
      %663 = vrot.lane.b32.xlu0 %v554, 32
      %v664 = vpop.permute.xlu0 %663
      %665 = vrot.lane.b32.xlu0 %v561, 32
      %v666 = vpop.permute.xlu0 %665
      %667 = vrot.lane.b32.xlu0 %v568, 32
      %v668 = vpop.permute.xlu0 %667
      %669 = vrot.lane.b32.xlu0 %v575, 32
      %v670 = vpop.permute.xlu0 %669
      %671 = vrot.lane.b32.xlu0 %v582, 32
      %v672 = vpop.permute.xlu0 %671
      %673 = vrot.lane.b32.xlu0 %v658, 32
      %v674 = vpop.permute.xlu0 %673
      %v675 = vrot.slane %v651, 1
      %676 = vrot.lane.b32.xlu0 %v600, 40
      %v677 = vpop.permute.xlu0 %676
      %678 = vrot.lane.b32.xlu0 %v601, 40
      %v679 = vpop.permute.xlu0 %678
      %680 = vrot.lane.b32.xlu0 %v602, 40
      %v681 = vpop.permute.xlu0 %680
      %682 = vrot.lane.b32.xlu0 %v603, 40
      %v683 = vpop.permute.xlu0 %682
      %684 = vrot.lane.b32.xlu0 %v604, 40
      %v685 = vpop.permute.xlu0 %684
      %686 = vrot.lane.b32.xlu0 %v605, 40
      %v687 = vpop.permute.xlu0 %686
      %688 = vrot.lane.b32.xlu0 %v606, 40
      %v689 = vpop.permute.xlu0 %688
      %690 = vrot.lane.b32.xlu0 %v675, 40
      %v691 = vpop.permute.xlu0 %690
      %v693 = vunpack.c.l.b16 %v477
      %v694 = vpack.c.b16 %v693, %v693
      %695 = vrot.lane.b32.xlu0 %v626, 48
      %v696 = vpop.permute.xlu0 %695
      %697 = vrot.lane.b32.xlu0 %v627, 48
      %v698 = vpop.permute.xlu0 %697
      %699 = vrot.lane.b32.xlu0 %v628, 48
      %v700 = vpop.permute.xlu0 %699
      %701 = vrot.lane.b32.xlu0 %v629, 48
      %v702 = vpop.permute.xlu0 %701
      %703 = vrot.lane.b32.xlu0 %v630, 48
      %v704 = vpop.permute.xlu0 %703
      %705 = vrot.lane.b32.xlu0 %v631, 48
      %v706 = vpop.permute.xlu0 %705
      %707 = vrot.lane.b32.xlu0 %v632, 48
      %v708 = vpop.permute.xlu0 %707
      %709 = vrot.lane.b32.xlu0 %v694, 48
      %v710 = vpop.permute.xlu0 %709
      %v712 = vunpack.c.l.b16 %v478
      %v713 = vpack.c.b16 %v712, %v693
      %v715 = vshrl.u32 %v713, 16
      %v717 = vshll.u32 %v713, 16
      %v719 = vrot.slane %v717, 1
      %v720 = vor.u32 %v715, %v719
      %721 = vrot.lane.b32.xlu0 %v547, 56
      %v722 = vpop.permute.xlu0 %721
      %723 = vrot.lane.b32.xlu0 %v554, 56
      %v724 = vpop.permute.xlu0 %723
      %725 = vrot.lane.b32.xlu0 %v561, 56
      %v726 = vpop.permute.xlu0 %725
      %727 = vrot.lane.b32.xlu0 %v568, 56
      %v728 = vpop.permute.xlu0 %727
      %729 = vrot.lane.b32.xlu0 %v575, 56
      %v730 = vpop.permute.xlu0 %729
      %731 = vrot.lane.b32.xlu0 %v582, 56
      %v732 = vpop.permute.xlu0 %731
      %733 = vrot.lane.b32.xlu0 %v658, 56
      %v734 = vpop.permute.xlu0 %733
      %735 = vrot.lane.b32.xlu0 %v720, 56
      %v736 = vpop.permute.xlu0 %735
      %v737 = vrot.slane %v713, 1
      %738 = vrot.lane.b32.xlu0 %v601, 64
      %v739 = vpop.permute.xlu0 %738
      %740 = vrot.lane.b32.xlu0 %v602, 64
      %v741 = vpop.permute.xlu0 %740
      %742 = vrot.lane.b32.xlu0 %v603, 64
      %v743 = vpop.permute.xlu0 %742
      %744 = vrot.lane.b32.xlu0 %v604, 64
      %v745 = vpop.permute.xlu0 %744
      %746 = vrot.lane.b32.xlu0 %v605, 64
      %v747 = vpop.permute.xlu0 %746
      %748 = vrot.lane.b32.xlu0 %v606, 64
      %v749 = vpop.permute.xlu0 %748
      %750 = vrot.lane.b32.xlu0 %v675, 64
      %v751 = vpop.permute.xlu0 %750
      %752 = vrot.lane.b32.xlu0 %v737, 64
      %v753 = vpop.permute.xlu0 %752
      %v762 = vunpack.c.l.b16 %v479
      %v763 = vunpack.c.l.b16 %v480
      %v764 = vunpack.c.l.b16 %v481
      %v765 = vunpack.c.l.b16 %v482
      %v766 = vunpack.c.l.b16 %v483
      %v767 = vunpack.c.l.b16 %v484
      %v768 = vunpack.c.l.b16 %v485
      %v769 = vunpack.c.l.b16 %v486
      %v770 = vpack.c.b16 %v762, %v762
      %v771 = vpack.c.b16 %v763, %v763
      %v772 = vpack.c.b16 %v764, %v764
      %v773 = vpack.c.b16 %v765, %v765
      %v774 = vpack.c.b16 %v766, %v766
      %v775 = vpack.c.b16 %v767, %v767
      %v776 = vpack.c.b16 %v768, %v768
      %v777 = vpack.c.b16 %v769, %v769
      %778 = vrot.lane.b32.xlu0 %v770, 72
      %v779 = vpop.permute.xlu0 %778
      %780 = vrot.lane.b32.xlu0 %v771, 72
      %v781 = vpop.permute.xlu0 %780
      %782 = vrot.lane.b32.xlu0 %v772, 72
      %v783 = vpop.permute.xlu0 %782
      %784 = vrot.lane.b32.xlu0 %v773, 72
      %v785 = vpop.permute.xlu0 %784
      %786 = vrot.lane.b32.xlu0 %v774, 72
      %v787 = vpop.permute.xlu0 %786
      %788 = vrot.lane.b32.xlu0 %v775, 72
      %v789 = vpop.permute.xlu0 %788
      %790 = vrot.lane.b32.xlu0 %v776, 72
      %v791 = vpop.permute.xlu0 %790
      %792 = vrot.lane.b32.xlu0 %v777, 72
      %v793 = vpop.permute.xlu0 %792
      %vm794 = vcmask 64512
      %v797 = vsel %vm794, %v459, %v584
      %v800 = vsel %vm794, %v461, %v586
      %v803 = vsel %vm794, %v463, %v588
      %v806 = vsel %vm794, %v465, %v590
      %v809 = vsel %vm794, %v467, %v592
      %v812 = vsel %vm794, %v469, %v594
      %v815 = vsel %vm794, %v471, %v596
      %v818 = vsel %vm794, %v473, %v598
      %vm819 = vcmask 130048
      %v821 = vsel %vm819, %v797, %v608
      %v823 = vsel %vm819, %v800, %v610
      %v825 = vsel %vm819, %v803, %v612
      %v827 = vsel %vm819, %v806, %v614
      %v829 = vsel %vm819, %v809, %v616
      %v831 = vsel %vm819, %v812, %v618
      %v833 = vsel %vm819, %v815, %v620
      %v835 = vsel %vm819, %v818, %v622
      %vm836 = vcmask 195584
      %v838 = vsel %vm836, %v821, %v634
      %v840 = vsel %vm836, %v823, %v636
      %v842 = vsel %vm836, %v825, %v638
      %v844 = vsel %vm836, %v827, %v640
      %v846 = vsel %vm836, %v829, %v642
      %v848 = vsel %vm836, %v831, %v644
      %v850 = vsel %vm836, %v833, %v646
      %v852 = vsel %vm836, %v835, %v648
      %vm853 = vcmask 261120
      %v855 = vsel %vm853, %v838, %v660
      %v857 = vsel %vm853, %v840, %v662
      %v859 = vsel %vm853, %v842, %v664
      %v861 = vsel %vm853, %v844, %v666
      %v863 = vsel %vm853, %v846, %v668
      %v865 = vsel %vm853, %v848, %v670
      %v867 = vsel %vm853, %v850, %v672
      %v869 = vsel %vm853, %v852, %v674
      %vm870 = vcmask 326656
      %v872 = vsel %vm870, %v855, %v677
      %v874 = vsel %vm870, %v857, %v679
      %v876 = vsel %vm870, %v859, %v681
      %v878 = vsel %vm870, %v861, %v683
      %v880 = vsel %vm870, %v863, %v685
      %v882 = vsel %vm870, %v865, %v687
      %v884 = vsel %vm870, %v867, %v689
      %v886 = vsel %vm870, %v869, %v691
      %vm887 = vcmask 392192
      %v889 = vsel %vm887, %v872, %v696
      %v891 = vsel %vm887, %v874, %v698
      %v893 = vsel %vm887, %v876, %v700
      %v895 = vsel %vm887, %v878, %v702
      %v897 = vsel %vm887, %v880, %v704
      %v899 = vsel %vm887, %v882, %v706
      %v901 = vsel %vm887, %v884, %v708
      %v903 = vsel %vm887, %v886, %v710
      %vm904 = vcmask 457728
      %v906 = vsel %vm904, %v889, %v722
      %v908 = vsel %vm904, %v891, %v724
      %v910 = vsel %vm904, %v893, %v726
      %v912 = vsel %vm904, %v895, %v728
      %v914 = vsel %vm904, %v897, %v730
      %v916 = vsel %vm904, %v899, %v732
      %v918 = vsel %vm904, %v901, %v734
      %v920 = vsel %vm904, %v903, %v736
      %vm921 = vcmask 523264
      %v923 = vsel %vm921, %v906, %v739
      %v925 = vsel %vm921, %v908, %v741
      %v927 = vsel %vm921, %v910, %v743
      %v929 = vsel %vm921, %v912, %v745
      %v931 = vsel %vm921, %v914, %v747
      %v933 = vsel %vm921, %v916, %v749
      %v935 = vsel %vm921, %v918, %v751
      %v937 = vsel %vm921, %v920, %v753
      %vm938 = vcmask 588800
      %v940 = vsel %vm938, %v923, %v779
      %v942 = vsel %vm938, %v925, %v781
      %v944 = vsel %vm938, %v927, %v783
      %v946 = vsel %vm938, %v929, %v785
      %v948 = vsel %vm938, %v931, %v787
      %v950 = vsel %vm938, %v933, %v789
      %v952 = vsel %vm938, %v935, %v791
      %v954 = vsel %vm938, %v937, %v793
      %v955 = vld [vmem:[%s4] sm:$0xf]
      %v956 = vld [vmem:[%s4 + $0x4] sm:$0xf]
      %v957 = vld [vmem:[%s4 + $0x8] sm:$0xf]
      %v958 = vld [vmem:[%s4 + $0xc] sm:$0xf]
      %v959 = vld [vmem:[%s4 + $0x10] sm:$0xf]
      %v960 = vld [vmem:[%s4 + $0x14] sm:$0xf]
      %v961 = vld [vmem:[%s4 + $0x18] sm:$0xf]
      %v962 = vld [vmem:[%s4 + $0x1c] sm:$0xf]
      %v963 = vld [vmem:[%s4 + $0x20] sm:$0xf]
      %v964 = vld [vmem:[%s4 + $0x24] sm:$0x3]
      %v965 = vld [vmem:[%s5] sm:$0x1]
      %v967 = vlaneseq
      %v968 = vshrl.u32 %v967, 7
      %v969 = vsub.s32 0, %v968
      %v970 = vrot.slane %v965, %v969
      %v980 = vunpack.c.l.b16 %v940
      %v981 = vunpack.c.l.b16 %v942
      %v982 = vunpack.c.l.b16 %v944
      %v983 = vunpack.c.l.b16 %v946
      %v984 = vunpack.c.l.b16 %v948
      %v985 = vunpack.c.l.b16 %v950
      %v986 = vunpack.c.l.b16 %v952
      %v987 = vunpack.c.l.b16 %v954
      %v988 = vpack.c.b16 %v981, %v980
      %v989 = vpack.c.b16 %v983, %v982
      %v990 = vpack.c.b16 %v985, %v984
      %v991 = vpack.c.b16 %v987, %v986
      %v1002 = vunpack.c.l.b16 %v955
      %v1003 = vunpack.c.l.b16 %v956
      %v1004 = vunpack.c.l.b16 %v957
      %v1005 = vunpack.c.l.b16 %v958
      %v1006 = vunpack.c.l.b16 %v959
      %v1007 = vunpack.c.l.b16 %v960
      %v1008 = vunpack.c.l.b16 %v961
      %v1009 = vunpack.c.l.b16 %v962
      %v1010 = vunpack.c.l.b16 %v963
      %v1011 = vunpack.c.l.b16 %v964
      %v1012 = vpack.c.b16 %v1003, %v1002
      %v1013 = vpack.c.b16 %v1005, %v1004
      %v1014 = vpack.c.b16 %v1007, %v1006
      %v1015 = vpack.c.b16 %v1009, %v1008
      %v1016 = vpack.c.b16 %v1011, %v1010
      %vm1021 = vcmask 621568
      %v1023 = vsel %vm1021, %v988, 0
      %v1026 = vsel %vm1021, %v989, 0
      %v1029 = vsel %vm1021, %v990, 0
      %v1032 = vsel %vm1021, %v991, 0
      %vm1034 = vcmask 1045504
      %v1036 = vsel %vm1034, %v1016, 0
      %1038 = vmatprep.subr.bf16.mxu0 0
      %1039 = vmatpush1.bf16.msra.mxu0 %v1012
      %1040 = vmatprep.subr.bf16.mxu0 0
      %1041 = vmatpush1.bf16.msra.mxu0 %v1013
      %1042 = vmatprep.subr.bf16.mxu0 0
      %1043 = vmatpush1.bf16.msra.mxu0 %v1014
      %1044 = vmatprep.subr.bf16.mxu0 0
      %1045 = vmatpush1.bf16.msra.mxu0 %v1015
      %1046 = vmatprep.subr.bf16.mxu0 0
      %1047 = vmatpush1.bf16.msra.mxu0 %v1036
      %1048 = vmatprep.subr.bf16.mxu0 0
      %1049 = vmatpush1.bf16.msra.mxu0 0
      %1050 = vmatprep.subr.bf16.mxu0 0
      %1051 = vmatpush1.bf16.msra.mxu0 0
      %1052 = vmatprep.subr.bf16.mxu0 0
      %1053 = vmatpush1.bf16.msra.mxu0 0
      %1054 = vmatprep.subr.bf16.mxu0 0
      %1055 = vmatpush1.bf16.msra.mxu0 0
      %1056 = vmatprep.subr.bf16.mxu0 0
      %1057 = vmatpush1.bf16.msra.mxu0 0
      %1058 = vmatprep.subr.bf16.mxu0 0
      %1059 = vmatpush1.bf16.msra.mxu0 0
      %1060 = vmatprep.subr.bf16.mxu0 0
      %1061 = vmatpush1.bf16.msra.mxu0 0
      %1062 = vmatprep.subr.bf16.mxu0 0
      %1063 = vmatpush1.bf16.msra.mxu0 0
      %1064 = vmatprep.subr.bf16.mxu0 0
      %1065 = vmatpush1.bf16.msra.mxu0 0
      %1066 = vmatprep.subr.bf16.mxu0 0
      %1067 = vmatpush1.bf16.msra.mxu0 0
      %1068 = vmatprep.subr.bf16.mxu0 0
      %1069 = vmatpush1.bf16.msra.mxu0 0
      %1070 = vmatprep.mubr.bf16.mxu0 0
      %1071 = vmatmul.mubr.bf16.gmra.mrb[0].mxu0 %v1023
      %v1072 = vpop.f32.mrb[0].mxu0
      %v1073 = vadd.f32 %v970, %v1072
      %v1074 = vpop.f32.mrb[0].mxu0
      %v1075 = vpop.f32.mrb[0].mxu0
      %v1076 = vadd.f32 %v970, %v1075
      %v1077 = vpop.f32.mrb[0].mxu0
      %1078 = vmatprep.mubr.bf16.mxu0 0
      %1079 = vmatmul.mubr.bf16.gmra.mrb[0].mxu0 %v1026
      %v1080 = vpop.f32.mrb[0].mxu0
      %v1081 = vadd.f32 %v970, %v1080
      %v1082 = vpop.f32.mrb[0].mxu0
      %v1083 = vpop.f32.mrb[0].mxu0
      %v1084 = vadd.f32 %v970, %v1083
      %v1085 = vpop.f32.mrb[0].mxu0
      %1086 = vmatprep.mubr.bf16.mxu0 0
      %1087 = vmatmul.mubr.bf16.gmra.mrb[0].mxu0 %v1029
      %v1088 = vpop.f32.mrb[0].mxu0
      %v1089 = vadd.f32 %v970, %v1088
      %v1090 = vpop.f32.mrb[0].mxu0
      %v1091 = vpop.f32.mrb[0].mxu0
      %v1092 = vadd.f32 %v970, %v1091
      %v1093 = vpop.f32.mrb[0].mxu0
      %1094 = vmatprep.mubr.bf16.mxu0 0
      %1095 = vmatmul.mubr.bf16.gmra.mrb[0].mxu0 %v1032
      %v1096 = vpop.f32.mrb[0].mxu0
      %v1097 = vadd.f32 %v970, %v1096
      %v1098 = vpop.f32.mrb[0].mxu0
      %v1099 = vpop.f32.mrb[0].mxu0
      %v1100 = vadd.f32 %v970, %v1099
      %v1101 = vpop.f32.mrb[0].mxu0
      %1102 = vdwg.mxu0
      %v1103 = vmax.f32 %v1073, 0.0
      %v1104 = vmax.f32 %v1076, 0.0
      %v1105 = vmax.f32 %v1081, 0.0
      %v1106 = vmax.f32 %v1084, 0.0
      %v1107 = vmax.f32 %v1089, 0.0
      %v1108 = vmax.f32 %v1092, 0.0
      %v1109 = vmax.f32 %v1097, 0.0
      %v1110 = vmax.f32 %v1100, 0.0
      %v1111 = vpack.c.bf16 %v1103, %v1103
      %v1112 = vpack.c.bf16 %v1104, %v1104
      %v1113 = vpack.c.bf16 %v1105, %v1105
      %v1114 = vpack.c.bf16 %v1106, %v1106
      %v1115 = vpack.c.bf16 %v1107, %v1107
      %v1116 = vpack.c.bf16 %v1108, %v1108
      %v1117 = vpack.c.bf16 %v1109, %v1109
      %v1118 = vpack.c.bf16 %v1110, %v1110
      %vm1119 = vcmask 60416
      %1120 = vst.msk [vmem:[%s456] sm:$0xf] %vm1119, %v1111
      %1121 = vst.msk [vmem:[%s456 + $0x4] sm:$0xf] %vm1119, %v1112
      %1122 = vst.msk [vmem:[%s456 + $0x8] sm:$0xf] %vm1119, %v1113
      %1123 = vst.msk [vmem:[%s456 + $0xc] sm:$0xf] %vm1119, %v1114
      %1124 = vst.msk [vmem:[%s456 + $0x10] sm:$0xf] %vm1119, %v1115
      %1125 = vst.msk [vmem:[%s456 + $0x14] sm:$0xf] %vm1119, %v1116
      %1126 = vst.msk [vmem:[%s456 + $0x18] sm:$0xf] %vm1119, %v1117
      %1127 = vst.msk [vmem:[%s456 + $0x1c] sm:$0xf] %vm1119, %v1118
      %s1128 = smul.u32 8, %s22
      %p1129 = scmp.lt.s32.totalorder %s21, 1
      %s1130 = scalar_select %p1129, %s21, 1
      %p1131 = scmp.lt.s32.totalorder %s1128, 7
      %s1132 = scalar_select %p1131, %s1128, 7
      %s1133 = smul.addr %s1130, 8
      %s1134 = sadd.s32 %s1132, %s1133
      %s1135 = smul.addr %s1134, 4
      %s1136 = scalar_lea.vmem %s6, %s1135
      // Predicated region
      $region45: #{_lambda_.8} parent=43 // pred_check
        %p1137 = pneg %p213
      $region46: #{_lambda_.8} parent=43 // pred_check_branch
        %1139 = sbr.rel (%p1137) target = $region48
      $region47: #{_lambda_.8} parent=43 // pred_region
        %s1140 = smul.u32 8, %s22
      $region48: #{_lambda_.8} parent=43 // pred_fallthru
        _
    $region44: #{_lambda_.8} parent=5 // pred_fallthru
      _
    %p1141 = scmp.le.s32.totalorder 2, %s12
    // Predicated region
    $region49: #{_lambda_.8} parent=5 // pred_check
      %p1142 = pneg %p1141
    $region50: #{_lambda_.8} parent=5 // pred_check_branch
      %1144 = sbr.rel (%p1142) target = $region52
    $region51: #{_lambda_.8} parent=5 // pred_region
      %s1145 = ssub.s32 %s12, 2
      // Predicated region
      $region53: #{_lambda_.8} parent=51 // pred_check
        %p1146 = pneg %p219
      $region54: #{_lambda_.8} parent=51 // pred_check_branch
        %1148 = sbr.rel (%p1146) target = $region56
      $region55: #{_lambda_.8} parent=51 // pred_region
        %s1149 = smul.u32 8, %s24
        %p1150 = scmp.lt.s32.totalorder %s23, 1
        %s1151 = scalar_select %p1150, %s23, 1
        %p1152 = scmp.lt.s32.totalorder %s1149, 7
        %s1153 = scalar_select %p1152, %s1149, 7
        %s1154 = smul.addr %s1151, 8
        %s1155 = sadd.s32 %s1153, %s1154
        %s1156 = smul.addr %s1155, 4
        %s1157 = scalar_lea.vmem %s6, %s1156
      $region56: #{_lambda_.8} parent=51 // pred_fallthru
        _
    $region52: #{_lambda_.8} parent=5 // pred_fallthru
      _
  $region6: #{_lambda_.8} parent=0 // loop_footer
    %s16 = sadd.s32 1, %s12
  $region7: #{_lambda_.8} parent=0 // loop_footer_branch
    %11 = sbr.rel target = $region3
  $region8: #{_lambda_.8} parent=0 // loop_exit
    _

// kernel: _lambda_.9
$region0: #{_lambda_.9}
  #allocation0 [shape = 'u32[]', space=smem, size = 0x4, offset = 0x4, fixed_abs, tag = 'smem constant byte address 0x4 - core index']
  #allocation1 [shape = 'u32[144,128]{1,0:T(1,128)}', space=vmem, size = 0x12000, scoped, tag = 'internal scratch']
  %s0 = inlined_call_operand.vmem [shape: bf16[2,10,10,8], index: 0, kind: input, shape index: {}, may-alias: {0,1,2}]
  %s1 = inlined_call_operand.vmem [shape: bf16[2,10,10,8], index: 1, kind: input, shape index: {}, may-alias: {0,1,2}]
  %s2 = inlined_call_operand.vmem [shape: bf16[2,10,10,8], index: 2, kind: input, shape index: {}, may-alias: {0,1,2}]
  %s3 = inlined_call_operand.vmem [shape: bf16[72,8], index: 3, kind: input, shape index: {}]
  %s4 = inlined_call_operand.vmem [shape: f32[1,8], index: 4, kind: input, shape index: {}]
  %s5 = inlined_call_operand.vmem [shape: bf16[2,8,8,8], index: 5, kind: output, shape index: {}]
  %s6 = sld [smem:[#allocation0]]
  $region53: #{_lambda_.9} parent=0
    _
  %s8 = ssub.s32 1, %s6
  %s9 = scalar_select 0, %s8, %s6
  loop: start=0, step=1, limit=4
  $region2: #{_lambda_.9} parent=0 // loop_pre_header
    _
  $region3: #{_lambda_.9} parent=0 // loop_header
    %s11 = sphi 0, %s15
    %p12 = scmp.ge.s32.totalorder %s11, 4
    %s18 = sphi 0, %s30
    %s19 = sphi 0, %s26
    %s20 = sphi 0, %s18
    %s21 = sphi 0, %s19
    %s22 = sphi 0, %s20
    %s23 = sphi 0, %s21
    %s35 = sphi 0, %s37
    %s38 = sphi 0, %s35
    %s39 = sphi 0, %s38
    %s55 = sphi 0, %s39
    %s67 = sphi 0, %s69
    %s70 = sphi 0, %s67
    %s71 = sphi 0, %s70
    %s87 = sphi 0, %s71
    %s101 = sphi 0, %s103
    %s104 = sphi 0, %s101
    %s105 = sphi 0, %s104
    %s121 = sphi 0, %s105
    %s125 = sphi 0, %s125
    %s127 = sphi 0, %s125
    %s128 = sphi 0, %s127
    %s142 = sphi 0, %s128
    %s146 = sphi 0, %s146
    %s148 = sphi 0, %s146
    %s149 = sphi 0, %s148
    %s163 = sphi 0, %s149
    %s171 = sphi 0, %s173
    %s174 = sphi 0, %s171
    %s175 = sphi 0, %s174
    %s191 = sphi 0, %s175
  $region4: #{_lambda_.9} parent=0 // loop_header_branch
    %14 = sbr.rel (%p12) target = $region8
  $region5: #{_lambda_.9} parent=0 // loop_body
    %s16 = ssub.s32 %s11, 1
    %s17 = ssub.s32 %s11, 2
    %s24 = sadd.s32 1, %s19
    %p25 = scmp.ge.s32.totalorder %s24, 1
    %s26 = scalar_select %p25, 0, %s24
    %s27 = sadd.s32 1, %s18
    %s28 = scalar_select %p25, %s27, %s18
    %p29 = scmp.ge.s32.totalorder %s28, 2
    %s30 = scalar_select %p29, 0, %s28
    %s31 = ssub.s32 %s18, %s30
    %s32 = ssub.s32 %s19, %s26
    %s33 = sor.u32 %s31, %s32
    %p34 = scmp.eq.s32.totalorder %s33, 0
    %s36 = sadd.s32 %s35, 1
    %s37 = scalar_select %p34, %s35, %s36
    %p40 = pneg %p34
    %p41 = scmp.eq.s32.totalorder %s11, 1
    %p42 = por %p40, %p41
    %p43 = scmp.ne.s32.totalorder %s35, %s38
    %p44 = scmp.eq.s32.totalorder %s11, 0
    %p45 = por %p43, %p44
    %p46 = scmp.ne.s32.totalorder %s35, %s38
    %p47 = scmp.eq.s32.totalorder %s16, 1
    %p48 = por %p46, %p47
    %p49 = scmp.ne.s32.totalorder %s38, %s39
    %p50 = scmp.eq.s32.totalorder %s16, 0
    %p51 = por %p49, %p50
    %p52 = scmp.ne.s32.totalorder %s38, %s39
    %p53 = scmp.eq.s32.totalorder %s17, 1
    %p54 = por %p52, %p53
    %p56 = scmp.ne.s32.totalorder %s39, %s55
    %p57 = scmp.eq.s32.totalorder %s17, 0
    %p58 = por %p56, %p57
    %s59 = sadd.s32 %s19, 1
    %s60 = smul.u32 %s59, 8
    %s61 = sadd.s32 %s26, 1
    %s62 = smul.u32 %s61, 8
    %s63 = ssub.s32 %s18, %s30
    %s64 = ssub.s32 %s60, %s62
    %s65 = sor.u32 %s63, %s64
    %p66 = scmp.eq.s32.totalorder %s65, 0
    %s68 = sadd.s32 %s67, 1
    %s69 = scalar_select %p66, %s67, %s68
    %p72 = pneg %p66
    %p73 = scmp.eq.s32.totalorder %s11, 1
    %p74 = por %p72, %p73
    %p75 = scmp.ne.s32.totalorder %s67, %s70
    %p76 = scmp.eq.s32.totalorder %s11, 0
    %p77 = por %p75, %p76
    %p78 = scmp.ne.s32.totalorder %s67, %s70
    %p79 = scmp.eq.s32.totalorder %s16, 1
    %p80 = por %p78, %p79
    %p81 = scmp.ne.s32.totalorder %s70, %s71
    %p82 = scmp.eq.s32.totalorder %s16, 0
    %p83 = por %p81, %p82
    %p84 = scmp.ne.s32.totalorder %s70, %s71
    %p85 = scmp.eq.s32.totalorder %s17, 1
    %p86 = por %p84, %p85
    %p88 = scmp.ne.s32.totalorder %s71, %s87
    %p89 = scmp.eq.s32.totalorder %s17, 0
    %p90 = por %p88, %p89
    %s91 = sadd.s32 %s19, 1
    %s92 = smul.u32 %s91, 8
    %s93 = sadd.s32 %s92, 1
    %s94 = sadd.s32 %s26, 1
    %s95 = smul.u32 %s94, 8
    %s96 = sadd.s32 %s95, 1
    %s97 = ssub.s32 %s18, %s30
    %s98 = ssub.s32 %s93, %s96
    %s99 = sor.u32 %s97, %s98
    %p100 = scmp.eq.s32.totalorder %s99, 0
    %s102 = sadd.s32 %s101, 1
    %s103 = scalar_select %p100, %s101, %s102
    %p106 = pneg %p100
    %p107 = scmp.eq.s32.totalorder %s11, 1
    %p108 = por %p106, %p107
    %p109 = scmp.ne.s32.totalorder %s101, %s104
    %p110 = scmp.eq.s32.totalorder %s11, 0
    %p111 = por %p109, %p110
    %p112 = scmp.ne.s32.totalorder %s101, %s104
    %p113 = scmp.eq.s32.totalorder %s16, 1
    %p114 = por %p112, %p113
    %p115 = scmp.ne.s32.totalorder %s104, %s105
    %p116 = scmp.eq.s32.totalorder %s16, 0
    %p117 = por %p115, %p116
    %p118 = scmp.ne.s32.totalorder %s104, %s105
    %p119 = scmp.eq.s32.totalorder %s17, 1
    %p120 = por %p118, %p119
    %p122 = scmp.ne.s32.totalorder %s105, %s121
    %p123 = scmp.eq.s32.totalorder %s17, 0
    %p124 = por %p122, %p123
    %s126 = sadd.s32 %s125, 1
    %p129 = scmp.eq.s32.totalorder %s11, 1
    %p130 = scmp.ne.s32.totalorder %s125, %s127
    %p131 = scmp.eq.s32.totalorder %s11, 0
    %p132 = por %p130, %p131
    %p133 = scmp.ne.s32.totalorder %s125, %s127
    %p134 = scmp.eq.s32.totalorder %s16, 1
    %p135 = por %p133, %p134
    %p136 = scmp.ne.s32.totalorder %s127, %s128
    %p137 = scmp.eq.s32.totalorder %s16, 0
    %p138 = por %p136, %p137
    %p139 = scmp.ne.s32.totalorder %s127, %s128
    %p140 = scmp.eq.s32.totalorder %s17, 1
    %p141 = por %p139, %p140
    %p143 = scmp.ne.s32.totalorder %s128, %s142
    %p144 = scmp.eq.s32.totalorder %s17, 0
    %p145 = por %p143, %p144
    %s147 = sadd.s32 %s146, 1
    %p150 = scmp.eq.s32.totalorder %s11, 1
    %p151 = scmp.ne.s32.totalorder %s146, %s148
    %p152 = scmp.eq.s32.totalorder %s11, 0
    %p153 = por %p151, %p152
    %p154 = scmp.ne.s32.totalorder %s146, %s148
    %p155 = scmp.eq.s32.totalorder %s16, 1
    %p156 = por %p154, %p155
    %p157 = scmp.ne.s32.totalorder %s148, %s149
    %p158 = scmp.eq.s32.totalorder %s16, 0
    %p159 = por %p157, %p158
    %p160 = scmp.ne.s32.totalorder %s148, %s149
    %p161 = scmp.eq.s32.totalorder %s17, 1
    %p162 = por %p160, %p161
    %p164 = scmp.ne.s32.totalorder %s149, %s163
    %p165 = scmp.eq.s32.totalorder %s17, 0
    %p166 = por %p164, %p165
    %s167 = ssub.s32 %s18, %s30
    %s168 = ssub.s32 %s19, %s26
    %s169 = sor.u32 %s167, %s168
    %p170 = scmp.eq.s32.totalorder %s169, 0
    %s172 = sadd.s32 %s171, 1
    %s173 = scalar_select %p170, %s171, %s172
    %p176 = pneg %p170
    %p177 = scmp.eq.s32.totalorder %s11, 1
    %p178 = por %p176, %p177
    %p179 = scmp.ne.s32.totalorder %s171, %s174
    %p180 = scmp.eq.s32.totalorder %s11, 0
    %p181 = por %p179, %p180
    %p182 = scmp.ne.s32.totalorder %s171, %s174
    %p183 = scmp.eq.s32.totalorder %s16, 1
    %p184 = por %p182, %p183
    %p185 = scmp.ne.s32.totalorder %s174, %s175
    %p186 = scmp.eq.s32.totalorder %s16, 0
    %p187 = por %p185, %p186
    %p188 = scmp.ne.s32.totalorder %s174, %s175
    %p189 = scmp.eq.s32.totalorder %s17, 1
    %p190 = por %p188, %p189
    %p192 = scmp.ne.s32.totalorder %s175, %s191
    %p193 = scmp.eq.s32.totalorder %s17, 0
    %p194 = por %p192, %p193
    %p195 = scmp.le.s32.totalorder 1, %s11
    %p196 = scmp.lt.s32.totalorder %s11, 3
    %p197 = pnand %p195, %p196
    %p198 = pneg %p197
    // Predicated region
    $region9: #{_lambda_.9} parent=5 // pred_check
      _
    $region10: #{_lambda_.9} parent=5 // pred_check_branch
      %200 = sbr.rel (%p197) target = $region12
    $region11: #{_lambda_.9} parent=5 // pred_region
      %s201 = ssub.s32 %s11, 1
      // Predicated region
      $region13: #{_lambda_.9} parent=11 // pred_check
        %p202 = pneg %p138
      $region14: #{_lambda_.9} parent=11 // pred_check_branch
        %204 = sbr.rel (%p202) target = $region16
      $region15: #{_lambda_.9} parent=11 // pred_region
        _
      $region16: #{_lambda_.9} parent=11 // pred_fallthru
        _
      // Predicated region
      $region17: #{_lambda_.9} parent=11 // pred_check
        %p205 = pneg %p159
      $region18: #{_lambda_.9} parent=11 // pred_check_branch
        %207 = sbr.rel (%p205) target = $region20
      $region19: #{_lambda_.9} parent=11 // pred_region
        _
      $region20: #{_lambda_.9} parent=11 // pred_fallthru
        _
    $region12: #{_lambda_.9} parent=5 // pred_fallthru
      _
    %p208 = scmp.lt.s32.totalorder %s11, 2
    // Predicated region
    $region21: #{_lambda_.9} parent=5 // pred_check
      %p209 = pneg %p208
    $region22: #{_lambda_.9} parent=5 // pred_check_branch
      %211 = sbr.rel (%p209) target = $region24
    $region23: #{_lambda_.9} parent=5 // pred_region
      // Predicated region
      $region25: #{_lambda_.9} parent=23 // pred_check
        %p212 = pneg %p45
      $region26: #{_lambda_.9} parent=23 // pred_check_branch
        %214 = sbr.rel (%p212) target = $region28
      $region27: #{_lambda_.9} parent=23 // pred_region
        %s215 = smul.u32 8, %s19
        %s216 = ssub.s32 10, %s215
        %p217 = scmp.lt.s32.totalorder %s216, 8
        %s218 = scalar_select %p217, %s216, 8
        %s219 = smul.u32 64, %s218
        %s220 = smul.u32 %s219, 2
        %p221 = scmp.lt.s32.totalorder %s18, 1
        %s222 = scalar_select %p221, %s18, 1
        %p223 = scmp.lt.s32.totalorder %s215, 9
        %s224 = scalar_select %p223, %s215, 9
        %s225 = smul.addr %s224, 2
        %s226 = smul.addr %s222, 20
        %s227 = sadd.s32 %s225, %s226
        %s228 = smul.addr %s227, 4
        %s229 = scalar_lea.vmem %s0, %s228
        %s230 = smul.u32 8, %s19
        %s231 = ssub.s32 10, %s230
        %p232 = scmp.lt.s32.totalorder %s231, 8
        %s233 = scalar_select %p232, %s231, 8
        %s234 = smul.u32 64, %s233
        %s235 = smul.u32 %s234, 2
      $region28: #{_lambda_.9} parent=23 // pred_fallthru
        _
      // Predicated region
      $region29: #{_lambda_.9} parent=23 // pred_check
        %p236 = pneg %p77
      $region30: #{_lambda_.9} parent=23 // pred_check_branch
        %238 = sbr.rel (%p236) target = $region32
      $region31: #{_lambda_.9} parent=23 // pred_region
        %s239 = sadd.s32 %s19, 1
        %s240 = smul.u32 %s239, 8
        %p241 = scmp.lt.s32.totalorder %s18, 1
        %s242 = scalar_select %p241, %s18, 1
        %p243 = scmp.lt.s32.totalorder %s240, 9
        %s244 = scalar_select %p243, %s240, 9
        %s245 = smul.addr %s244, 2
        %s246 = smul.addr %s242, 20
        %s247 = sadd.s32 %s245, %s246
        %s248 = smul.addr %s247, 4
        %s249 = scalar_lea.vmem %s1, %s248
        %s250 = sadd.s32 %s19, 1
        %s251 = smul.u32 %s250, 8
      $region32: #{_lambda_.9} parent=23 // pred_fallthru
        _
      // Predicated region
      $region33: #{_lambda_.9} parent=23 // pred_check
        %p252 = pneg %p111
      $region34: #{_lambda_.9} parent=23 // pred_check_branch
        %254 = sbr.rel (%p252) target = $region36
      $region35: #{_lambda_.9} parent=23 // pred_region
        %s255 = sadd.s32 %s19, 1
        %s256 = smul.u32 %s255, 8
        %s257 = sadd.s32 %s256, 1
        %p258 = scmp.lt.s32.totalorder %s18, 1
        %s259 = scalar_select %p258, %s18, 1
        %p260 = scmp.lt.s32.totalorder %s257, 9
        %s261 = scalar_select %p260, %s257, 9
        %s262 = smul.addr %s261, 2
        %s263 = smul.addr %s259, 20
        %s264 = sadd.s32 %s262, %s263
        %s265 = smul.addr %s264, 4
        %s266 = scalar_lea.vmem %s2, %s265
        %s267 = sadd.s32 %s19, 1
        %s268 = smul.u32 %s267, 8
        %s269 = sadd.s32 %s268, 1
      $region36: #{_lambda_.9} parent=23 // pred_fallthru
        _
    $region24: #{_lambda_.9} parent=5 // pred_fallthru
      _
    %p270 = scmp.le.s32.totalorder 1, %s11
    %p271 = scmp.lt.s32.totalorder %s11, 3
    %p272 = pnand %p270, %p271
    %p273 = pneg %p272
    // Predicated region
    $region37: #{_lambda_.9} parent=5 // pred_check
      _
    $region38: #{_lambda_.9} parent=5 // pred_check_branch
      %275 = sbr.rel (%p272) target = $region40
    $region39: #{_lambda_.9} parent=5 // pred_region
      %s276 = ssub.s32 %s11, 1
      %s277 = smul.u32 8, %s21
      %s278 = ssub.s32 10, %s277
      %p279 = scmp.lt.s32.totalorder %s278, 8
      %s280 = scalar_select %p279, %s278, 8
      %s281 = smul.u32 64, %s280
      %s282 = smul.u32 %s281, 2
      %p283 = scmp.lt.s32.totalorder %s20, 1
      %s284 = scalar_select %p283, %s20, 1
      %p285 = scmp.lt.s32.totalorder %s277, 9
      %s286 = scalar_select %p285, %s277, 9
      %s287 = smul.addr %s286, 2
      %s288 = smul.addr %s284, 20
      %s289 = sadd.s32 %s287, %s288
      %s290 = smul.addr %s289, 4
      %s291 = scalar_lea.vmem %s0, %s290
      %p292 = pneg %p51
      %p293 = pneg %p48
      %s294 = sadd.s32 %s21, 1
      %s295 = smul.u32 %s294, 8
      %p296 = scmp.lt.s32.totalorder %s20, 1
      %s297 = scalar_select %p296, %s20, 1
      %p298 = scmp.lt.s32.totalorder %s295, 9
      %s299 = scalar_select %p298, %s295, 9
      %s300 = smul.addr %s299, 2
      %s301 = smul.addr %s297, 20
      %s302 = sadd.s32 %s300, %s301
      %s303 = smul.addr %s302, 4
      %s304 = scalar_lea.vmem %s1, %s303
      %p305 = pneg %p83
      %p306 = pneg %p80
      %s307 = sadd.s32 %s21, 1
      %s308 = smul.u32 %s307, 8
      %s309 = sadd.s32 %s308, 1
      %p310 = scmp.lt.s32.totalorder %s20, 1
      %s311 = scalar_select %p310, %s20, 1
      %p312 = scmp.lt.s32.totalorder %s309, 9
      %s313 = scalar_select %p312, %s309, 9
      %s314 = smul.addr %s313, 2
      %s315 = smul.addr %s311, 20
      %s316 = sadd.s32 %s314, %s315
      %s317 = smul.addr %s316, 4
      %s318 = scalar_lea.vmem %s2, %s317
      %p319 = pneg %p117
      %p320 = pneg %p114
      %p321 = pneg %p138
      %p322 = pneg %p135
      %p323 = pneg %p159
      %p324 = pneg %p156
      %p325 = pneg %p187
      %p326 = pneg %p184
      %s327 = smul.u32 8, %s21
      %p328 = scmp.lt.s32.totalorder %s20, 1
      %s329 = scalar_select %p328, %s20, 1
      %p330 = scmp.lt.s32.totalorder %s327, 7
      %s331 = scalar_select %p330, %s327, 7
      %s332 = smul.addr %s329, 8
      %s333 = sadd.s32 %s331, %s332
      %s334 = smul.addr %s333, 4
      %s335 = scalar_lea.vmem %s5, %s334
      %s336 = smul.u32 8, %s21
      %s337 = ssub.s32 10, %s336
      %p338 = scmp.lt.s32.totalorder %s337, 8
      %s339 = scalar_select %p338, %s337, 8
      %s340 = smul.u32 64, %s339
      %s341 = smul.u32 %s340, 2
      %p342 = scmp.lt.s32.totalorder %s20, 1
      %s343 = scalar_select %p342, %s20, 1
      %p344 = scmp.lt.s32.totalorder %s336, 9
      %s345 = scalar_select %p344, %s336, 9
      %s346 = smul.addr %s345, 2
      %s347 = smul.addr %s343, 20
      %s348 = sadd.s32 %s346, %s347
      %s349 = smul.addr %s348, 4
      %s350 = scalar_lea.vmem %s0, %s349
      %s351 = smul.u32 8, %s21
      %s352 = ssub.s32 10, %s351
      %p353 = scmp.lt.s32.totalorder %s352, 8
      %s354 = scalar_select %p353, %s352, 8
      %s355 = smul.u32 64, %s354
      %s356 = smul.u32 %s355, 2
      %s357 = sadd.s32 %s21, 1
      %s358 = smul.u32 %s357, 8
      %p359 = scmp.lt.s32.totalorder %s20, 1
      %s360 = scalar_select %p359, %s20, 1
      %p361 = scmp.lt.s32.totalorder %s358, 9
      %s362 = scalar_select %p361, %s358, 9
      %s363 = smul.addr %s362, 2
      %s364 = smul.addr %s360, 20
      %s365 = sadd.s32 %s363, %s364
      %s366 = smul.addr %s365, 4
      %s367 = scalar_lea.vmem %s1, %s366
      %s368 = sadd.s32 %s21, 1
      %s369 = smul.u32 %s368, 8
      %s370 = sadd.s32 %s21, 1
      %s371 = smul.u32 %s370, 8
      %s372 = sadd.s32 %s371, 1
      %p373 = scmp.lt.s32.totalorder %s20, 1
      %s374 = scalar_select %p373, %s20, 1
      %p375 = scmp.lt.s32.totalorder %s372, 9
      %s376 = scalar_select %p375, %s372, 9
      %s377 = smul.addr %s376, 2
      %s378 = smul.addr %s374, 20
      %s379 = sadd.s32 %s377, %s378
      %s380 = smul.addr %s379, 4
      %s381 = scalar_lea.vmem %s2, %s380
      %s382 = sadd.s32 %s21, 1
      %s383 = smul.u32 %s382, 8
      %s384 = sadd.s32 %s383, 1
      %s385 = smul.u32 8, %s21
      %p386 = scmp.lt.s32.totalorder %s20, 1
      %s387 = scalar_select %p386, %s20, 1
      %p388 = scmp.lt.s32.totalorder %s385, 7
      %s389 = scalar_select %p388, %s385, 7
      %s390 = smul.addr %s387, 8
      %s391 = sadd.s32 %s389, %s390
      %s392 = smul.addr %s391, 4
      %s393 = scalar_lea.vmem %s5, %s392
      %s394 = smul.u32 8, %s21
      %v396 = vld [vmem:[%s350] sm:$0xf]
      %v397 = vld [vmem:[%s350 + $0x4] sm:$0x1]
      %v398 = vld [vmem:[%s350 + $0x8] sm:$0xf]
      %v399 = vld [vmem:[%s350 + $0xc] sm:$0x1]
      %v400 = vld [vmem:[%s350 + $0x10] sm:$0xf]
      %v401 = vld [vmem:[%s350 + $0x14] sm:$0x1]
      %v402 = vld [vmem:[%s350 + $0x18] sm:$0xf]
      %v403 = vld [vmem:[%s350 + $0x1c] sm:$0x1]
      %v404 = vld [vmem:[%s350 + $0x20] sm:$0xf]
      %v405 = vld [vmem:[%s350 + $0x24] sm:$0x1]
      %v406 = vld [vmem:[%s350 + $0x28] sm:$0xf]
      %v407 = vld [vmem:[%s350 + $0x2c] sm:$0x1]
      %v408 = vld [vmem:[%s350 + $0x30] sm:$0xf]
      %v409 = vld [vmem:[%s350 + $0x34] sm:$0x1]
      %v410 = vld [vmem:[%s350 + $0x38] sm:$0xf]
      %v411 = vld [vmem:[%s350 + $0x3c] sm:$0x1]
      %v412 = vld [vmem:[%s367] sm:$0xf]
      %v413 = vld [vmem:[%s367 + $0x4] sm:$0x1]
      %v414 = vld [vmem:[%s381] sm:$0xf]
      %v415 = vld [vmem:[%s381 + $0x4] sm:$0x1]
      %v432 = vunpack.c.l.b16 %v396
      %v433 = vunpack.c.l.b16 %v397
      %v434 = vunpack.c.l.b16 %v398
      %v435 = vunpack.c.l.b16 %v399
      %v436 = vunpack.c.l.b16 %v400
      %v437 = vunpack.c.l.b16 %v401
      %v438 = vunpack.c.l.b16 %v402
      %v439 = vunpack.c.l.b16 %v403
      %v440 = vunpack.c.l.b16 %v404
      %v441 = vunpack.c.l.b16 %v405
      %v442 = vunpack.c.l.b16 %v406
      %v443 = vunpack.c.l.b16 %v407
      %v444 = vunpack.c.l.b16 %v408
      %v445 = vunpack.c.l.b16 %v409
      %v446 = vunpack.c.l.b16 %v410
      %v447 = vunpack.c.l.b16 %v411
      %v448 = vpack.c.b16 %v433, %v432
      %v449 = vpack.c.b16 %v435, %v434
      %v450 = vpack.c.b16 %v437, %v436
      %v451 = vpack.c.b16 %v439, %v438
      %v452 = vpack.c.b16 %v441, %v440
      %v453 = vpack.c.b16 %v443, %v442
      %v454 = vpack.c.b16 %v445, %v444
      %v455 = vpack.c.b16 %v447, %v446
      %v457 = vshrl.u32 %v448, 16
      %v459 = vshll.u32 %v448, 16
      %v461 = vrot.slane %v459, 1
      %v462 = vor.u32 %v457, %v461
      %v464 = vshrl.u32 %v449, 16
      %v466 = vshll.u32 %v449, 16
      %v468 = vrot.slane %v466, 1
      %v469 = vor.u32 %v464, %v468
      %v471 = vshrl.u32 %v450, 16
      %v473 = vshll.u32 %v450, 16
      %v475 = vrot.slane %v473, 1
      %v476 = vor.u32 %v471, %v475
      %v478 = vshrl.u32 %v451, 16
      %v480 = vshll.u32 %v451, 16
      %v482 = vrot.slane %v480, 1
      %v483 = vor.u32 %v478, %v482
      %v485 = vshrl.u32 %v452, 16
      %v487 = vshll.u32 %v452, 16
      %v489 = vrot.slane %v487, 1
      %v490 = vor.u32 %v485, %v489
      %v492 = vshrl.u32 %v453, 16
      %v494 = vshll.u32 %v453, 16
      %v496 = vrot.slane %v494, 1
      %v497 = vor.u32 %v492, %v496
      %v499 = vshrl.u32 %v454, 16
      %v501 = vshll.u32 %v454, 16
      %v503 = vrot.slane %v501, 1
      %v504 = vor.u32 %v499, %v503
      %v506 = vshrl.u32 %v455, 16
      %v508 = vshll.u32 %v455, 16
      %v510 = vrot.slane %v508, 1
      %v511 = vor.u32 %v506, %v510
      %512 = vrot.lane.b32.xlu0 %v462, 8
      %v513 = vpop.permute.xlu0 %512
      %514 = vrot.lane.b32.xlu0 %v469, 8
      %v515 = vpop.permute.xlu0 %514
      %516 = vrot.lane.b32.xlu0 %v476, 8
      %v517 = vpop.permute.xlu0 %516
      %518 = vrot.lane.b32.xlu0 %v483, 8
      %v519 = vpop.permute.xlu0 %518
      %520 = vrot.lane.b32.xlu0 %v490, 8
      %v521 = vpop.permute.xlu0 %520
      %522 = vrot.lane.b32.xlu0 %v497, 8
      %v523 = vpop.permute.xlu0 %522
      %524 = vrot.lane.b32.xlu0 %v504, 8
      %v525 = vpop.permute.xlu0 %524
      %526 = vrot.lane.b32.xlu0 %v511, 8
      %v527 = vpop.permute.xlu0 %526
      %v528 = vrot.slane %v448, 1
      %v529 = vrot.slane %v449, 1
      %v530 = vrot.slane %v450, 1
      %v531 = vrot.slane %v451, 1
      %v532 = vrot.slane %v452, 1
      %v533 = vrot.slane %v453, 1
      %v534 = vrot.slane %v454, 1
      %v535 = vrot.slane %v455, 1
      %536 = vrot.lane.b32.xlu0 %v528, 16
      %v537 = vpop.permute.xlu0 %536
      %538 = vrot.lane.b32.xlu0 %v529, 16
      %v539 = vpop.permute.xlu0 %538
      %540 = vrot.lane.b32.xlu0 %v530, 16
      %v541 = vpop.permute.xlu0 %540
      %542 = vrot.lane.b32.xlu0 %v531, 16
      %v543 = vpop.permute.xlu0 %542
      %544 = vrot.lane.b32.xlu0 %v532, 16
      %v545 = vpop.permute.xlu0 %544
      %546 = vrot.lane.b32.xlu0 %v533, 16
      %v547 = vpop.permute.xlu0 %546
      %548 = vrot.lane.b32.xlu0 %v534, 16
      %v549 = vpop.permute.xlu0 %548
      %550 = vrot.lane.b32.xlu0 %v535, 16
      %v551 = vpop.permute.xlu0 %550
      %v553 = vunpack.c.l.b16 %v412
      %v554 = vpack.c.b16 %v434, %v434
      %v555 = vpack.c.b16 %v436, %v436
      %v556 = vpack.c.b16 %v438, %v438
      %v557 = vpack.c.b16 %v440, %v440
      %v558 = vpack.c.b16 %v442, %v442
      %v559 = vpack.c.b16 %v444, %v444
      %v560 = vpack.c.b16 %v446, %v446
      %v561 = vpack.c.b16 %v553, %v553
      %562 = vrot.lane.b32.xlu0 %v554, 24
      %v563 = vpop.permute.xlu0 %562
      %564 = vrot.lane.b32.xlu0 %v555, 24
      %v565 = vpop.permute.xlu0 %564
      %566 = vrot.lane.b32.xlu0 %v556, 24
      %v567 = vpop.permute.xlu0 %566
      %568 = vrot.lane.b32.xlu0 %v557, 24
      %v569 = vpop.permute.xlu0 %568
      %570 = vrot.lane.b32.xlu0 %v558, 24
      %v571 = vpop.permute.xlu0 %570
      %572 = vrot.lane.b32.xlu0 %v559, 24
      %v573 = vpop.permute.xlu0 %572
      %574 = vrot.lane.b32.xlu0 %v560, 24
      %v575 = vpop.permute.xlu0 %574
      %576 = vrot.lane.b32.xlu0 %v561, 24
      %v577 = vpop.permute.xlu0 %576
      %v579 = vunpack.c.l.b16 %v413
      %v580 = vpack.c.b16 %v579, %v553
      %v582 = vshrl.u32 %v580, 16
      %v584 = vshll.u32 %v580, 16
      %v586 = vrot.slane %v584, 1
      %v587 = vor.u32 %v582, %v586
      %588 = vrot.lane.b32.xlu0 %v469, 32
      %v589 = vpop.permute.xlu0 %588
      %590 = vrot.lane.b32.xlu0 %v476, 32
      %v591 = vpop.permute.xlu0 %590
      %592 = vrot.lane.b32.xlu0 %v483, 32
      %v593 = vpop.permute.xlu0 %592
      %594 = vrot.lane.b32.xlu0 %v490, 32
      %v595 = vpop.permute.xlu0 %594
      %596 = vrot.lane.b32.xlu0 %v497, 32
      %v597 = vpop.permute.xlu0 %596
      %598 = vrot.lane.b32.xlu0 %v504, 32
      %v599 = vpop.permute.xlu0 %598
      %600 = vrot.lane.b32.xlu0 %v511, 32
      %v601 = vpop.permute.xlu0 %600
      %602 = vrot.lane.b32.xlu0 %v587, 32
      %v603 = vpop.permute.xlu0 %602
      %v604 = vrot.slane %v580, 1
      %605 = vrot.lane.b32.xlu0 %v529, 40
      %v606 = vpop.permute.xlu0 %605
      %607 = vrot.lane.b32.xlu0 %v530, 40
      %v608 = vpop.permute.xlu0 %607
      %609 = vrot.lane.b32.xlu0 %v531, 40
      %v610 = vpop.permute.xlu0 %609
      %611 = vrot.lane.b32.xlu0 %v532, 40
      %v612 = vpop.permute.xlu0 %611
      %613 = vrot.lane.b32.xlu0 %v533, 40
      %v614 = vpop.permute.xlu0 %613
      %615 = vrot.lane.b32.xlu0 %v534, 40
      %v616 = vpop.permute.xlu0 %615
      %617 = vrot.lane.b32.xlu0 %v535, 40
      %v618 = vpop.permute.xlu0 %617
      %619 = vrot.lane.b32.xlu0 %v604, 40
      %v620 = vpop.permute.xlu0 %619
      %v622 = vunpack.c.l.b16 %v414
      %v623 = vpack.c.b16 %v622, %v622
      %624 = vrot.lane.b32.xlu0 %v555, 48
      %v625 = vpop.permute.xlu0 %624
      %626 = vrot.lane.b32.xlu0 %v556, 48
      %v627 = vpop.permute.xlu0 %626
      %628 = vrot.lane.b32.xlu0 %v557, 48
      %v629 = vpop.permute.xlu0 %628
      %630 = vrot.lane.b32.xlu0 %v558, 48
      %v631 = vpop.permute.xlu0 %630
      %632 = vrot.lane.b32.xlu0 %v559, 48
      %v633 = vpop.permute.xlu0 %632
      %634 = vrot.lane.b32.xlu0 %v560, 48
      %v635 = vpop.permute.xlu0 %634
      %636 = vrot.lane.b32.xlu0 %v561, 48
      %v637 = vpop.permute.xlu0 %636
      %638 = vrot.lane.b32.xlu0 %v623, 48
      %v639 = vpop.permute.xlu0 %638
      %v641 = vunpack.c.l.b16 %v415
      %v642 = vpack.c.b16 %v641, %v622
      %v644 = vshrl.u32 %v642, 16
      %v646 = vshll.u32 %v642, 16
      %v648 = vrot.slane %v646, 1
      %v649 = vor.u32 %v644, %v648
      %650 = vrot.lane.b32.xlu0 %v476, 56
      %v651 = vpop.permute.xlu0 %650
      %652 = vrot.lane.b32.xlu0 %v483, 56
      %v653 = vpop.permute.xlu0 %652
      %654 = vrot.lane.b32.xlu0 %v490, 56
      %v655 = vpop.permute.xlu0 %654
      %656 = vrot.lane.b32.xlu0 %v497, 56
      %v657 = vpop.permute.xlu0 %656
      %658 = vrot.lane.b32.xlu0 %v504, 56
      %v659 = vpop.permute.xlu0 %658
      %660 = vrot.lane.b32.xlu0 %v511, 56
      %v661 = vpop.permute.xlu0 %660
      %662 = vrot.lane.b32.xlu0 %v587, 56
      %v663 = vpop.permute.xlu0 %662
      %664 = vrot.lane.b32.xlu0 %v649, 56
      %v665 = vpop.permute.xlu0 %664
      %v666 = vrot.slane %v642, 1
      %667 = vrot.lane.b32.xlu0 %v530, 64
      %v668 = vpop.permute.xlu0 %667
      %669 = vrot.lane.b32.xlu0 %v531, 64
      %v670 = vpop.permute.xlu0 %669
      %671 = vrot.lane.b32.xlu0 %v532, 64
      %v672 = vpop.permute.xlu0 %671
      %673 = vrot.lane.b32.xlu0 %v533, 64
      %v674 = vpop.permute.xlu0 %673
      %675 = vrot.lane.b32.xlu0 %v534, 64
      %v676 = vpop.permute.xlu0 %675
      %677 = vrot.lane.b32.xlu0 %v535, 64
      %v678 = vpop.permute.xlu0 %677
      %679 = vrot.lane.b32.xlu0 %v604, 64
      %v680 = vpop.permute.xlu0 %679
      %681 = vrot.lane.b32.xlu0 %v666, 64
      %v682 = vpop.permute.xlu0 %681
      %vm683 = vcmask 64512
      %v686 = vsel %vm683, %v396, %v513
      %v689 = vsel %vm683, %v398, %v515
      %v692 = vsel %vm683, %v400, %v517
      %v695 = vsel %vm683, %v402, %v519
      %v698 = vsel %vm683, %v404, %v521
      %v701 = vsel %vm683, %v406, %v523
      %v704 = vsel %vm683, %v408, %v525
      %v707 = vsel %vm683, %v410, %v527
      %vm708 = vcmask 130048
      %v710 = vsel %vm708, %v686, %v537
      %v712 = vsel %vm708, %v689, %v539
      %v714 = vsel %vm708, %v692, %v541
      %v716 = vsel %vm708, %v695, %v543
      %v718 = vsel %vm708, %v698, %v545
      %v720 = vsel %vm708, %v701, %v547
      %v722 = vsel %vm708, %v704, %v549
      %v724 = vsel %vm708, %v707, %v551
      %vm725 = vcmask 195584
      %v727 = vsel %vm725, %v710, %v563
      %v729 = vsel %vm725, %v712, %v565
      %v731 = vsel %vm725, %v714, %v567
      %v733 = vsel %vm725, %v716, %v569
      %v735 = vsel %vm725, %v718, %v571
      %v737 = vsel %vm725, %v720, %v573
      %v739 = vsel %vm725, %v722, %v575
      %v741 = vsel %vm725, %v724, %v577
      %vm742 = vcmask 261120
      %v744 = vsel %vm742, %v727, %v589
      %v746 = vsel %vm742, %v729, %v591
      %v748 = vsel %vm742, %v731, %v593
      %v750 = vsel %vm742, %v733, %v595
      %v752 = vsel %vm742, %v735, %v597
      %v754 = vsel %vm742, %v737, %v599
      %v756 = vsel %vm742, %v739, %v601
      %v758 = vsel %vm742, %v741, %v603
      %vm759 = vcmask 326656
      %v761 = vsel %vm759, %v744, %v606
      %v763 = vsel %vm759, %v746, %v608
      %v765 = vsel %vm759, %v748, %v610
      %v767 = vsel %vm759, %v750, %v612
      %v769 = vsel %vm759, %v752, %v614
      %v771 = vsel %vm759, %v754, %v616
      %v773 = vsel %vm759, %v756, %v618
      %v775 = vsel %vm759, %v758, %v620
      %vm776 = vcmask 392192
      %v778 = vsel %vm776, %v761, %v625
      %v780 = vsel %vm776, %v763, %v627
      %v782 = vsel %vm776, %v765, %v629
      %v784 = vsel %vm776, %v767, %v631
      %v786 = vsel %vm776, %v769, %v633
      %v788 = vsel %vm776, %v771, %v635
      %v790 = vsel %vm776, %v773, %v637
      %v792 = vsel %vm776, %v775, %v639
      %vm793 = vcmask 457728
      %v795 = vsel %vm793, %v778, %v651
      %v797 = vsel %vm793, %v780, %v653
      %v799 = vsel %vm793, %v782, %v655
      %v801 = vsel %vm793, %v784, %v657
      %v803 = vsel %vm793, %v786, %v659
      %v805 = vsel %vm793, %v788, %v661
      %v807 = vsel %vm793, %v790, %v663
      %v809 = vsel %vm793, %v792, %v665
      %vm810 = vcmask 523264
      %v812 = vsel %vm810, %v795, %v668
      %v814 = vsel %vm810, %v797, %v670
      %v816 = vsel %vm810, %v799, %v672
      %v818 = vsel %vm810, %v801, %v674
      %v820 = vsel %vm810, %v803, %v676
      %v822 = vsel %vm810, %v805, %v678
      %v824 = vsel %vm810, %v807, %v680
      %v826 = vsel %vm810, %v809, %v682
      %v827 = vld [vmem:[%s3] sm:$0xf]
      %v828 = vld [vmem:[%s3 + $0x4] sm:$0xf]
      %v829 = vld [vmem:[%s3 + $0x8] sm:$0xf]
      %v830 = vld [vmem:[%s3 + $0xc] sm:$0xf]
      %v831 = vld [vmem:[%s3 + $0x10] sm:$0xf]
      %v832 = vld [vmem:[%s3 + $0x14] sm:$0xf]
      %v833 = vld [vmem:[%s3 + $0x18] sm:$0xf]
      %v834 = vld [vmem:[%s3 + $0x1c] sm:$0xf]
      %v835 = vld [vmem:[%s3 + $0x20] sm:$0xf]
      %v836 = vld [vmem:[%s4] sm:$0x1]
      %v838 = vlaneseq
      %v839 = vshrl.u32 %v838, 7
      %v840 = vsub.s32 0, %v839
      %v841 = vrot.slane %v836, %v840
      %v851 = vunpack.c.l.b16 %v812
      %v852 = vunpack.c.l.b16 %v814
      %v853 = vunpack.c.l.b16 %v816
      %v854 = vunpack.c.l.b16 %v818
      %v855 = vunpack.c.l.b16 %v820
      %v856 = vunpack.c.l.b16 %v822
      %v857 = vunpack.c.l.b16 %v824
      %v858 = vunpack.c.l.b16 %v826
      %v859 = vpack.c.b16 %v852, %v851
      %v860 = vpack.c.b16 %v854, %v853
      %v861 = vpack.c.b16 %v856, %v855
      %v862 = vpack.c.b16 %v858, %v857
      %v872 = vunpack.c.l.b16 %v827
      %v873 = vunpack.c.l.b16 %v828
      %v874 = vunpack.c.l.b16 %v829
      %v875 = vunpack.c.l.b16 %v830
      %v876 = vunpack.c.l.b16 %v831
      %v877 = vunpack.c.l.b16 %v832
      %v878 = vunpack.c.l.b16 %v833
      %v879 = vunpack.c.l.b16 %v834
      %v880 = vunpack.c.l.b16 %v835
      %v881 = vpack.c.b16 %v873, %v872
      %v882 = vpack.c.b16 %v875, %v874
      %v883 = vpack.c.b16 %v877, %v876
      %v884 = vpack.c.b16 %v879, %v878
      %v885 = vpack.c.b16 %v880, %v880
      %vm890 = vcmask 588800
      %v892 = vsel %vm890, %v859, 0
      %v895 = vsel %vm890, %v860, 0
      %v898 = vsel %vm890, %v861, 0
      %v901 = vsel %vm890, %v862, 0
      %vm903 = vcmask 1043456
      %v905 = vsel %vm903, %v885, 0
      %907 = vmatprep.subr.bf16.mxu0 0
      %908 = vmatpush1.bf16.msra.mxu0 %v881
      %909 = vmatprep.subr.bf16.mxu0 0
      %910 = vmatpush1.bf16.msra.mxu0 %v882
      %911 = vmatprep.subr.bf16.mxu0 0
      %912 = vmatpush1.bf16.msra.mxu0 %v883
      %913 = vmatprep.subr.bf16.mxu0 0
      %914 = vmatpush1.bf16.msra.mxu0 %v884
      %915 = vmatprep.subr.bf16.mxu0 0
      %916 = vmatpush1.bf16.msra.mxu0 %v905
      %917 = vmatprep.subr.bf16.mxu0 0
      %918 = vmatpush1.bf16.msra.mxu0 0
      %919 = vmatprep.subr.bf16.mxu0 0
      %920 = vmatpush1.bf16.msra.mxu0 0
      %921 = vmatprep.subr.bf16.mxu0 0
      %922 = vmatpush1.bf16.msra.mxu0 0
      %923 = vmatprep.subr.bf16.mxu0 0
      %924 = vmatpush1.bf16.msra.mxu0 0
      %925 = vmatprep.subr.bf16.mxu0 0
      %926 = vmatpush1.bf16.msra.mxu0 0
      %927 = vmatprep.subr.bf16.mxu0 0
      %928 = vmatpush1.bf16.msra.mxu0 0
      %929 = vmatprep.subr.bf16.mxu0 0
      %930 = vmatpush1.bf16.msra.mxu0 0
      %931 = vmatprep.subr.bf16.mxu0 0
      %932 = vmatpush1.bf16.msra.mxu0 0
      %933 = vmatprep.subr.bf16.mxu0 0
      %934 = vmatpush1.bf16.msra.mxu0 0
      %935 = vmatprep.subr.bf16.mxu0 0
      %936 = vmatpush1.bf16.msra.mxu0 0
      %937 = vmatprep.subr.bf16.mxu0 0
      %938 = vmatpush1.bf16.msra.mxu0 0
      %939 = vmatprep.mubr.bf16.mxu0 0
      %940 = vmatmul.mubr.bf16.gmra.mrb[0].mxu0 %v892
      %v941 = vpop.f32.mrb[0].mxu0
      %v942 = vadd.f32 %v841, %v941
      %v943 = vpop.f32.mrb[0].mxu0
      %v944 = vpop.f32.mrb[0].mxu0
      %v945 = vadd.f32 %v841, %v944
      %v946 = vpop.f32.mrb[0].mxu0
      %947 = vmatprep.mubr.bf16.mxu0 0
      %948 = vmatmul.mubr.bf16.gmra.mrb[0].mxu0 %v895
      %v949 = vpop.f32.mrb[0].mxu0
      %v950 = vadd.f32 %v841, %v949
      %v951 = vpop.f32.mrb[0].mxu0
      %v952 = vpop.f32.mrb[0].mxu0
      %v953 = vadd.f32 %v841, %v952
      %v954 = vpop.f32.mrb[0].mxu0
      %955 = vmatprep.mubr.bf16.mxu0 0
      %956 = vmatmul.mubr.bf16.gmra.mrb[0].mxu0 %v898
      %v957 = vpop.f32.mrb[0].mxu0
      %v958 = vadd.f32 %v841, %v957
      %v959 = vpop.f32.mrb[0].mxu0
      %v960 = vpop.f32.mrb[0].mxu0
      %v961 = vadd.f32 %v841, %v960
      %v962 = vpop.f32.mrb[0].mxu0
      %963 = vmatprep.mubr.bf16.mxu0 0
      %964 = vmatmul.mubr.bf16.gmra.mrb[0].mxu0 %v901
      %v965 = vpop.f32.mrb[0].mxu0
      %v966 = vadd.f32 %v841, %v965
      %v967 = vpop.f32.mrb[0].mxu0
      %v968 = vpop.f32.mrb[0].mxu0
      %v969 = vadd.f32 %v841, %v968
      %v970 = vpop.f32.mrb[0].mxu0
      %971 = vdwg.mxu0
      %v972 = vmax.f32 %v942, 0.0
      %v973 = vmax.f32 %v945, 0.0
      %v974 = vmax.f32 %v950, 0.0
      %v975 = vmax.f32 %v953, 0.0
      %v976 = vmax.f32 %v958, 0.0
      %v977 = vmax.f32 %v961, 0.0
      %v978 = vmax.f32 %v966, 0.0
      %v979 = vmax.f32 %v969, 0.0
      %v980 = vpack.c.bf16 %v972, %v972
      %v981 = vpack.c.bf16 %v973, %v973
      %v982 = vpack.c.bf16 %v974, %v974
      %v983 = vpack.c.bf16 %v975, %v975
      %v984 = vpack.c.bf16 %v976, %v976
      %v985 = vpack.c.bf16 %v977, %v977
      %v986 = vpack.c.bf16 %v978, %v978
      %v987 = vpack.c.bf16 %v979, %v979
      %vm988 = vcmask 60416
      %989 = vst.msk [vmem:[%s393] sm:$0xf] %vm988, %v980
      %990 = vst.msk [vmem:[%s393 + $0x4] sm:$0xf] %vm988, %v981
      %991 = vst.msk [vmem:[%s393 + $0x8] sm:$0xf] %vm988, %v982
      %992 = vst.msk [vmem:[%s393 + $0xc] sm:$0xf] %vm988, %v983
      %993 = vst.msk [vmem:[%s393 + $0x10] sm:$0xf] %vm988, %v984
      %994 = vst.msk [vmem:[%s393 + $0x14] sm:$0xf] %vm988, %v985
      %995 = vst.msk [vmem:[%s393 + $0x18] sm:$0xf] %vm988, %v986
      %996 = vst.msk [vmem:[%s393 + $0x1c] sm:$0xf] %vm988, %v987
      %s997 = smul.u32 8, %s21
      %p998 = scmp.lt.s32.totalorder %s20, 1
      %s999 = scalar_select %p998, %s20, 1
      %p1000 = scmp.lt.s32.totalorder %s997, 7
      %s1001 = scalar_select %p1000, %s997, 7
      %s1002 = smul.addr %s999, 8
      %s1003 = sadd.s32 %s1001, %s1002
      %s1004 = smul.addr %s1003, 4
      %s1005 = scalar_lea.vmem %s5, %s1004
      // Predicated region
      $region41: #{_lambda_.9} parent=39 // pred_check
        %p1006 = pneg %p184
      $region42: #{_lambda_.9} parent=39 // pred_check_branch
        %1008 = sbr.rel (%p1006) target = $region44
      $region43: #{_lambda_.9} parent=39 // pred_region
        %s1009 = smul.u32 8, %s21
      $region44: #{_lambda_.9} parent=39 // pred_fallthru
        _
    $region40: #{_lambda_.9} parent=5 // pred_fallthru
      _
    %p1010 = scmp.le.s32.totalorder 2, %s11
    // Predicated region
    $region45: #{_lambda_.9} parent=5 // pred_check
      %p1011 = pneg %p1010
    $region46: #{_lambda_.9} parent=5 // pred_check_branch
      %1013 = sbr.rel (%p1011) target = $region48
    $region47: #{_lambda_.9} parent=5 // pred_region
      %s1014 = ssub.s32 %s11, 2
      // Predicated region
      $region49: #{_lambda_.9} parent=47 // pred_check
        %p1015 = pneg %p190
      $region50: #{_lambda_.9} parent=47 // pred_check_branch
        %1017 = sbr.rel (%p1015) target = $region52
      $region51: #{_lambda_.9} parent=47 // pred_region
        %s1018 = smul.u32 8, %s23
        %p1019 = scmp.lt.s32.totalorder %s22, 1
        %s1020 = scalar_select %p1019, %s22, 1
        %p1021 = scmp.lt.s32.totalorder %s1018, 7
        %s1022 = scalar_select %p1021, %s1018, 7
        %s1023 = smul.addr %s1020, 8
        %s1024 = sadd.s32 %s1022, %s1023
        %s1025 = smul.addr %s1024, 4
        %s1026 = scalar_lea.vmem %s5, %s1025
      $region52: #{_lambda_.9} parent=47 // pred_fallthru
        _
    $region48: #{_lambda_.9} parent=5 // pred_fallthru
      _
  $region6: #{_lambda_.9} parent=0 // loop_footer
    %s15 = sadd.s32 1, %s11
  $region7: #{_lambda_.9} parent=0 // loop_footer_branch
    %10 = sbr.rel target = $region3
  $region8: #{_lambda_.9} parent=0 // loop_exit
    _

// kernel: _lambda_.10
$region0: #{_lambda_.10}
  #allocation0 [shape = 'u32[]', space=smem, size = 0x4, offset = 0x4, fixed_abs, tag = 'smem constant byte address 0x4 - core index']
  #allocation1 [shape = 'u32[144,128]{1,0:T(1,128)}', space=vmem, size = 0x12000, scoped, tag = 'internal scratch']
  %s0 = inlined_call_operand.vmem [shape: bf16[2,10,10,8], index: 0, kind: input, shape index: {}, may-alias: {0,1,2}]
  %s1 = inlined_call_operand.vmem [shape: bf16[2,10,10,8], index: 1, kind: input, shape index: {}, may-alias: {0,1,2}]
  %s2 = inlined_call_operand.vmem [shape: bf16[2,10,10,8], index: 2, kind: input, shape index: {}, may-alias: {0,1,2}]
  %s3 = inlined_call_operand.vmem [shape: bf16[72,8], index: 3, kind: input, shape index: {}]
  %s4 = inlined_call_operand.vmem [shape: f32[1,8], index: 4, kind: input, shape index: {}]
  %s5 = inlined_call_operand.vmem [shape: bf16[2,8,8,8], index: 5, kind: input, shape index: {}]
  %s6 = inlined_call_operand.vmem [shape: bf16[2,8,8,8], index: 6, kind: output, shape index: {}]
  %s7 = sld [smem:[#allocation0]]
  $region57: #{_lambda_.10} parent=0
    _
  %s9 = ssub.s32 1, %s7
  %s10 = scalar_select 0, %s9, %s7
  loop: start=0, step=1, limit=4
  $region2: #{_lambda_.10} parent=0 // loop_pre_header
    _
  $region3: #{_lambda_.10} parent=0 // loop_header
    %s12 = sphi 0, %s16
    %p13 = scmp.ge.s32.totalorder %s12, 4
    %s19 = sphi 0, %s31
    %s20 = sphi 0, %s27
    %s21 = sphi 0, %s19
    %s22 = sphi 0, %s20
    %s23 = sphi 0, %s21
    %s24 = sphi 0, %s22
    %s36 = sphi 0, %s38
    %s39 = sphi 0, %s36
    %s40 = sphi 0, %s39
    %s56 = sphi 0, %s40
    %s68 = sphi 0, %s70
    %s71 = sphi 0, %s68
    %s72 = sphi 0, %s71
    %s88 = sphi 0, %s72
    %s102 = sphi 0, %s104
    %s105 = sphi 0, %s102
    %s106 = sphi 0, %s105
    %s122 = sphi 0, %s106
    %s126 = sphi 0, %s126
    %s128 = sphi 0, %s126
    %s129 = sphi 0, %s128
    %s143 = sphi 0, %s129
    %s147 = sphi 0, %s147
    %s149 = sphi 0, %s147
    %s150 = sphi 0, %s149
    %s164 = sphi 0, %s150
    %s172 = sphi 0, %s174
    %s175 = sphi 0, %s172
    %s176 = sphi 0, %s175
    %s192 = sphi 0, %s176
    %s200 = sphi 0, %s202
    %s203 = sphi 0, %s200
    %s204 = sphi 0, %s203
    %s220 = sphi 0, %s204
  $region4: #{_lambda_.10} parent=0 // loop_header_branch
    %15 = sbr.rel (%p13) target = $region8
  $region5: #{_lambda_.10} parent=0 // loop_body
    %s17 = ssub.s32 %s12, 1
    %s18 = ssub.s32 %s12, 2
    %s25 = sadd.s32 1, %s20
    %p26 = scmp.ge.s32.totalorder %s25, 1
    %s27 = scalar_select %p26, 0, %s25
    %s28 = sadd.s32 1, %s19
    %s29 = scalar_select %p26, %s28, %s19
    %p30 = scmp.ge.s32.totalorder %s29, 2
    %s31 = scalar_select %p30, 0, %s29
    %s32 = ssub.s32 %s19, %s31
    %s33 = ssub.s32 %s20, %s27
    %s34 = sor.u32 %s32, %s33
    %p35 = scmp.eq.s32.totalorder %s34, 0
    %s37 = sadd.s32 %s36, 1
    %s38 = scalar_select %p35, %s36, %s37
    %p41 = pneg %p35
    %p42 = scmp.eq.s32.totalorder %s12, 1
    %p43 = por %p41, %p42
    %p44 = scmp.ne.s32.totalorder %s36, %s39
    %p45 = scmp.eq.s32.totalorder %s12, 0
    %p46 = por %p44, %p45
    %p47 = scmp.ne.s32.totalorder %s36, %s39
    %p48 = scmp.eq.s32.totalorder %s17, 1
    %p49 = por %p47, %p48
    %p50 = scmp.ne.s32.totalorder %s39, %s40
    %p51 = scmp.eq.s32.totalorder %s17, 0
    %p52 = por %p50, %p51
    %p53 = scmp.ne.s32.totalorder %s39, %s40
    %p54 = scmp.eq.s32.totalorder %s18, 1
    %p55 = por %p53, %p54
    %p57 = scmp.ne.s32.totalorder %s40, %s56
    %p58 = scmp.eq.s32.totalorder %s18, 0
    %p59 = por %p57, %p58
    %s60 = sadd.s32 %s20, 1
    %s61 = smul.u32 %s60, 8
    %s62 = sadd.s32 %s27, 1
    %s63 = smul.u32 %s62, 8
    %s64 = ssub.s32 %s19, %s31
    %s65 = ssub.s32 %s61, %s63
    %s66 = sor.u32 %s64, %s65
    %p67 = scmp.eq.s32.totalorder %s66, 0
    %s69 = sadd.s32 %s68, 1
    %s70 = scalar_select %p67, %s68, %s69
    %p73 = pneg %p67
    %p74 = scmp.eq.s32.totalorder %s12, 1
    %p75 = por %p73, %p74
    %p76 = scmp.ne.s32.totalorder %s68, %s71
    %p77 = scmp.eq.s32.totalorder %s12, 0
    %p78 = por %p76, %p77
    %p79 = scmp.ne.s32.totalorder %s68, %s71
    %p80 = scmp.eq.s32.totalorder %s17, 1
    %p81 = por %p79, %p80
    %p82 = scmp.ne.s32.totalorder %s71, %s72
    %p83 = scmp.eq.s32.totalorder %s17, 0
    %p84 = por %p82, %p83
    %p85 = scmp.ne.s32.totalorder %s71, %s72
    %p86 = scmp.eq.s32.totalorder %s18, 1
    %p87 = por %p85, %p86
    %p89 = scmp.ne.s32.totalorder %s72, %s88
    %p90 = scmp.eq.s32.totalorder %s18, 0
    %p91 = por %p89, %p90
    %s92 = sadd.s32 %s20, 1
    %s93 = smul.u32 %s92, 8
    %s94 = sadd.s32 %s93, 1
    %s95 = sadd.s32 %s27, 1
    %s96 = smul.u32 %s95, 8
    %s97 = sadd.s32 %s96, 1
    %s98 = ssub.s32 %s19, %s31
    %s99 = ssub.s32 %s94, %s97
    %s100 = sor.u32 %s98, %s99
    %p101 = scmp.eq.s32.totalorder %s100, 0
    %s103 = sadd.s32 %s102, 1
    %s104 = scalar_select %p101, %s102, %s103
    %p107 = pneg %p101
    %p108 = scmp.eq.s32.totalorder %s12, 1
    %p109 = por %p107, %p108
    %p110 = scmp.ne.s32.totalorder %s102, %s105
    %p111 = scmp.eq.s32.totalorder %s12, 0
    %p112 = por %p110, %p111
    %p113 = scmp.ne.s32.totalorder %s102, %s105
    %p114 = scmp.eq.s32.totalorder %s17, 1
    %p115 = por %p113, %p114
    %p116 = scmp.ne.s32.totalorder %s105, %s106
    %p117 = scmp.eq.s32.totalorder %s17, 0
    %p118 = por %p116, %p117
    %p119 = scmp.ne.s32.totalorder %s105, %s106
    %p120 = scmp.eq.s32.totalorder %s18, 1
    %p121 = por %p119, %p120
    %p123 = scmp.ne.s32.totalorder %s106, %s122
    %p124 = scmp.eq.s32.totalorder %s18, 0
    %p125 = por %p123, %p124
    %s127 = sadd.s32 %s126, 1
    %p130 = scmp.eq.s32.totalorder %s12, 1
    %p131 = scmp.ne.s32.totalorder %s126, %s128
    %p132 = scmp.eq.s32.totalorder %s12, 0
    %p133 = por %p131, %p132
    %p134 = scmp.ne.s32.totalorder %s126, %s128
    %p135 = scmp.eq.s32.totalorder %s17, 1
    %p136 = por %p134, %p135
    %p137 = scmp.ne.s32.totalorder %s128, %s129
    %p138 = scmp.eq.s32.totalorder %s17, 0
    %p139 = por %p137, %p138
    %p140 = scmp.ne.s32.totalorder %s128, %s129
    %p141 = scmp.eq.s32.totalorder %s18, 1
    %p142 = por %p140, %p141
    %p144 = scmp.ne.s32.totalorder %s129, %s143
    %p145 = scmp.eq.s32.totalorder %s18, 0
    %p146 = por %p144, %p145
    %s148 = sadd.s32 %s147, 1
    %p151 = scmp.eq.s32.totalorder %s12, 1
    %p152 = scmp.ne.s32.totalorder %s147, %s149
    %p153 = scmp.eq.s32.totalorder %s12, 0
    %p154 = por %p152, %p153
    %p155 = scmp.ne.s32.totalorder %s147, %s149
    %p156 = scmp.eq.s32.totalorder %s17, 1
    %p157 = por %p155, %p156
    %p158 = scmp.ne.s32.totalorder %s149, %s150
    %p159 = scmp.eq.s32.totalorder %s17, 0
    %p160 = por %p158, %p159
    %p161 = scmp.ne.s32.totalorder %s149, %s150
    %p162 = scmp.eq.s32.totalorder %s18, 1
    %p163 = por %p161, %p162
    %p165 = scmp.ne.s32.totalorder %s150, %s164
    %p166 = scmp.eq.s32.totalorder %s18, 0
    %p167 = por %p165, %p166
    %s168 = ssub.s32 %s19, %s31
    %s169 = ssub.s32 %s20, %s27
    %s170 = sor.u32 %s168, %s169
    %p171 = scmp.eq.s32.totalorder %s170, 0
    %s173 = sadd.s32 %s172, 1
    %s174 = scalar_select %p171, %s172, %s173
    %p177 = pneg %p171
    %p178 = scmp.eq.s32.totalorder %s12, 1
    %p179 = por %p177, %p178
    %p180 = scmp.ne.s32.totalorder %s172, %s175
    %p181 = scmp.eq.s32.totalorder %s12, 0
    %p182 = por %p180, %p181
    %p183 = scmp.ne.s32.totalorder %s172, %s175
    %p184 = scmp.eq.s32.totalorder %s17, 1
    %p185 = por %p183, %p184
    %p186 = scmp.ne.s32.totalorder %s175, %s176
    %p187 = scmp.eq.s32.totalorder %s17, 0
    %p188 = por %p186, %p187
    %p189 = scmp.ne.s32.totalorder %s175, %s176
    %p190 = scmp.eq.s32.totalorder %s18, 1
    %p191 = por %p189, %p190
    %p193 = scmp.ne.s32.totalorder %s176, %s192
    %p194 = scmp.eq.s32.totalorder %s18, 0
    %p195 = por %p193, %p194
    %s196 = ssub.s32 %s19, %s31
    %s197 = ssub.s32 %s20, %s27
    %s198 = sor.u32 %s196, %s197
    %p199 = scmp.eq.s32.totalorder %s198, 0
    %s201 = sadd.s32 %s200, 1
    %s202 = scalar_select %p199, %s200, %s201
    %p205 = pneg %p199
    %p206 = scmp.eq.s32.totalorder %s12, 1
    %p207 = por %p205, %p206
    %p208 = scmp.ne.s32.totalorder %s200, %s203
    %p209 = scmp.eq.s32.totalorder %s12, 0
    %p210 = por %p208, %p209
    %p211 = scmp.ne.s32.totalorder %s200, %s203
    %p212 = scmp.eq.s32.totalorder %s17, 1
    %p213 = por %p211, %p212
    %p214 = scmp.ne.s32.totalorder %s203, %s204
    %p215 = scmp.eq.s32.totalorder %s17, 0
    %p216 = por %p214, %p215
    %p217 = scmp.ne.s32.totalorder %s203, %s204
    %p218 = scmp.eq.s32.totalorder %s18, 1
    %p219 = por %p217, %p218
    %p221 = scmp.ne.s32.totalorder %s204, %s220
    %p222 = scmp.eq.s32.totalorder %s18, 0
    %p223 = por %p221, %p222
    %p224 = scmp.le.s32.totalorder 1, %s12
    %p225 = scmp.lt.s32.totalorder %s12, 3
    %p226 = pnand %p224, %p225
    %p227 = pneg %p226
    // Predicated region
    $region9: #{_lambda_.10} parent=5 // pred_check
      _
    $region10: #{_lambda_.10} parent=5 // pred_check_branch
      %229 = sbr.rel (%p226) target = $region12
    $region11: #{_lambda_.10} parent=5 // pred_region
      %s230 = ssub.s32 %s12, 1
      // Predicated region
      $region13: #{_lambda_.10} parent=11 // pred_check
        %p231 = pneg %p139
      $region14: #{_lambda_.10} parent=11 // pred_check_branch
        %233 = sbr.rel (%p231) target = $region16
      $region15: #{_lambda_.10} parent=11 // pred_region
        _
      $region16: #{_lambda_.10} parent=11 // pred_fallthru
        _
      // Predicated region
      $region17: #{_lambda_.10} parent=11 // pred_check
        %p234 = pneg %p160
      $region18: #{_lambda_.10} parent=11 // pred_check_branch
        %236 = sbr.rel (%p234) target = $region20
      $region19: #{_lambda_.10} parent=11 // pred_region
        _
      $region20: #{_lambda_.10} parent=11 // pred_fallthru
        _
    $region12: #{_lambda_.10} parent=5 // pred_fallthru
      _
    %p237 = scmp.lt.s32.totalorder %s12, 2
    // Predicated region
    $region21: #{_lambda_.10} parent=5 // pred_check
      %p238 = pneg %p237
    $region22: #{_lambda_.10} parent=5 // pred_check_branch
      %240 = sbr.rel (%p238) target = $region24
    $region23: #{_lambda_.10} parent=5 // pred_region
      // Predicated region
      $region25: #{_lambda_.10} parent=23 // pred_check
        %p241 = pneg %p46
      $region26: #{_lambda_.10} parent=23 // pred_check_branch
        %243 = sbr.rel (%p241) target = $region28
      $region27: #{_lambda_.10} parent=23 // pred_region
        %s244 = smul.u32 8, %s20
        %s245 = ssub.s32 10, %s244
        %p246 = scmp.lt.s32.totalorder %s245, 8
        %s247 = scalar_select %p246, %s245, 8
        %s248 = smul.u32 64, %s247
        %s249 = smul.u32 %s248, 2
        %p250 = scmp.lt.s32.totalorder %s19, 1
        %s251 = scalar_select %p250, %s19, 1
        %p252 = scmp.lt.s32.totalorder %s244, 9
        %s253 = scalar_select %p252, %s244, 9
        %s254 = smul.addr %s253, 2
        %s255 = smul.addr %s251, 20
        %s256 = sadd.s32 %s254, %s255
        %s257 = smul.addr %s256, 4
        %s258 = scalar_lea.vmem %s0, %s257
        %s259 = smul.u32 8, %s20
        %s260 = ssub.s32 10, %s259
        %p261 = scmp.lt.s32.totalorder %s260, 8
        %s262 = scalar_select %p261, %s260, 8
        %s263 = smul.u32 64, %s262
        %s264 = smul.u32 %s263, 2
      $region28: #{_lambda_.10} parent=23 // pred_fallthru
        _
      // Predicated region
      $region29: #{_lambda_.10} parent=23 // pred_check
        %p265 = pneg %p78
      $region30: #{_lambda_.10} parent=23 // pred_check_branch
        %267 = sbr.rel (%p265) target = $region32
      $region31: #{_lambda_.10} parent=23 // pred_region
        %s268 = sadd.s32 %s20, 1
        %s269 = smul.u32 %s268, 8
        %p270 = scmp.lt.s32.totalorder %s19, 1
        %s271 = scalar_select %p270, %s19, 1
        %p272 = scmp.lt.s32.totalorder %s269, 9
        %s273 = scalar_select %p272, %s269, 9
        %s274 = smul.addr %s273, 2
        %s275 = smul.addr %s271, 20
        %s276 = sadd.s32 %s274, %s275
        %s277 = smul.addr %s276, 4
        %s278 = scalar_lea.vmem %s1, %s277
        %s279 = sadd.s32 %s20, 1
        %s280 = smul.u32 %s279, 8
      $region32: #{_lambda_.10} parent=23 // pred_fallthru
        _
      // Predicated region
      $region33: #{_lambda_.10} parent=23 // pred_check
        %p281 = pneg %p112
      $region34: #{_lambda_.10} parent=23 // pred_check_branch
        %283 = sbr.rel (%p281) target = $region36
      $region35: #{_lambda_.10} parent=23 // pred_region
        %s284 = sadd.s32 %s20, 1
        %s285 = smul.u32 %s284, 8
        %s286 = sadd.s32 %s285, 1
        %p287 = scmp.lt.s32.totalorder %s19, 1
        %s288 = scalar_select %p287, %s19, 1
        %p289 = scmp.lt.s32.totalorder %s286, 9
        %s290 = scalar_select %p289, %s286, 9
        %s291 = smul.addr %s290, 2
        %s292 = smul.addr %s288, 20
        %s293 = sadd.s32 %s291, %s292
        %s294 = smul.addr %s293, 4
        %s295 = scalar_lea.vmem %s2, %s294
        %s296 = sadd.s32 %s20, 1
        %s297 = smul.u32 %s296, 8
        %s298 = sadd.s32 %s297, 1
      $region36: #{_lambda_.10} parent=23 // pred_fallthru
        _
      // Predicated region
      $region37: #{_lambda_.10} parent=23 // pred_check
        %p299 = pneg %p182
      $region38: #{_lambda_.10} parent=23 // pred_check_branch
        %301 = sbr.rel (%p299) target = $region40
      $region39: #{_lambda_.10} parent=23 // pred_region
        %s302 = smul.u32 8, %s20
        %p303 = scmp.lt.s32.totalorder %s19, 1
        %s304 = scalar_select %p303, %s19, 1
        %p305 = scmp.lt.s32.totalorder %s302, 7
        %s306 = scalar_select %p305, %s302, 7
        %s307 = smul.addr %s304, 8
        %s308 = sadd.s32 %s306, %s307
        %s309 = smul.addr %s308, 4
        %s310 = scalar_lea.vmem %s5, %s309
        %s311 = smul.u32 8, %s20
      $region40: #{_lambda_.10} parent=23 // pred_fallthru
        _
    $region24: #{_lambda_.10} parent=5 // pred_fallthru
      _
    %p312 = scmp.le.s32.totalorder 1, %s12
    %p313 = scmp.lt.s32.totalorder %s12, 3
    %p314 = pnand %p312, %p313
    %p315 = pneg %p314
    // Predicated region
    $region41: #{_lambda_.10} parent=5 // pred_check
      _
    $region42: #{_lambda_.10} parent=5 // pred_check_branch
      %317 = sbr.rel (%p314) target = $region44
    $region43: #{_lambda_.10} parent=5 // pred_region
      %s318 = ssub.s32 %s12, 1
      %s319 = smul.u32 8, %s22
      %s320 = ssub.s32 10, %s319
      %p321 = scmp.lt.s32.totalorder %s320, 8
      %s322 = scalar_select %p321, %s320, 8
      %s323 = smul.u32 64, %s322
      %s324 = smul.u32 %s323, 2
      %p325 = scmp.lt.s32.totalorder %s21, 1
      %s326 = scalar_select %p325, %s21, 1
      %p327 = scmp.lt.s32.totalorder %s319, 9
      %s328 = scalar_select %p327, %s319, 9
      %s329 = smul.addr %s328, 2
      %s330 = smul.addr %s326, 20
      %s331 = sadd.s32 %s329, %s330
      %s332 = smul.addr %s331, 4
      %s333 = scalar_lea.vmem %s0, %s332
      %p334 = pneg %p52
      %p335 = pneg %p49
      %s336 = sadd.s32 %s22, 1
      %s337 = smul.u32 %s336, 8
      %p338 = scmp.lt.s32.totalorder %s21, 1
      %s339 = scalar_select %p338, %s21, 1
      %p340 = scmp.lt.s32.totalorder %s337, 9
      %s341 = scalar_select %p340, %s337, 9
      %s342 = smul.addr %s341, 2
      %s343 = smul.addr %s339, 20
      %s344 = sadd.s32 %s342, %s343
      %s345 = smul.addr %s344, 4
      %s346 = scalar_lea.vmem %s1, %s345
      %p347 = pneg %p84
      %p348 = pneg %p81
      %s349 = sadd.s32 %s22, 1
      %s350 = smul.u32 %s349, 8
      %s351 = sadd.s32 %s350, 1
      %p352 = scmp.lt.s32.totalorder %s21, 1
      %s353 = scalar_select %p352, %s21, 1
      %p354 = scmp.lt.s32.totalorder %s351, 9
      %s355 = scalar_select %p354, %s351, 9
      %s356 = smul.addr %s355, 2
      %s357 = smul.addr %s353, 20
      %s358 = sadd.s32 %s356, %s357
      %s359 = smul.addr %s358, 4
      %s360 = scalar_lea.vmem %s2, %s359
      %p361 = pneg %p118
      %p362 = pneg %p115
      %p363 = pneg %p139
      %p364 = pneg %p136
      %p365 = pneg %p160
      %p366 = pneg %p157
      %s367 = smul.u32 8, %s22
      %p368 = scmp.lt.s32.totalorder %s21, 1
      %s369 = scalar_select %p368, %s21, 1
      %p370 = scmp.lt.s32.totalorder %s367, 7
      %s371 = scalar_select %p370, %s367, 7
      %s372 = smul.addr %s369, 8
      %s373 = sadd.s32 %s371, %s372
      %s374 = smul.addr %s373, 4
      %s375 = scalar_lea.vmem %s5, %s374
      %p376 = pneg %p188
      %p377 = pneg %p185
      %p378 = pneg %p216
      %p379 = pneg %p213
      %s380 = smul.u32 8, %s22
      %p381 = scmp.lt.s32.totalorder %s21, 1
      %s382 = scalar_select %p381, %s21, 1
      %p383 = scmp.lt.s32.totalorder %s380, 7
      %s384 = scalar_select %p383, %s380, 7
      %s385 = smul.addr %s382, 8
      %s386 = sadd.s32 %s384, %s385
      %s387 = smul.addr %s386, 4
      %s388 = scalar_lea.vmem %s6, %s387
      %s389 = smul.u32 8, %s22
      %s390 = ssub.s32 10, %s389
      %p391 = scmp.lt.s32.totalorder %s390, 8
      %s392 = scalar_select %p391, %s390, 8
      %s393 = smul.u32 64, %s392
      %s394 = smul.u32 %s393, 2
      %p395 = scmp.lt.s32.totalorder %s21, 1
      %s396 = scalar_select %p395, %s21, 1
      %p397 = scmp.lt.s32.totalorder %s389, 9
      %s398 = scalar_select %p397, %s389, 9
      %s399 = smul.addr %s398, 2
      %s400 = smul.addr %s396, 20
      %s401 = sadd.s32 %s399, %s400
      %s402 = smul.addr %s401, 4
      %s403 = scalar_lea.vmem %s0, %s402
      %s404 = smul.u32 8, %s22
      %s405 = ssub.s32 10, %s404
      %p406 = scmp.lt.s32.totalorder %s405, 8
      %s407 = scalar_select %p406, %s405, 8
      %s408 = smul.u32 64, %s407
      %s409 = smul.u32 %s408, 2
      %s410 = sadd.s32 %s22, 1
      %s411 = smul.u32 %s410, 8
      %p412 = scmp.lt.s32.totalorder %s21, 1
      %s413 = scalar_select %p412, %s21, 1
      %p414 = scmp.lt.s32.totalorder %s411, 9
      %s415 = scalar_select %p414, %s411, 9
      %s416 = smul.addr %s415, 2
      %s417 = smul.addr %s413, 20
      %s418 = sadd.s32 %s416, %s417
      %s419 = smul.addr %s418, 4
      %s420 = scalar_lea.vmem %s1, %s419
      %s421 = sadd.s32 %s22, 1
      %s422 = smul.u32 %s421, 8
      %s423 = sadd.s32 %s22, 1
      %s424 = smul.u32 %s423, 8
      %s425 = sadd.s32 %s424, 1
      %p426 = scmp.lt.s32.totalorder %s21, 1
      %s427 = scalar_select %p426, %s21, 1
      %p428 = scmp.lt.s32.totalorder %s425, 9
      %s429 = scalar_select %p428, %s425, 9
      %s430 = smul.addr %s429, 2
      %s431 = smul.addr %s427, 20
      %s432 = sadd.s32 %s430, %s431
      %s433 = smul.addr %s432, 4
      %s434 = scalar_lea.vmem %s2, %s433
      %s435 = sadd.s32 %s22, 1
      %s436 = smul.u32 %s435, 8
      %s437 = sadd.s32 %s436, 1
      %s438 = smul.u32 8, %s22
      %p439 = scmp.lt.s32.totalorder %s21, 1
      %s440 = scalar_select %p439, %s21, 1
      %p441 = scmp.lt.s32.totalorder %s438, 7
      %s442 = scalar_select %p441, %s438, 7
      %s443 = smul.addr %s440, 8
      %s444 = sadd.s32 %s442, %s443
      %s445 = smul.addr %s444, 4
      %s446 = scalar_lea.vmem %s5, %s445
      %s447 = smul.u32 8, %s22
      %s448 = smul.u32 8, %s22
      %p449 = scmp.lt.s32.totalorder %s21, 1
      %s450 = scalar_select %p449, %s21, 1
      %p451 = scmp.lt.s32.totalorder %s448, 7
      %s452 = scalar_select %p451, %s448, 7
      %s453 = smul.addr %s450, 8
      %s454 = sadd.s32 %s452, %s453
      %s455 = smul.addr %s454, 4
      %s456 = scalar_lea.vmem %s6, %s455
      %s457 = smul.u32 8, %s22
      %v459 = vld [vmem:[%s403] sm:$0xf]
      %v460 = vld [vmem:[%s403 + $0x4] sm:$0x1]
      %v461 = vld [vmem:[%s403 + $0x8] sm:$0xf]
      %v462 = vld [vmem:[%s403 + $0xc] sm:$0x1]
      %v463 = vld [vmem:[%s403 + $0x10] sm:$0xf]
      %v464 = vld [vmem:[%s403 + $0x14] sm:$0x1]
      %v465 = vld [vmem:[%s403 + $0x18] sm:$0xf]
      %v466 = vld [vmem:[%s403 + $0x1c] sm:$0x1]
      %v467 = vld [vmem:[%s403 + $0x20] sm:$0xf]
      %v468 = vld [vmem:[%s403 + $0x24] sm:$0x1]
      %v469 = vld [vmem:[%s403 + $0x28] sm:$0xf]
      %v470 = vld [vmem:[%s403 + $0x2c] sm:$0x1]
      %v471 = vld [vmem:[%s403 + $0x30] sm:$0xf]
      %v472 = vld [vmem:[%s403 + $0x34] sm:$0x1]
      %v473 = vld [vmem:[%s403 + $0x38] sm:$0xf]
      %v474 = vld [vmem:[%s403 + $0x3c] sm:$0x1]
      %v475 = vld [vmem:[%s420] sm:$0xf]
      %v476 = vld [vmem:[%s420 + $0x4] sm:$0x1]
      %v477 = vld [vmem:[%s434] sm:$0xf]
      %v478 = vld [vmem:[%s434 + $0x4] sm:$0x1]
      %v495 = vunpack.c.l.b16 %v459
      %v496 = vunpack.c.l.b16 %v460
      %v497 = vunpack.c.l.b16 %v461
      %v498 = vunpack.c.l.b16 %v462
      %v499 = vunpack.c.l.b16 %v463
      %v500 = vunpack.c.l.b16 %v464
      %v501 = vunpack.c.l.b16 %v465
      %v502 = vunpack.c.l.b16 %v466
      %v503 = vunpack.c.l.b16 %v467
      %v504 = vunpack.c.l.b16 %v468
      %v505 = vunpack.c.l.b16 %v469
      %v506 = vunpack.c.l.b16 %v470
      %v507 = vunpack.c.l.b16 %v471
      %v508 = vunpack.c.l.b16 %v472
      %v509 = vunpack.c.l.b16 %v473
      %v510 = vunpack.c.l.b16 %v474
      %v511 = vpack.c.b16 %v496, %v495
      %v512 = vpack.c.b16 %v498, %v497
      %v513 = vpack.c.b16 %v500, %v499
      %v514 = vpack.c.b16 %v502, %v501
      %v515 = vpack.c.b16 %v504, %v503
      %v516 = vpack.c.b16 %v506, %v505
      %v517 = vpack.c.b16 %v508, %v507
      %v518 = vpack.c.b16 %v510, %v509
      %v520 = vshrl.u32 %v511, 16
      %v522 = vshll.u32 %v511, 16
      %v524 = vrot.slane %v522, 1
      %v525 = vor.u32 %v520, %v524
      %v527 = vshrl.u32 %v512, 16
      %v529 = vshll.u32 %v512, 16
      %v531 = vrot.slane %v529, 1
      %v532 = vor.u32 %v527, %v531
      %v534 = vshrl.u32 %v513, 16
      %v536 = vshll.u32 %v513, 16
      %v538 = vrot.slane %v536, 1
      %v539 = vor.u32 %v534, %v538
      %v541 = vshrl.u32 %v514, 16
      %v543 = vshll.u32 %v514, 16
      %v545 = vrot.slane %v543, 1
      %v546 = vor.u32 %v541, %v545
      %v548 = vshrl.u32 %v515, 16
      %v550 = vshll.u32 %v515, 16
      %v552 = vrot.slane %v550, 1
      %v553 = vor.u32 %v548, %v552
      %v555 = vshrl.u32 %v516, 16
      %v557 = vshll.u32 %v516, 16
      %v559 = vrot.slane %v557, 1
      %v560 = vor.u32 %v555, %v559
      %v562 = vshrl.u32 %v517, 16
      %v564 = vshll.u32 %v517, 16
      %v566 = vrot.slane %v564, 1
      %v567 = vor.u32 %v562, %v566
      %v569 = vshrl.u32 %v518, 16
      %v571 = vshll.u32 %v518, 16
      %v573 = vrot.slane %v571, 1
      %v574 = vor.u32 %v569, %v573
      %575 = vrot.lane.b32.xlu0 %v525, 8
      %v576 = vpop.permute.xlu0 %575
      %577 = vrot.lane.b32.xlu0 %v532, 8
      %v578 = vpop.permute.xlu0 %577
      %579 = vrot.lane.b32.xlu0 %v539, 8
      %v580 = vpop.permute.xlu0 %579
      %581 = vrot.lane.b32.xlu0 %v546, 8
      %v582 = vpop.permute.xlu0 %581
      %583 = vrot.lane.b32.xlu0 %v553, 8
      %v584 = vpop.permute.xlu0 %583
      %585 = vrot.lane.b32.xlu0 %v560, 8
      %v586 = vpop.permute.xlu0 %585
      %587 = vrot.lane.b32.xlu0 %v567, 8
      %v588 = vpop.permute.xlu0 %587
      %589 = vrot.lane.b32.xlu0 %v574, 8
      %v590 = vpop.permute.xlu0 %589
      %v591 = vrot.slane %v511, 1
      %v592 = vrot.slane %v512, 1
      %v593 = vrot.slane %v513, 1
      %v594 = vrot.slane %v514, 1
      %v595 = vrot.slane %v515, 1
      %v596 = vrot.slane %v516, 1
      %v597 = vrot.slane %v517, 1
      %v598 = vrot.slane %v518, 1
      %599 = vrot.lane.b32.xlu0 %v591, 16
      %v600 = vpop.permute.xlu0 %599
      %601 = vrot.lane.b32.xlu0 %v592, 16
      %v602 = vpop.permute.xlu0 %601
      %603 = vrot.lane.b32.xlu0 %v593, 16
      %v604 = vpop.permute.xlu0 %603
      %605 = vrot.lane.b32.xlu0 %v594, 16
      %v606 = vpop.permute.xlu0 %605
      %607 = vrot.lane.b32.xlu0 %v595, 16
      %v608 = vpop.permute.xlu0 %607
      %609 = vrot.lane.b32.xlu0 %v596, 16
      %v610 = vpop.permute.xlu0 %609
      %611 = vrot.lane.b32.xlu0 %v597, 16
      %v612 = vpop.permute.xlu0 %611
      %613 = vrot.lane.b32.xlu0 %v598, 16
      %v614 = vpop.permute.xlu0 %613
      %v616 = vunpack.c.l.b16 %v475
      %v617 = vpack.c.b16 %v497, %v497
      %v618 = vpack.c.b16 %v499, %v499
      %v619 = vpack.c.b16 %v501, %v501
      %v620 = vpack.c.b16 %v503, %v503
      %v621 = vpack.c.b16 %v505, %v505
      %v622 = vpack.c.b16 %v507, %v507
      %v623 = vpack.c.b16 %v509, %v509
      %v624 = vpack.c.b16 %v616, %v616
      %625 = vrot.lane.b32.xlu0 %v617, 24
      %v626 = vpop.permute.xlu0 %625
      %627 = vrot.lane.b32.xlu0 %v618, 24
      %v628 = vpop.permute.xlu0 %627
      %629 = vrot.lane.b32.xlu0 %v619, 24
      %v630 = vpop.permute.xlu0 %629
      %631 = vrot.lane.b32.xlu0 %v620, 24
      %v632 = vpop.permute.xlu0 %631
      %633 = vrot.lane.b32.xlu0 %v621, 24
      %v634 = vpop.permute.xlu0 %633
      %635 = vrot.lane.b32.xlu0 %v622, 24
      %v636 = vpop.permute.xlu0 %635
      %637 = vrot.lane.b32.xlu0 %v623, 24
      %v638 = vpop.permute.xlu0 %637
      %639 = vrot.lane.b32.xlu0 %v624, 24
      %v640 = vpop.permute.xlu0 %639
      %v642 = vunpack.c.l.b16 %v476
      %v643 = vpack.c.b16 %v642, %v616
      %v645 = vshrl.u32 %v643, 16
      %v647 = vshll.u32 %v643, 16
      %v649 = vrot.slane %v647, 1
      %v650 = vor.u32 %v645, %v649
      %651 = vrot.lane.b32.xlu0 %v532, 32
      %v652 = vpop.permute.xlu0 %651
      %653 = vrot.lane.b32.xlu0 %v539, 32
      %v654 = vpop.permute.xlu0 %653
      %655 = vrot.lane.b32.xlu0 %v546, 32
      %v656 = vpop.permute.xlu0 %655
      %657 = vrot.lane.b32.xlu0 %v553, 32
      %v658 = vpop.permute.xlu0 %657
      %659 = vrot.lane.b32.xlu0 %v560, 32
      %v660 = vpop.permute.xlu0 %659
      %661 = vrot.lane.b32.xlu0 %v567, 32
      %v662 = vpop.permute.xlu0 %661
      %663 = vrot.lane.b32.xlu0 %v574, 32
      %v664 = vpop.permute.xlu0 %663
      %665 = vrot.lane.b32.xlu0 %v650, 32
      %v666 = vpop.permute.xlu0 %665
      %v667 = vrot.slane %v643, 1
      %668 = vrot.lane.b32.xlu0 %v592, 40
      %v669 = vpop.permute.xlu0 %668
      %670 = vrot.lane.b32.xlu0 %v593, 40
      %v671 = vpop.permute.xlu0 %670
      %672 = vrot.lane.b32.xlu0 %v594, 40
      %v673 = vpop.permute.xlu0 %672
      %674 = vrot.lane.b32.xlu0 %v595, 40
      %v675 = vpop.permute.xlu0 %674
      %676 = vrot.lane.b32.xlu0 %v596, 40
      %v677 = vpop.permute.xlu0 %676
      %678 = vrot.lane.b32.xlu0 %v597, 40
      %v679 = vpop.permute.xlu0 %678
      %680 = vrot.lane.b32.xlu0 %v598, 40
      %v681 = vpop.permute.xlu0 %680
      %682 = vrot.lane.b32.xlu0 %v667, 40
      %v683 = vpop.permute.xlu0 %682
      %v685 = vunpack.c.l.b16 %v477
      %v686 = vpack.c.b16 %v685, %v685
      %687 = vrot.lane.b32.xlu0 %v618, 48
      %v688 = vpop.permute.xlu0 %687
      %689 = vrot.lane.b32.xlu0 %v619, 48
      %v690 = vpop.permute.xlu0 %689
      %691 = vrot.lane.b32.xlu0 %v620, 48
      %v692 = vpop.permute.xlu0 %691
      %693 = vrot.lane.b32.xlu0 %v621, 48
      %v694 = vpop.permute.xlu0 %693
      %695 = vrot.lane.b32.xlu0 %v622, 48
      %v696 = vpop.permute.xlu0 %695
      %697 = vrot.lane.b32.xlu0 %v623, 48
      %v698 = vpop.permute.xlu0 %697
      %699 = vrot.lane.b32.xlu0 %v624, 48
      %v700 = vpop.permute.xlu0 %699
      %701 = vrot.lane.b32.xlu0 %v686, 48
      %v702 = vpop.permute.xlu0 %701
      %v704 = vunpack.c.l.b16 %v478
      %v705 = vpack.c.b16 %v704, %v685
      %v707 = vshrl.u32 %v705, 16
      %v709 = vshll.u32 %v705, 16
      %v711 = vrot.slane %v709, 1
      %v712 = vor.u32 %v707, %v711
      %713 = vrot.lane.b32.xlu0 %v539, 56
      %v714 = vpop.permute.xlu0 %713
      %715 = vrot.lane.b32.xlu0 %v546, 56
      %v716 = vpop.permute.xlu0 %715
      %717 = vrot.lane.b32.xlu0 %v553, 56
      %v718 = vpop.permute.xlu0 %717
      %719 = vrot.lane.b32.xlu0 %v560, 56
      %v720 = vpop.permute.xlu0 %719
      %721 = vrot.lane.b32.xlu0 %v567, 56
      %v722 = vpop.permute.xlu0 %721
      %723 = vrot.lane.b32.xlu0 %v574, 56
      %v724 = vpop.permute.xlu0 %723
      %725 = vrot.lane.b32.xlu0 %v650, 56
      %v726 = vpop.permute.xlu0 %725
      %727 = vrot.lane.b32.xlu0 %v712, 56
      %v728 = vpop.permute.xlu0 %727
      %v729 = vrot.slane %v705, 1
      %730 = vrot.lane.b32.xlu0 %v593, 64
      %v731 = vpop.permute.xlu0 %730
      %732 = vrot.lane.b32.xlu0 %v594, 64
      %v733 = vpop.permute.xlu0 %732
      %734 = vrot.lane.b32.xlu0 %v595, 64
      %v735 = vpop.permute.xlu0 %734
      %736 = vrot.lane.b32.xlu0 %v596, 64
      %v737 = vpop.permute.xlu0 %736
      %738 = vrot.lane.b32.xlu0 %v597, 64
      %v739 = vpop.permute.xlu0 %738
      %740 = vrot.lane.b32.xlu0 %v598, 64
      %v741 = vpop.permute.xlu0 %740
      %742 = vrot.lane.b32.xlu0 %v667, 64
      %v743 = vpop.permute.xlu0 %742
      %744 = vrot.lane.b32.xlu0 %v729, 64
      %v745 = vpop.permute.xlu0 %744
      %vm746 = vcmask 64512
      %v749 = vsel %vm746, %v459, %v576
      %v752 = vsel %vm746, %v461, %v578
      %v755 = vsel %vm746, %v463, %v580
      %v758 = vsel %vm746, %v465, %v582
      %v761 = vsel %vm746, %v467, %v584
      %v764 = vsel %vm746, %v469, %v586
      %v767 = vsel %vm746, %v471, %v588
      %v770 = vsel %vm746, %v473, %v590
      %vm771 = vcmask 130048
      %v773 = vsel %vm771, %v749, %v600
      %v775 = vsel %vm771, %v752, %v602
      %v777 = vsel %vm771, %v755, %v604
      %v779 = vsel %vm771, %v758, %v606
      %v781 = vsel %vm771, %v761, %v608
      %v783 = vsel %vm771, %v764, %v610
      %v785 = vsel %vm771, %v767, %v612
      %v787 = vsel %vm771, %v770, %v614
      %vm788 = vcmask 195584
      %v790 = vsel %vm788, %v773, %v626
      %v792 = vsel %vm788, %v775, %v628
      %v794 = vsel %vm788, %v777, %v630
      %v796 = vsel %vm788, %v779, %v632
      %v798 = vsel %vm788, %v781, %v634
      %v800 = vsel %vm788, %v783, %v636
      %v802 = vsel %vm788, %v785, %v638
      %v804 = vsel %vm788, %v787, %v640
      %vm805 = vcmask 261120
      %v807 = vsel %vm805, %v790, %v652
      %v809 = vsel %vm805, %v792, %v654
      %v811 = vsel %vm805, %v794, %v656
      %v813 = vsel %vm805, %v796, %v658
      %v815 = vsel %vm805, %v798, %v660
      %v817 = vsel %vm805, %v800, %v662
      %v819 = vsel %vm805, %v802, %v664
      %v821 = vsel %vm805, %v804, %v666
      %vm822 = vcmask 326656
      %v824 = vsel %vm822, %v807, %v669
      %v826 = vsel %vm822, %v809, %v671
      %v828 = vsel %vm822, %v811, %v673
      %v830 = vsel %vm822, %v813, %v675
      %v832 = vsel %vm822, %v815, %v677
      %v834 = vsel %vm822, %v817, %v679
      %v836 = vsel %vm822, %v819, %v681
      %v838 = vsel %vm822, %v821, %v683
      %vm839 = vcmask 392192
      %v841 = vsel %vm839, %v824, %v688
      %v843 = vsel %vm839, %v826, %v690
      %v845 = vsel %vm839, %v828, %v692
      %v847 = vsel %vm839, %v830, %v694
      %v849 = vsel %vm839, %v832, %v696
      %v851 = vsel %vm839, %v834, %v698
      %v853 = vsel %vm839, %v836, %v700
      %v855 = vsel %vm839, %v838, %v702
      %vm856 = vcmask 457728
      %v858 = vsel %vm856, %v841, %v714
      %v860 = vsel %vm856, %v843, %v716
      %v862 = vsel %vm856, %v845, %v718
      %v864 = vsel %vm856, %v847, %v720
      %v866 = vsel %vm856, %v849, %v722
      %v868 = vsel %vm856, %v851, %v724
      %v870 = vsel %vm856, %v853, %v726
      %v872 = vsel %vm856, %v855, %v728
      %vm873 = vcmask 523264
      %v875 = vsel %vm873, %v858, %v731
      %v877 = vsel %vm873, %v860, %v733
      %v879 = vsel %vm873, %v862, %v735
      %v881 = vsel %vm873, %v864, %v737
      %v883 = vsel %vm873, %v866, %v739
      %v885 = vsel %vm873, %v868, %v741
      %v887 = vsel %vm873, %v870, %v743
      %v889 = vsel %vm873, %v872, %v745
      %v890 = vld [vmem:[%s3] sm:$0xf]
      %v891 = vld [vmem:[%s3 + $0x4] sm:$0xf]
      %v892 = vld [vmem:[%s3 + $0x8] sm:$0xf]
      %v893 = vld [vmem:[%s3 + $0xc] sm:$0xf]
      %v894 = vld [vmem:[%s3 + $0x10] sm:$0xf]
      %v895 = vld [vmem:[%s3 + $0x14] sm:$0xf]
      %v896 = vld [vmem:[%s3 + $0x18] sm:$0xf]
      %v897 = vld [vmem:[%s3 + $0x1c] sm:$0xf]
      %v898 = vld [vmem:[%s3 + $0x20] sm:$0xf]
      %v899 = vld [vmem:[%s4] sm:$0x1]
      %v901 = vlaneseq
      %v902 = vshrl.u32 %v901, 7
      %v903 = vsub.s32 0, %v902
      %v904 = vrot.slane %v899, %v903
      %v914 = vunpack.c.l.b16 %v875
      %v915 = vunpack.c.l.b16 %v877
      %v916 = vunpack.c.l.b16 %v879
      %v917 = vunpack.c.l.b16 %v881
      %v918 = vunpack.c.l.b16 %v883
      %v919 = vunpack.c.l.b16 %v885
      %v920 = vunpack.c.l.b16 %v887
      %v921 = vunpack.c.l.b16 %v889
      %v922 = vpack.c.b16 %v915, %v914
      %v923 = vpack.c.b16 %v917, %v916
      %v924 = vpack.c.b16 %v919, %v918
      %v925 = vpack.c.b16 %v921, %v920
      %v935 = vunpack.c.l.b16 %v890
      %v936 = vunpack.c.l.b16 %v891
      %v937 = vunpack.c.l.b16 %v892
      %v938 = vunpack.c.l.b16 %v893
      %v939 = vunpack.c.l.b16 %v894
      %v940 = vunpack.c.l.b16 %v895
      %v941 = vunpack.c.l.b16 %v896
      %v942 = vunpack.c.l.b16 %v897
      %v943 = vunpack.c.l.b16 %v898
      %v944 = vpack.c.b16 %v936, %v935
      %v945 = vpack.c.b16 %v938, %v937
      %v946 = vpack.c.b16 %v940, %v939
      %v947 = vpack.c.b16 %v942, %v941
      %v948 = vpack.c.b16 %v943, %v943
      %vm953 = vcmask 588800
      %v955 = vsel %vm953, %v922, 0
      %v958 = vsel %vm953, %v923, 0
      %v961 = vsel %vm953, %v924, 0
      %v964 = vsel %vm953, %v925, 0
      %vm966 = vcmask 1043456
      %v968 = vsel %vm966, %v948, 0
      %970 = vmatprep.subr.bf16.mxu0 0
      %971 = vmatpush1.bf16.msra.mxu0 %v944
      %972 = vmatprep.subr.bf16.mxu0 0
      %973 = vmatpush1.bf16.msra.mxu0 %v945
      %974 = vmatprep.subr.bf16.mxu0 0
      %975 = vmatpush1.bf16.msra.mxu0 %v946
      %976 = vmatprep.subr.bf16.mxu0 0
      %977 = vmatpush1.bf16.msra.mxu0 %v947
      %978 = vmatprep.subr.bf16.mxu0 0
      %979 = vmatpush1.bf16.msra.mxu0 %v968
      %980 = vmatprep.subr.bf16.mxu0 0
      %981 = vmatpush1.bf16.msra.mxu0 0
      %982 = vmatprep.subr.bf16.mxu0 0
      %983 = vmatpush1.bf16.msra.mxu0 0
      %984 = vmatprep.subr.bf16.mxu0 0
      %985 = vmatpush1.bf16.msra.mxu0 0
      %986 = vmatprep.subr.bf16.mxu0 0
      %987 = vmatpush1.bf16.msra.mxu0 0
      %988 = vmatprep.subr.bf16.mxu0 0
      %989 = vmatpush1.bf16.msra.mxu0 0
      %990 = vmatprep.subr.bf16.mxu0 0
      %991 = vmatpush1.bf16.msra.mxu0 0
      %992 = vmatprep.subr.bf16.mxu0 0
      %993 = vmatpush1.bf16.msra.mxu0 0
      %994 = vmatprep.subr.bf16.mxu0 0
      %995 = vmatpush1.bf16.msra.mxu0 0
      %996 = vmatprep.subr.bf16.mxu0 0
      %997 = vmatpush1.bf16.msra.mxu0 0
      %998 = vmatprep.subr.bf16.mxu0 0
      %999 = vmatpush1.bf16.msra.mxu0 0
      %1000 = vmatprep.subr.bf16.mxu0 0
      %1001 = vmatpush1.bf16.msra.mxu0 0
      %1002 = vmatprep.mubr.bf16.mxu0 0
      %1003 = vmatmul.mubr.bf16.gmra.mrb[0].mxu0 %v955
      %v1004 = vpop.f32.mrb[0].mxu0
      %v1005 = vadd.f32 %v904, %v1004
      %v1006 = vpop.f32.mrb[0].mxu0
      %v1007 = vpop.f32.mrb[0].mxu0
      %v1008 = vadd.f32 %v904, %v1007
      %v1009 = vpop.f32.mrb[0].mxu0
      %1010 = vmatprep.mubr.bf16.mxu0 0
      %1011 = vmatmul.mubr.bf16.gmra.mrb[0].mxu0 %v958
      %v1012 = vpop.f32.mrb[0].mxu0
      %v1013 = vadd.f32 %v904, %v1012
      %v1014 = vpop.f32.mrb[0].mxu0
      %v1015 = vpop.f32.mrb[0].mxu0
      %v1016 = vadd.f32 %v904, %v1015
      %v1017 = vpop.f32.mrb[0].mxu0
      %1018 = vmatprep.mubr.bf16.mxu0 0
      %1019 = vmatmul.mubr.bf16.gmra.mrb[0].mxu0 %v961
      %v1020 = vpop.f32.mrb[0].mxu0
      %v1021 = vadd.f32 %v904, %v1020
      %v1022 = vpop.f32.mrb[0].mxu0
      %v1023 = vpop.f32.mrb[0].mxu0
      %v1024 = vadd.f32 %v904, %v1023
      %v1025 = vpop.f32.mrb[0].mxu0
      %1026 = vmatprep.mubr.bf16.mxu0 0
      %1027 = vmatmul.mubr.bf16.gmra.mrb[0].mxu0 %v964
      %v1028 = vpop.f32.mrb[0].mxu0
      %v1029 = vadd.f32 %v904, %v1028
      %v1030 = vpop.f32.mrb[0].mxu0
      %v1031 = vpop.f32.mrb[0].mxu0
      %v1032 = vadd.f32 %v904, %v1031
      %v1033 = vpop.f32.mrb[0].mxu0
      %1034 = vdwg.mxu0
      %v1035 = vld [vmem:[%s446] sm:$0xf]
      %v1036 = vld [vmem:[%s446 + $0x4] sm:$0xf]
      %v1037 = vld [vmem:[%s446 + $0x8] sm:$0xf]
      %v1038 = vld [vmem:[%s446 + $0xc] sm:$0xf]
      %v1039 = vld [vmem:[%s446 + $0x10] sm:$0xf]
      %v1040 = vld [vmem:[%s446 + $0x14] sm:$0xf]
      %v1041 = vld [vmem:[%s446 + $0x18] sm:$0xf]
      %v1042 = vld [vmem:[%s446 + $0x1c] sm:$0xf]
      %v1043 = vunpack.c.l.bf16 %v1035
      %v1044 = vunpack.c.l.bf16 %v1036
      %v1045 = vunpack.c.l.bf16 %v1037
      %v1046 = vunpack.c.l.bf16 %v1038
      %v1047 = vunpack.c.l.bf16 %v1039
      %v1048 = vunpack.c.l.bf16 %v1040
      %v1049 = vunpack.c.l.bf16 %v1041
      %v1050 = vunpack.c.l.bf16 %v1042
      %v1051 = vadd.f32 %v1005, %v1043
      %v1052 = vadd.f32 %v1008, %v1044
      %v1053 = vadd.f32 %v1013, %v1045
      %v1054 = vadd.f32 %v1016, %v1046
      %v1055 = vadd.f32 %v1021, %v1047
      %v1056 = vadd.f32 %v1024, %v1048
      %v1057 = vadd.f32 %v1029, %v1049
      %v1058 = vadd.f32 %v1032, %v1050
      %v1059 = vmax.f32 %v1051, 0.0
      %v1060 = vmax.f32 %v1052, 0.0
      %v1061 = vmax.f32 %v1053, 0.0
      %v1062 = vmax.f32 %v1054, 0.0
      %v1063 = vmax.f32 %v1055, 0.0
      %v1064 = vmax.f32 %v1056, 0.0
      %v1065 = vmax.f32 %v1057, 0.0
      %v1066 = vmax.f32 %v1058, 0.0
      %v1067 = vpack.c.bf16 %v1059, %v1059
      %v1068 = vpack.c.bf16 %v1060, %v1060
      %v1069 = vpack.c.bf16 %v1061, %v1061
      %v1070 = vpack.c.bf16 %v1062, %v1062
      %v1071 = vpack.c.bf16 %v1063, %v1063
      %v1072 = vpack.c.bf16 %v1064, %v1064
      %v1073 = vpack.c.bf16 %v1065, %v1065
      %v1074 = vpack.c.bf16 %v1066, %v1066
      %vm1075 = vcmask 60416
      %1076 = vst.msk [vmem:[%s456] sm:$0xf] %vm1075, %v1067
      %1077 = vst.msk [vmem:[%s456 + $0x4] sm:$0xf] %vm1075, %v1068
      %1078 = vst.msk [vmem:[%s456 + $0x8] sm:$0xf] %vm1075, %v1069
      %1079 = vst.msk [vmem:[%s456 + $0xc] sm:$0xf] %vm1075, %v1070
      %1080 = vst.msk [vmem:[%s456 + $0x10] sm:$0xf] %vm1075, %v1071
      %1081 = vst.msk [vmem:[%s456 + $0x14] sm:$0xf] %vm1075, %v1072
      %1082 = vst.msk [vmem:[%s456 + $0x18] sm:$0xf] %vm1075, %v1073
      %1083 = vst.msk [vmem:[%s456 + $0x1c] sm:$0xf] %vm1075, %v1074
      %s1084 = smul.u32 8, %s22
      %p1085 = scmp.lt.s32.totalorder %s21, 1
      %s1086 = scalar_select %p1085, %s21, 1
      %p1087 = scmp.lt.s32.totalorder %s1084, 7
      %s1088 = scalar_select %p1087, %s1084, 7
      %s1089 = smul.addr %s1086, 8
      %s1090 = sadd.s32 %s1088, %s1089
      %s1091 = smul.addr %s1090, 4
      %s1092 = scalar_lea.vmem %s6, %s1091
      // Predicated region
      $region45: #{_lambda_.10} parent=43 // pred_check
        %p1093 = pneg %p213
      $region46: #{_lambda_.10} parent=43 // pred_check_branch
        %1095 = sbr.rel (%p1093) target = $region48
      $region47: #{_lambda_.10} parent=43 // pred_region
        %s1096 = smul.u32 8, %s22
      $region48: #{_lambda_.10} parent=43 // pred_fallthru
        _
    $region44: #{_lambda_.10} parent=5 // pred_fallthru
      _
    %p1097 = scmp.le.s32.totalorder 2, %s12
    // Predicated region
    $region49: #{_lambda_.10} parent=5 // pred_check
      %p1098 = pneg %p1097
    $region50: #{_lambda_.10} parent=5 // pred_check_branch
      %1100 = sbr.rel (%p1098) target = $region52
    $region51: #{_lambda_.10} parent=5 // pred_region
      %s1101 = ssub.s32 %s12, 2
      // Predicated region
      $region53: #{_lambda_.10} parent=51 // pred_check
        %p1102 = pneg %p219
      $region54: #{_lambda_.10} parent=51 // pred_check_branch
        %1104 = sbr.rel (%p1102) target = $region56
      $region55: #{_lambda_.10} parent=51 // pred_region
        %s1105 = smul.u32 8, %s24
        %p1106 = scmp.lt.s32.totalorder %s23, 1
        %s1107 = scalar_select %p1106, %s23, 1
        %p1108 = scmp.lt.s32.totalorder %s1105, 7
        %s1109 = scalar_select %p1108, %s1105, 7
        %s1110 = smul.addr %s1107, 8
        %s1111 = sadd.s32 %s1109, %s1110
        %s1112 = smul.addr %s1111, 4
        %s1113 = scalar_lea.vmem %s6, %s1112
      $region56: #{_lambda_.10} parent=51 // pred_fallthru
        _
    $region52: #{_lambda_.10} parent=5 // pred_fallthru
      _
  $region6: #{_lambda_.10} parent=0 // loop_footer
    %s16 = sadd.s32 1, %s12
  $region7: #{_lambda_.10} parent=0 // loop_footer_branch
    %11 = sbr.rel target = $region3
  $region8: #{_lambda_.10} parent=0 // loop_exit
    _

// kernel: _lambda_.11
$region0: #{_lambda_.11}
  #allocation0 [shape = 'u32[]', space=smem, size = 0x4, offset = 0x4, fixed_abs, tag = 'smem constant byte address 0x4 - core index']
  #allocation1 [shape = 'u32[144,128]{1,0:T(1,128)}', space=vmem, size = 0x12000, scoped, tag = 'internal scratch']
  %s0 = inlined_call_operand.vmem [shape: bf16[2,8,8,8], index: 0, kind: input, shape index: {}]
  %s1 = inlined_call_operand.vmem [shape: bf16[2,8,8,8], index: 1, kind: input, shape index: {}]
  %s2 = inlined_call_operand.vmem [shape: bf16[2,8,8,4], index: 2, kind: input, shape index: {}]
  %s3 = inlined_call_operand.vmem [shape: bf16[20,8], index: 3, kind: input, shape index: {}]
  %s4 = inlined_call_operand.vmem [shape: f32[1,8], index: 4, kind: input, shape index: {}]
  %s5 = inlined_call_operand.hbm [shape: f32[2,8,8,8], index: 5, kind: output, shape index: {}]
  %s6 = sld [smem:[#allocation0]]
  $region53: #{_lambda_.11} parent=0
    _
  %s8 = ssub.s32 1, %s6
  %s9 = scalar_select 0, %s8, %s6
  $region1: #{_lambda_.11} parent=0
    #allocation2 [shape = 'u8[65536]{0}', space=vmem, size = 0x10000, scoped, tag = 'output window, operand 0']
    #allocation3 [shape = 's32[2]{0}', space=sflag, size = 0x8, scoped, tag = 'scoped memory for _lambda_.11']
    %10 = vsyncpa [#allocation3], 0
    %s11 = scalar_lea.sflag [#allocation3], 1
    %12 = vsyncpa %s11, 0
    loop: start=0, step=1, limit=4
    $region2: #{_lambda_.11} parent=1 // loop_pre_header
      _
    $region3: #{_lambda_.11} parent=1 // loop_header
      %s14 = sphi 0, %s18
      %p15 = scmp.ge.s32.totalorder %s14, 4
      %s21 = sphi 0, %s33
      %s22 = sphi 0, %s29
      %s23 = sphi 0, %s21
      %s24 = sphi 0, %s22
      %s25 = sphi 0, %s23
      %s26 = sphi 0, %s24
      %s38 = sphi 0, %s40
      %s41 = sphi 0, %s38
      %s42 = sphi 0, %s41
      %s58 = sphi 0, %s42
      %s66 = sphi 0, %s68
      %s69 = sphi 0, %s66
      %s70 = sphi 0, %s69
      %s86 = sphi 0, %s70
      %s94 = sphi 0, %s96
      %s97 = sphi 0, %s94
      %s98 = sphi 0, %s97
      %s114 = sphi 0, %s98
      %s118 = sphi 0, %s118
      %s120 = sphi 0, %s118
      %s121 = sphi 0, %s120
      %s135 = sphi 0, %s121
      %s139 = sphi 0, %s139
      %s141 = sphi 0, %s139
      %s142 = sphi 0, %s141
      %s156 = sphi 0, %s142
      %s164 = sphi 0, %s166
      %s167 = sphi 0, %s164
      %s168 = sphi 0, %s167
      %s184 = sphi 0, %s168
    $region4: #{_lambda_.11} parent=1 // loop_header_branch
      %17 = sbr.rel (%p15) target = $region8
    $region5: #{_lambda_.11} parent=1 // loop_body
      %s19 = ssub.s32 %s14, 1
      %s20 = ssub.s32 %s14, 2
      %s27 = sadd.s32 1, %s22
      %p28 = scmp.ge.s32.totalorder %s27, 1
      %s29 = scalar_select %p28, 0, %s27
      %s30 = sadd.s32 1, %s21
      %s31 = scalar_select %p28, %s30, %s21
      %p32 = scmp.ge.s32.totalorder %s31, 2
      %s33 = scalar_select %p32, 0, %s31
      %s34 = ssub.s32 %s21, %s33
      %s35 = ssub.s32 %s22, %s29
      %s36 = sor.u32 %s34, %s35
      %p37 = scmp.eq.s32.totalorder %s36, 0
      %s39 = sadd.s32 %s38, 1
      %s40 = scalar_select %p37, %s38, %s39
      %p43 = pneg %p37
      %p44 = scmp.eq.s32.totalorder %s14, 1
      %p45 = por %p43, %p44
      %p46 = scmp.ne.s32.totalorder %s38, %s41
      %p47 = scmp.eq.s32.totalorder %s14, 0
      %p48 = por %p46, %p47
      %p49 = scmp.ne.s32.totalorder %s38, %s41
      %p50 = scmp.eq.s32.totalorder %s19, 1
      %p51 = por %p49, %p50
      %p52 = scmp.ne.s32.totalorder %s41, %s42
      %p53 = scmp.eq.s32.totalorder %s19, 0
      %p54 = por %p52, %p53
      %p55 = scmp.ne.s32.totalorder %s41, %s42
      %p56 = scmp.eq.s32.totalorder %s20, 1
      %p57 = por %p55, %p56
      %p59 = scmp.ne.s32.totalorder %s42, %s58
      %p60 = scmp.eq.s32.totalorder %s20, 0
      %p61 = por %p59, %p60
      %s62 = ssub.s32 %s21, %s33
      %s63 = ssub.s32 %s22, %s29
      %s64 = sor.u32 %s62, %s63
      %p65 = scmp.eq.s32.totalorder %s64, 0
      %s67 = sadd.s32 %s66, 1
      %s68 = scalar_select %p65, %s66, %s67
      %p71 = pneg %p65
      %p72 = scmp.eq.s32.totalorder %s14, 1
      %p73 = por %p71, %p72
      %p74 = scmp.ne.s32.totalorder %s66, %s69
      %p75 = scmp.eq.s32.totalorder %s14, 0
      %p76 = por %p74, %p75
      %p77 = scmp.ne.s32.totalorder %s66, %s69
      %p78 = scmp.eq.s32.totalorder %s19, 1
      %p79 = por %p77, %p78
      %p80 = scmp.ne.s32.totalorder %s69, %s70
      %p81 = scmp.eq.s32.totalorder %s19, 0
      %p82 = por %p80, %p81
      %p83 = scmp.ne.s32.totalorder %s69, %s70
      %p84 = scmp.eq.s32.totalorder %s20, 1
      %p85 = por %p83, %p84
      %p87 = scmp.ne.s32.totalorder %s70, %s86
      %p88 = scmp.eq.s32.totalorder %s20, 0
      %p89 = por %p87, %p88
      %s90 = ssub.s32 %s21, %s33
      %s91 = ssub.s32 %s22, %s29
      %s92 = sor.u32 %s90, %s91
      %p93 = scmp.eq.s32.totalorder %s92, 0
      %s95 = sadd.s32 %s94, 1
      %s96 = scalar_select %p93, %s94, %s95
      %p99 = pneg %p93
      %p100 = scmp.eq.s32.totalorder %s14, 1
      %p101 = por %p99, %p100
      %p102 = scmp.ne.s32.totalorder %s94, %s97
      %p103 = scmp.eq.s32.totalorder %s14, 0
      %p104 = por %p102, %p103
      %p105 = scmp.ne.s32.totalorder %s94, %s97
      %p106 = scmp.eq.s32.totalorder %s19, 1
      %p107 = por %p105, %p106
      %p108 = scmp.ne.s32.totalorder %s97, %s98
      %p109 = scmp.eq.s32.totalorder %s19, 0
      %p110 = por %p108, %p109
      %p111 = scmp.ne.s32.totalorder %s97, %s98
      %p112 = scmp.eq.s32.totalorder %s20, 1
      %p113 = por %p111, %p112
      %p115 = scmp.ne.s32.totalorder %s98, %s114
      %p116 = scmp.eq.s32.totalorder %s20, 0
      %p117 = por %p115, %p116
      %s119 = sadd.s32 %s118, 1
      %p122 = scmp.eq.s32.totalorder %s14, 1
      %p123 = scmp.ne.s32.totalorder %s118, %s120
      %p124 = scmp.eq.s32.totalorder %s14, 0
      %p125 = por %p123, %p124
      %p126 = scmp.ne.s32.totalorder %s118, %s120
      %p127 = scmp.eq.s32.totalorder %s19, 1
      %p128 = por %p126, %p127
      %p129 = scmp.ne.s32.totalorder %s120, %s121
      %p130 = scmp.eq.s32.totalorder %s19, 0
      %p131 = por %p129, %p130
      %p132 = scmp.ne.s32.totalorder %s120, %s121
      %p133 = scmp.eq.s32.totalorder %s20, 1
      %p134 = por %p132, %p133
      %p136 = scmp.ne.s32.totalorder %s121, %s135
      %p137 = scmp.eq.s32.totalorder %s20, 0
      %p138 = por %p136, %p137
      %s140 = sadd.s32 %s139, 1
      %p143 = scmp.eq.s32.totalorder %s14, 1
      %p144 = scmp.ne.s32.totalorder %s139, %s141
      %p145 = scmp.eq.s32.totalorder %s14, 0
      %p146 = por %p144, %p145
      %p147 = scmp.ne.s32.totalorder %s139, %s141
      %p148 = scmp.eq.s32.totalorder %s19, 1
      %p149 = por %p147, %p148
      %p150 = scmp.ne.s32.totalorder %s141, %s142
      %p151 = scmp.eq.s32.totalorder %s19, 0
      %p152 = por %p150, %p151
      %p153 = scmp.ne.s32.totalorder %s141, %s142
      %p154 = scmp.eq.s32.totalorder %s20, 1
      %p155 = por %p153, %p154
      %p157 = scmp.ne.s32.totalorder %s142, %s156
      %p158 = scmp.eq.s32.totalorder %s20, 0
      %p159 = por %p157, %p158
      %s160 = ssub.s32 %s21, %s33
      %s161 = ssub.s32 %s22, %s29
      %s162 = sor.u32 %s160, %s161
      %p163 = scmp.eq.s32.totalorder %s162, 0
      %s165 = sadd.s32 %s164, 1
      %s166 = scalar_select %p163, %s164, %s165
      %p169 = pneg %p163
      %p170 = scmp.eq.s32.totalorder %s14, 1
      %p171 = por %p169, %p170
      %p172 = scmp.ne.s32.totalorder %s164, %s167
      %p173 = scmp.eq.s32.totalorder %s14, 0
      %p174 = por %p172, %p173
      %p175 = scmp.ne.s32.totalorder %s164, %s167
      %p176 = scmp.eq.s32.totalorder %s19, 1
      %p177 = por %p175, %p176
      %p178 = scmp.ne.s32.totalorder %s167, %s168
      %p179 = scmp.eq.s32.totalorder %s19, 0
      %p180 = por %p178, %p179
      %p181 = scmp.ne.s32.totalorder %s167, %s168
      %p182 = scmp.eq.s32.totalorder %s20, 1
      %p183 = por %p181, %p182
      %p185 = scmp.ne.s32.totalorder %s168, %s184
      %p186 = scmp.eq.s32.totalorder %s20, 0
      %p187 = por %p185, %p186
      %p188 = scmp.le.s32.totalorder 1, %s14
      %p189 = scmp.lt.s32.totalorder %s14, 3
      %p190 = pnand %p188, %p189
      %p191 = pneg %p190
      // Predicated region
      $region9: #{_lambda_.11} parent=5 // pred_check
        _
      $region10: #{_lambda_.11} parent=5 // pred_check_branch
        %193 = sbr.rel (%p190) target = $region12
      $region11: #{_lambda_.11} parent=5 // pred_region
        %s194 = ssub.s32 %s14, 1
        // Predicated region
        $region13: #{_lambda_.11} parent=11 // pred_check
          %p195 = pneg %p131
        $region14: #{_lambda_.11} parent=11 // pred_check_branch
          %197 = sbr.rel (%p195) target = $region16
        $region15: #{_lambda_.11} parent=11 // pred_region
          _
        $region16: #{_lambda_.11} parent=11 // pred_fallthru
          _
        // Predicated region
        $region17: #{_lambda_.11} parent=11 // pred_check
          %p198 = pneg %p152
        $region18: #{_lambda_.11} parent=11 // pred_check_branch
          %200 = sbr.rel (%p198) target = $region20
        $region19: #{_lambda_.11} parent=11 // pred_region
          _
        $region20: #{_lambda_.11} parent=11 // pred_fallthru
          _
      $region12: #{_lambda_.11} parent=5 // pred_fallthru
        _
      %p201 = scmp.lt.s32.totalorder %s14, 2
      // Predicated region
      $region21: #{_lambda_.11} parent=5 // pred_check
        %p202 = pneg %p201
      $region22: #{_lambda_.11} parent=5 // pred_check_branch
        %204 = sbr.rel (%p202) target = $region24
      $region23: #{_lambda_.11} parent=5 // pred_region
        // Predicated region
        $region25: #{_lambda_.11} parent=23 // pred_check
          %p205 = pneg %p48
        $region26: #{_lambda_.11} parent=23 // pred_check_branch
          %207 = sbr.rel (%p205) target = $region28
        $region27: #{_lambda_.11} parent=23 // pred_region
          %s208 = smul.u32 8, %s22
          %p209 = scmp.lt.s32.totalorder %s21, 1
          %s210 = scalar_select %p209, %s21, 1
          %p211 = scmp.lt.s32.totalorder %s208, 7
          %s212 = scalar_select %p211, %s208, 7
          %s213 = smul.addr %s210, 8
          %s214 = sadd.s32 %s212, %s213
          %s215 = smul.addr %s214, 4
          %s216 = scalar_lea.vmem %s0, %s215
          %s217 = smul.u32 8, %s22
        $region28: #{_lambda_.11} parent=23 // pred_fallthru
          _
        // Predicated region
        $region29: #{_lambda_.11} parent=23 // pred_check
          %p218 = pneg %p76
        $region30: #{_lambda_.11} parent=23 // pred_check_branch
          %220 = sbr.rel (%p218) target = $region32
        $region31: #{_lambda_.11} parent=23 // pred_region
          %s221 = smul.u32 8, %s22
          %p222 = scmp.lt.s32.totalorder %s21, 1
          %s223 = scalar_select %p222, %s21, 1
          %p224 = scmp.lt.s32.totalorder %s221, 7
          %s225 = scalar_select %p224, %s221, 7
          %s226 = smul.addr %s223, 8
          %s227 = sadd.s32 %s225, %s226
          %s228 = smul.addr %s227, 4
          %s229 = scalar_lea.vmem %s1, %s228
          %s230 = smul.u32 8, %s22
        $region32: #{_lambda_.11} parent=23 // pred_fallthru
          _
        // Predicated region
        $region33: #{_lambda_.11} parent=23 // pred_check
          %p231 = pneg %p104
        $region34: #{_lambda_.11} parent=23 // pred_check_branch
          %233 = sbr.rel (%p231) target = $region36
        $region35: #{_lambda_.11} parent=23 // pred_region
          %s234 = smul.u32 8, %s22
          %p235 = scmp.lt.s32.totalorder %s21, 1
          %s236 = scalar_select %p235, %s21, 1
          %p237 = scmp.lt.s32.totalorder %s234, 7
          %s238 = scalar_select %p237, %s234, 7
          %s239 = smul.addr %s236, 8
          %s240 = sadd.s32 %s238, %s239
          %s241 = smul.addr %s240, 4
          %s242 = scalar_lea.vmem %s2, %s241
          %s243 = smul.u32 8, %s22
        $region36: #{_lambda_.11} parent=23 // pred_fallthru
          _
      $region24: #{_lambda_.11} parent=5 // pred_fallthru
        _
      %p244 = scmp.le.s32.totalorder 1, %s14
      %p245 = scmp.lt.s32.totalorder %s14, 3
      %p246 = pnand %p244, %p245
      %p247 = pneg %p246
      // Predicated region
      $region37: #{_lambda_.11} parent=5 // pred_check
        _
      $region38: #{_lambda_.11} parent=5 // pred_check_branch
        %249 = sbr.rel (%p246) target = $region40
      $region39: #{_lambda_.11} parent=5 // pred_region
        %s250 = ssub.s32 %s14, 1
        %s251 = smul.u32 8, %s24
        %p252 = scmp.lt.s32.totalorder %s23, 1
        %s253 = scalar_select %p252, %s23, 1
        %p254 = scmp.lt.s32.totalorder %s251, 7
        %s255 = scalar_select %p254, %s251, 7
        %s256 = smul.addr %s253, 8
        %s257 = sadd.s32 %s255, %s256
        %s258 = smul.addr %s257, 4
        %s259 = scalar_lea.vmem %s0, %s258
        %p260 = pneg %p54
        %p261 = pneg %p51
        %s262 = smul.u32 8, %s24
        %p263 = scmp.lt.s32.totalorder %s23, 1
        %s264 = scalar_select %p263, %s23, 1
        %p265 = scmp.lt.s32.totalorder %s262, 7
        %s266 = scalar_select %p265, %s262, 7
        %s267 = smul.addr %s264, 8
        %s268 = sadd.s32 %s266, %s267
        %s269 = smul.addr %s268, 4
        %s270 = scalar_lea.vmem %s1, %s269
        %p271 = pneg %p82
        %p272 = pneg %p79
        %s273 = smul.u32 8, %s24
        %p274 = scmp.lt.s32.totalorder %s23, 1
        %s275 = scalar_select %p274, %s23, 1
        %p276 = scmp.lt.s32.totalorder %s273, 7
        %s277 = scalar_select %p276, %s273, 7
        %s278 = smul.addr %s275, 8
        %s279 = sadd.s32 %s277, %s278
        %s280 = smul.addr %s279, 4
        %s281 = scalar_lea.vmem %s2, %s280
        %p282 = pneg %p110
        %p283 = pneg %p107
        %p284 = pneg %p131
        %p285 = pneg %p128
        %p286 = pneg %p152
        %p287 = pneg %p149
        %p288 = pneg %p180
        %p289 = pneg %p177
        %s290 = sand.u32 %s167, 1
        %s291 = scalar_lea.sflag [#allocation3], %s290
        %s292 = sand.u32 %s167, 1
        %s293 = smul.addr %s292, 64
        %s294 = scalar_lea.vmem [#allocation2], %s293
        %s295 = smul.u32 8, %s24
        %p296 = scmp.lt.s32.totalorder %s23, 1
        %s297 = scalar_select %p296, %s23, 1
        %p298 = scmp.lt.s32.totalorder %s295, 7
        %s299 = scalar_select %p298, %s295, 7
        %s300 = smul.addr %s297, 8
        %s301 = sadd.s32 %s299, %s300
        %s302 = smul.addr %s301, 4
        %s303 = scalar_lea.vmem %s0, %s302
        %s304 = smul.u32 8, %s24
        %s305 = smul.u32 8, %s24
        %p306 = scmp.lt.s32.totalorder %s23, 1
        %s307 = scalar_select %p306, %s23, 1
        %p308 = scmp.lt.s32.totalorder %s305, 7
        %s309 = scalar_select %p308, %s305, 7
        %s310 = smul.addr %s307, 8
        %s311 = sadd.s32 %s309, %s310
        %s312 = smul.addr %s311, 4
        %s313 = scalar_lea.vmem %s1, %s312
        %s314 = smul.u32 8, %s24
        %s315 = smul.u32 8, %s24
        %p316 = scmp.lt.s32.totalorder %s23, 1
        %s317 = scalar_select %p316, %s23, 1
        %p318 = scmp.lt.s32.totalorder %s315, 7
        %s319 = scalar_select %p318, %s315, 7
        %s320 = smul.addr %s317, 8
        %s321 = sadd.s32 %s319, %s320
        %s322 = smul.addr %s321, 4
        %s323 = scalar_lea.vmem %s2, %s322
        %s324 = smul.u32 8, %s24
        %s325 = smul.u32 8, %s24
        %v327 = vld [vmem:[%s303] sm:$0xf]
        %v328 = vld [vmem:[%s303 + $0x4] sm:$0xf]
        %v329 = vld [vmem:[%s303 + $0x8] sm:$0xf]
        %v330 = vld [vmem:[%s303 + $0xc] sm:$0xf]
        %v331 = vld [vmem:[%s303 + $0x10] sm:$0xf]
        %v332 = vld [vmem:[%s303 + $0x14] sm:$0xf]
        %v333 = vld [vmem:[%s303 + $0x18] sm:$0xf]
        %v334 = vld [vmem:[%s303 + $0x1c] sm:$0xf]
        %v335 = vld [vmem:[%s313] sm:$0xf]
        %v336 = vld [vmem:[%s313 + $0x4] sm:$0xf]
        %v337 = vld [vmem:[%s313 + $0x8] sm:$0xf]
        %v338 = vld [vmem:[%s313 + $0xc] sm:$0xf]
        %v339 = vld [vmem:[%s313 + $0x10] sm:$0xf]
        %v340 = vld [vmem:[%s313 + $0x14] sm:$0xf]
        %v341 = vld [vmem:[%s313 + $0x18] sm:$0xf]
        %v342 = vld [vmem:[%s313 + $0x1c] sm:$0xf]
        %v343 = vld [vmem:[%s323] sm:$0xf]
        %v344 = vld [vmem:[%s323 + $0x4] sm:$0xf]
        %v345 = vld [vmem:[%s323 + $0x8] sm:$0xf]
        %v346 = vld [vmem:[%s323 + $0xc] sm:$0xf]
        %v347 = vld [vmem:[%s323 + $0x10] sm:$0xf]
        %v348 = vld [vmem:[%s323 + $0x14] sm:$0xf]
        %v349 = vld [vmem:[%s323 + $0x18] sm:$0xf]
        %v350 = vld [vmem:[%s323 + $0x1c] sm:$0xf]
        %v359 = vunpack.c.l.b16 %v335
        %v360 = vunpack.c.l.b16 %v336
        %v361 = vunpack.c.l.b16 %v337
        %v362 = vunpack.c.l.b16 %v338
        %v363 = vunpack.c.l.b16 %v339
        %v364 = vunpack.c.l.b16 %v340
        %v365 = vunpack.c.l.b16 %v341
        %v366 = vunpack.c.l.b16 %v342
        %v367 = vpack.c.b16 %v359, %v359
        %v368 = vpack.c.b16 %v360, %v360
        %v369 = vpack.c.b16 %v361, %v361
        %v370 = vpack.c.b16 %v362, %v362
        %v371 = vpack.c.b16 %v363, %v363
        %v372 = vpack.c.b16 %v364, %v364
        %v373 = vpack.c.b16 %v365, %v365
        %v374 = vpack.c.b16 %v366, %v366
        %375 = vrot.lane.b32.xlu0 %v367, 8
        %v376 = vpop.permute.xlu0 %375
        %377 = vrot.lane.b32.xlu0 %v368, 8
        %v378 = vpop.permute.xlu0 %377
        %379 = vrot.lane.b32.xlu0 %v369, 8
        %v380 = vpop.permute.xlu0 %379
        %381 = vrot.lane.b32.xlu0 %v370, 8
        %v382 = vpop.permute.xlu0 %381
        %383 = vrot.lane.b32.xlu0 %v371, 8
        %v384 = vpop.permute.xlu0 %383
        %385 = vrot.lane.b32.xlu0 %v372, 8
        %v386 = vpop.permute.xlu0 %385
        %387 = vrot.lane.b32.xlu0 %v373, 8
        %v388 = vpop.permute.xlu0 %387
        %389 = vrot.lane.b32.xlu0 %v374, 8
        %v390 = vpop.permute.xlu0 %389
        %v399 = vunpack.c.l.b16 %v343
        %v400 = vunpack.c.l.b16 %v344
        %v401 = vunpack.c.l.b16 %v345
        %v402 = vunpack.c.l.b16 %v346
        %v403 = vunpack.c.l.b16 %v347
        %v404 = vunpack.c.l.b16 %v348
        %v405 = vunpack.c.l.b16 %v349
        %v406 = vunpack.c.l.b16 %v350
        %v407 = vpack.c.b16 %v399, %v399
        %v408 = vpack.c.b16 %v400, %v400
        %v409 = vpack.c.b16 %v401, %v401
        %v410 = vpack.c.b16 %v402, %v402
        %v411 = vpack.c.b16 %v403, %v403
        %v412 = vpack.c.b16 %v404, %v404
        %v413 = vpack.c.b16 %v405, %v405
        %v414 = vpack.c.b16 %v406, %v406
        %415 = vrot.lane.b32.xlu0 %v407, 16
        %v416 = vpop.permute.xlu0 %415
        %417 = vrot.lane.b32.xlu0 %v408, 16
        %v418 = vpop.permute.xlu0 %417
        %419 = vrot.lane.b32.xlu0 %v409, 16
        %v420 = vpop.permute.xlu0 %419
        %421 = vrot.lane.b32.xlu0 %v410, 16
        %v422 = vpop.permute.xlu0 %421
        %423 = vrot.lane.b32.xlu0 %v411, 16
        %v424 = vpop.permute.xlu0 %423
        %425 = vrot.lane.b32.xlu0 %v412, 16
        %v426 = vpop.permute.xlu0 %425
        %427 = vrot.lane.b32.xlu0 %v413, 16
        %v428 = vpop.permute.xlu0 %427
        %429 = vrot.lane.b32.xlu0 %v414, 16
        %v430 = vpop.permute.xlu0 %429
        %vm431 = vcmask 64512
        %v434 = vsel %vm431, %v327, %v376
        %v437 = vsel %vm431, %v328, %v378
        %v440 = vsel %vm431, %v329, %v380
        %v443 = vsel %vm431, %v330, %v382
        %v446 = vsel %vm431, %v331, %v384
        %v449 = vsel %vm431, %v332, %v386
        %v452 = vsel %vm431, %v333, %v388
        %v455 = vsel %vm431, %v334, %v390
        %vm456 = vcmask 130048
        %v458 = vsel %vm456, %v434, %v416
        %v460 = vsel %vm456, %v437, %v418
        %v462 = vsel %vm456, %v440, %v420
        %v464 = vsel %vm456, %v443, %v422
        %v466 = vsel %vm456, %v446, %v424
        %v468 = vsel %vm456, %v449, %v426
        %v470 = vsel %vm456, %v452, %v428
        %v472 = vsel %vm456, %v455, %v430
        %v473 = vld [vmem:[%s3] sm:$0xf]
        %v474 = vld [vmem:[%s3 + $0x4] sm:$0xf]
        %v475 = vld [vmem:[%s3 + $0x8] sm:$0x3]
        %v476 = vld [vmem:[%s4] sm:$0x1]
        %v478 = vlaneseq
        %v479 = vshrl.u32 %v478, 7
        %v480 = vsub.s32 0, %v479
        %v481 = vrot.slane %v476, %v480
        %v491 = vunpack.c.l.b16 %v458
        %v492 = vunpack.c.l.b16 %v460
        %v493 = vunpack.c.l.b16 %v462
        %v494 = vunpack.c.l.b16 %v464
        %v495 = vunpack.c.l.b16 %v466
        %v496 = vunpack.c.l.b16 %v468
        %v497 = vunpack.c.l.b16 %v470
        %v498 = vunpack.c.l.b16 %v472
        %v499 = vpack.c.b16 %v492, %v491
        %v500 = vpack.c.b16 %v494, %v493
        %v501 = vpack.c.b16 %v496, %v495
        %v502 = vpack.c.b16 %v498, %v497
        %v506 = vunpack.c.l.b16 %v473
        %v507 = vunpack.c.l.b16 %v474
        %v508 = vunpack.c.l.b16 %v475
        %v509 = vpack.c.b16 %v507, %v506
        %v510 = vpack.c.b16 %v508, %v508
        %vm512 = vcmask 162816
        %v514 = vsel %vm512, %v499, 0
        %v517 = vsel %vm512, %v500, 0
        %v520 = vsel %vm512, %v501, 0
        %v523 = vsel %vm512, %v502, 0
        %vm525 = vcmask 1041408
        %v527 = vsel %vm525, %v510, 0
        %529 = vmatprep.subr.bf16.mxu0 0
        %530 = vmatpush1.bf16.msra.mxu0 %v509
        %531 = vmatprep.subr.bf16.mxu0 0
        %532 = vmatpush1.bf16.msra.mxu0 %v527
        %533 = vmatprep.subr.bf16.mxu0 0
        %534 = vmatpush1.bf16.msra.mxu0 0
        %535 = vmatprep.subr.bf16.mxu0 0
        %536 = vmatpush1.bf16.msra.mxu0 0
        %537 = vmatprep.subr.bf16.mxu0 0
        %538 = vmatpush1.bf16.msra.mxu0 0
        %539 = vmatprep.subr.bf16.mxu0 0
        %540 = vmatpush1.bf16.msra.mxu0 0
        %541 = vmatprep.subr.bf16.mxu0 0
        %542 = vmatpush1.bf16.msra.mxu0 0
        %543 = vmatprep.subr.bf16.mxu0 0
        %544 = vmatpush1.bf16.msra.mxu0 0
        %545 = vmatprep.subr.bf16.mxu0 0
        %546 = vmatpush1.bf16.msra.mxu0 0
        %547 = vmatprep.subr.bf16.mxu0 0
        %548 = vmatpush1.bf16.msra.mxu0 0
        %549 = vmatprep.subr.bf16.mxu0 0
        %550 = vmatpush1.bf16.msra.mxu0 0
        %551 = vmatprep.subr.bf16.mxu0 0
        %552 = vmatpush1.bf16.msra.mxu0 0
        %553 = vmatprep.subr.bf16.mxu0 0
        %554 = vmatpush1.bf16.msra.mxu0 0
        %555 = vmatprep.subr.bf16.mxu0 0
        %556 = vmatpush1.bf16.msra.mxu0 0
        %557 = vmatprep.subr.bf16.mxu0 0
        %558 = vmatpush1.bf16.msra.mxu0 0
        %559 = vmatprep.subr.bf16.mxu0 0
        %560 = vmatpush1.bf16.msra.mxu0 0
        %561 = vmatprep.mubr.bf16.mxu0 0
        %562 = vmatmul.mubr.bf16.gmra.mrb[0].mxu0 %v514
        %v563 = vpop.f32.mrb[0].mxu0
        %v564 = vadd.f32 %v481, %v563
        %v565 = vpop.f32.mrb[0].mxu0
        %v566 = vpop.f32.mrb[0].mxu0
        %v567 = vadd.f32 %v481, %v566
        %v568 = vpop.f32.mrb[0].mxu0
        %569 = vmatprep.mubr.bf16.mxu0 0
        %570 = vmatmul.mubr.bf16.gmra.mrb[0].mxu0 %v517
        %v571 = vpop.f32.mrb[0].mxu0
        %v572 = vadd.f32 %v481, %v571
        %v573 = vpop.f32.mrb[0].mxu0
        %v574 = vpop.f32.mrb[0].mxu0
        %v575 = vadd.f32 %v481, %v574
        %v576 = vpop.f32.mrb[0].mxu0
        %577 = vmatprep.mubr.bf16.mxu0 0
        %578 = vmatmul.mubr.bf16.gmra.mrb[0].mxu0 %v520
        %v579 = vpop.f32.mrb[0].mxu0
        %v580 = vadd.f32 %v481, %v579
        %v581 = vpop.f32.mrb[0].mxu0
        %v582 = vpop.f32.mrb[0].mxu0
        %v583 = vadd.f32 %v481, %v582
        %v584 = vpop.f32.mrb[0].mxu0
        %585 = vmatprep.mubr.bf16.mxu0 0
        %586 = vmatmul.mubr.bf16.gmra.mrb[0].mxu0 %v523
        %v587 = vpop.f32.mrb[0].mxu0
        %v588 = vadd.f32 %v481, %v587
        %v589 = vpop.f32.mrb[0].mxu0
        %v590 = vpop.f32.mrb[0].mxu0
        %v591 = vadd.f32 %v481, %v590
        %v592 = vpop.f32.mrb[0].mxu0
        %593 = vdwg.mxu0
        %v594 = vmax.f32 %v564, 0.0
        %v595 = vmax.f32 %v567, 0.0
        %v596 = vmax.f32 %v572, 0.0
        %v597 = vmax.f32 %v575, 0.0
        %v598 = vmax.f32 %v580, 0.0
        %v599 = vmax.f32 %v583, 0.0
        %v600 = vmax.f32 %v588, 0.0
        %v601 = vmax.f32 %v591, 0.0
        %602 = vst.msk [vmem:[%s294] sm:$0xff] %vm431, %v594
        %603 = vst.msk [vmem:[%s294 + $0x8] sm:$0xff] %vm431, %v595
        %604 = vst.msk [vmem:[%s294 + $0x10] sm:$0xff] %vm431, %v596
        %605 = vst.msk [vmem:[%s294 + $0x18] sm:$0xff] %vm431, %v597
        %606 = vst.msk [vmem:[%s294 + $0x20] sm:$0xff] %vm431, %v598
        %607 = vst.msk [vmem:[%s294 + $0x28] sm:$0xff] %vm431, %v599
        %608 = vst.msk [vmem:[%s294 + $0x30] sm:$0xff] %vm431, %v600
        %609 = vst.msk [vmem:[%s294 + $0x38] sm:$0xff] %vm431, %v601
        %s610 = sand.u32 %s167, 1
        %s611 = scalar_lea.sflag [#allocation3], %s610
        %s612 = sand.u32 %s167, 1
        %s613 = smul.addr %s612, 64
        %s614 = scalar_lea.vmem [#allocation2], %s613
        // Predicated region
        $region41: #{_lambda_.11} parent=39 // pred_check
          %p615 = pneg %p177
        $region42: #{_lambda_.11} parent=39 // pred_check_branch
          %617 = sbr.rel (%p615) target = $region44
        $region43: #{_lambda_.11} parent=39 // pred_region
          %s618 = smul.u32 8, %s24
          %s620 = ssub.s32 1024, 1024
          %621 = vsyncadd %s611, %s620
          %s622 = smul.addr %s23, 8
          %s623 = sadd.s32 %s618, %s622
          %s624 = smul.addr %s623, 128
          %s625 = scalar_lea.hbm %s5, %s624
          %s626 = sshll.u32 %s614, 4
          %s627 = int_to_ptr.vmem [resolvable:$true] %s626
          %632 = dma.vmem_to_hbm [thread:$0]  %s627, 1024, %s625, %s611, 128, 128, 8
        $region44: #{_lambda_.11} parent=39 // pred_fallthru
          _
      $region40: #{_lambda_.11} parent=5 // pred_fallthru
        _
      %p633 = scmp.le.s32.totalorder 2, %s14
      // Predicated region
      $region45: #{_lambda_.11} parent=5 // pred_check
        %p634 = pneg %p633
      $region46: #{_lambda_.11} parent=5 // pred_check_branch
        %636 = sbr.rel (%p634) target = $region48
      $region47: #{_lambda_.11} parent=5 // pred_region
        %s637 = ssub.s32 %s14, 2
        // Predicated region
        $region49: #{_lambda_.11} parent=47 // pred_check
          %p638 = pneg %p183
        $region50: #{_lambda_.11} parent=47 // pred_check_branch
          %640 = sbr.rel (%p638) target = $region52
        $region51: #{_lambda_.11} parent=47 // pred_region
          %s641 = sand.u32 %s168, 1
          %s642 = scalar_lea.sflag [#allocation3], %s641
          %s643 = sand.u32 %s168, 1
          %s644 = smul.addr %s643, 64
          %s645 = scalar_lea.vmem [#allocation2], %s644
          %646 = dma.done %s642, 1024
        $region52: #{_lambda_.11} parent=47 // pred_fallthru
          _
      $region48: #{_lambda_.11} parent=5 // pred_fallthru
        _
    $region6: #{_lambda_.11} parent=1 // loop_footer
      %s18 = sadd.s32 1, %s14
    $region7: #{_lambda_.11} parent=1 // loop_footer_branch
      %13 = sbr.rel target = $region3
    $region8: #{_lambda_.11} parent=1 // loop_exit
      _
    %647 = vsyncpa [#allocation3], 1
    %s648 = scalar_lea.sflag [#allocation3], 1
    %649 = vsyncpa %s648, 1

</llo_original>
